<compile_context>
chip_gen: v7x
topology: tpu7x:2x2x1
jax: 0.10.0
libtpu: 0.0.40
codegen_flags: <defaults>
</compile_context>

<pallas_src>
import jax
import jax.numpy as jnp
from jax.experimental import pallas as pl
from jax.experimental.pallas import tpu as pltpu

# Fixed LeNet geometry (implied by the module spec: 32x32x3 input).
_K1P = 128   # conv1 im2col K: 3*5*5 = 75  -> padded to 128
_K2P = 256   # conv2 im2col K: 6*5*5 = 150 -> padded to 256
_CP = 128    # padded channel / feature lane width (lane-dense outputs)
_VMEM_LIMIT = 48 * 1024 * 1024


def _pick_tile_rows():
    """Per-generation row tile for kernel A: bigger on 128-MiB-VMEM chips."""
    try:
        vmem = pltpu.get_tpu_info().vmem_capacity_bytes
        return 2048 if vmem >= 96 * 1024 * 1024 else 1024
    except Exception:
        return 1024


_TM_A = _pick_tile_rows()


# ---------------------------------------------------------------------------
# Pallas kernels
# ---------------------------------------------------------------------------
def _conv_pool_kernel(p_ref, w_ref, b_ref, o_ref):
    """Fused conv-as-matmul + 2x2 maxpool + bias + ReLU.

    p_ref: (4, TM, K) bf16 — the four pool-tap im2col matrices.  All 4 taps
    are pushed through the MXU as ONE (4*TM, K) matmul; the pool is a max over
    the tap axis; bias+ReLU are applied once after the max (monotone).
    """
    t, tm, k = p_ref.shape
    z = jnp.dot(p_ref[...].reshape(t * tm, k), w_ref[...],
                preferred_element_type=jnp.float32)          # (4*TM, 128) f32
    h = jnp.max(z.reshape(t, tm, z.shape[-1]), axis=0)       # pool max
    o_ref[...] = jnp.maximum(h + b_ref[...], 0.0).astype(o_ref.dtype)


def _conv2_fc_kernel(p_ref, w2_ref, b2_ref, wf1_ref, bf1_ref, wf2_ref, bf2_ref,
                     wf3_ref, bf3_ref, o_ref):
    """conv2 + relu + pool2 fused with the whole fc1 -> fc2 -> fc3 chain.

    p_ref: (4, 25, bn, 256) bf16 — (pool tap, spatial s, sample, im2col col).
    conv2 is one big matmul over all taps/positions; pool2 is a max over the
    tap axis; bias+ReLU follow the max.  fc1 is an accumulating sum over the
    25 spatial positions against static 128-row slices of the pre-permuted
    fc1 weight, so no VMEM scratch re-pack or transpose is ever needed.
    """
    t, ns, bn, k2 = p_ref.shape
    z = jnp.dot(p_ref[...].reshape(t * ns * bn, k2), w2_ref[...],
                preferred_element_type=jnp.float32)          # (4*25*bn, 128)
    h = jnp.max(z.reshape(t, ns * bn, _CP), axis=0)          # (25*bn, 128), rows (s, n)
    h = jnp.maximum(h + b2_ref[...], 0.0)                    # bias + relu after pool
    a = None
    for s in range(ns):                                      # accumulating fc1
        zs = jnp.dot(h[s * bn:(s + 1) * bn, :],
                     wf1_ref[s * _CP:(s + 1) * _CP, :],
                     preferred_element_type=jnp.float32)
        a = zs if a is None else a + zs
    a = jnp.maximum(a + bf1_ref[...], 0.0)
    a = jnp.maximum(jnp.dot(a, wf2_ref[...], preferred_element_type=jnp.float32)
                    + bf2_ref[...], 0.0)
    o_ref[...] = (jnp.dot(a, wf3_ref[...], preferred_element_type=jnp.float32)
                  + bf3_ref[...])


# ---------------------------------------------------------------------------
# pallas_call wrappers
# ---------------------------------------------------------------------------
def conv1_pool_stage(p1, w1m, b1v):
    """p1: (4, M, 128) bf16 pool-tap im2col -> (M, 128) bf16 pool1 activations."""
    _, m_rows, k = p1.shape
    tm = _TM_A if m_rows > _TM_A else max(8, ((m_rows + 7) // 8) * 8)
    mp = ((m_rows + tm - 1) // tm) * tm
    if mp != m_rows:
        p1 = jnp.pad(p1, ((0, 0), (0, mp - m_rows), (0, 0)))
    out = pl.pallas_call(
        _conv_pool_kernel,
        out_shape=jax.ShapeDtypeStruct((mp, _CP), jnp.bfloat16),
        grid=(mp // tm,),
        in_specs=[
            pl.BlockSpec((4, tm, k), lambda m: (0, m, 0)),
            pl.BlockSpec((k, _CP), lambda m: (0, 0)),
            pl.BlockSpec((1, _CP), lambda m: (0, 0)),
        ],
        out_specs=pl.BlockSpec((tm, _CP), lambda m: (m, 0)),
        compiler_params=pltpu.CompilerParams(
            dimension_semantics=("parallel",),
            vmem_limit_bytes=_VMEM_LIMIT,
        ),
    )(p1, w1m, b1v)
    return out[:m_rows] if mp != m_rows else out


def conv2_fc_stage(p2, w2m, b2v, wf1, bf1, wf2, bf2, wf3, bf3, bn):
    """p2: (4, 25, NP, 256) bf16 -> (NP, 128) padded f32 logits, tiled over batch."""
    np_batch = p2.shape[2]
    return pl.pallas_call(
        _conv2_fc_kernel,
        out_shape=jax.ShapeDtypeStruct((np_batch, _CP), jnp.float32),
        grid=(np_batch // bn,),
        in_specs=[
            pl.BlockSpec((4, 25, bn, _K2P), lambda g: (0, 0, g, 0)),
            pl.BlockSpec((_K2P, _CP), lambda g: (0, 0)),
            pl.BlockSpec((1, _CP), lambda g: (0, 0)),
            pl.BlockSpec((25 * _CP, _CP), lambda g: (0, 0)),
            pl.BlockSpec((1, _CP), lambda g: (0, 0)),
            pl.BlockSpec((_CP, _CP), lambda g: (0, 0)),
            pl.BlockSpec((1, _CP), lambda g: (0, 0)),
            pl.BlockSpec((_CP, _CP), lambda g: (0, 0)),
            pl.BlockSpec((1, _CP), lambda g: (0, 0)),
        ],
        out_specs=pl.BlockSpec((bn, _CP), lambda g: (g, 0)),
        compiler_params=pltpu.CompilerParams(
            dimension_semantics=("parallel",),
            vmem_limit_bytes=_VMEM_LIMIT,
        ),
    )(p2, w2m, b2v, wf1, bf1, wf2, bf2, wf3, bf3)


# ---------------------------------------------------------------------------
# Layout plumbing (wrapper): im2col split into the 4 maxpool taps, in bf16
# ---------------------------------------------------------------------------
def _conv1_pool_patches(x):
    # x: (N, 3, 32, 32) -> (4, N*196, 128) bf16; rows ordered (n, i, j) over
    # the 14x14 pooled grid; columns (ci, di, dj) padded 75 -> 128.
    x = x.astype(jnp.bfloat16)
    n = x.shape[0]
    cols = [x[:, :, di:di + 28, dj:dj + 28] for di in range(5) for dj in range(5)]
    p = jnp.stack(cols, axis=2).reshape(n, 75, 28, 28)   # col = ci*25 + di*5 + dj
    p = p.transpose(0, 2, 3, 1)                          # (N, 28, 28, 75)
    taps = [p[:, a::2, b::2, :].reshape(n * 196, 75)
            for a in range(2) for b in range(2)]
    p1 = jnp.stack(taps, axis=0)                         # (4, N*196, 75)
    return jnp.pad(p1, ((0, 0), (0, 0), (0, _K1P - 75)))


def _conv2_pool_patches(pool1, np_batch):
    # pool1: (N, 14, 14, 6) bf16 -> (4, 25, NP, 256) bf16 with axes
    # (tap, s = i2*5+j2, sample, col=(ci, di, dj) padded 150->256); each batch
    # block of the kernel-B grid is a contiguous slab.
    n = pool1.shape[0]
    taps = []
    for a in range(2):
        for b in range(2):
            cols = [pool1[:, a + di:a + di + 9:2, b + dj:b + dj + 9:2, :]
                    for di in range(5) for dj in range(5)]      # each (N,5,5,6)
            q = jnp.stack(cols, axis=4).reshape(n, 5, 5, 150)   # col = ci*25+di*5+dj
            q = q.transpose(1, 2, 0, 3).reshape(25, n, 150)     # (s, n, 150)
            if np_batch > n:
                q = jnp.pad(q, ((0, 0), (0, np_batch - n), (0, 0)))
            taps.append(q)
    p2 = jnp.stack(taps, axis=0)                                # (4, 25, NP, 150)
    return jnp.pad(p2, ((0, 0), (0, 0), (0, 0), (0, _K2P - 150)))


# ---------------------------------------------------------------------------
# Parameters: PyTorch-default-style init + one-time padding/transposition
# ---------------------------------------------------------------------------
def init_params(key):
    def uniform(k, shape, fan_in):
        bound = 1.0 / float(fan_in) ** 0.5
        return jax.random.uniform(k, shape, jnp.float32, -bound, bound)

    ks = jax.random.split(key, 10)
    return {
        "conv1_w": uniform(ks[0], (6, 3, 5, 5), 3 * 5 * 5),
        "conv1_b": uniform(ks[1], (6,), 3 * 5 * 5),
        "conv2_w": uniform(ks[2], (16, 6, 5, 5), 6 * 5 * 5),
        "conv2_b": uniform(ks[3], (16,), 6 * 5 * 5),
        "fc1_w": uniform(ks[4], (120, 400), 400),
        "fc1_b": uniform(ks[5], (120,), 400),
        "fc2_w": uniform(ks[6], (84, 120), 120),
        "fc2_b": uniform(ks[7], (84,), 120),
        "fc3_w": uniform(ks[8], (20, 84), 84),
        "fc3_b": uniform(ks[9], (20,), 84),
    }


def prepare_params(params):
    """One-time transpose/zero-pad of all weights to the kernel layouts."""
    def padw(m, rows, cols):
        r, c = m.shape
        return jnp.pad(m, ((0, rows - r), (0, cols - c)))

    def padb(v, cols):
        return jnp.pad(v.reshape(1, -1), ((0, 0), (0, cols - v.shape[0])))

    # fc1 weight: (120, 400=c*25+i*5+j) -> (s=i*5+j blocks of 128 rows, 128).
    wf1 = params["fc1_w"].reshape(120, 16, 5, 5).transpose(2, 3, 1, 0)  # (5,5,16,120)
    wf1 = jnp.pad(wf1, ((0, 0), (0, 0), (0, _CP - 16), (0, _CP - 120)))
    wf1 = wf1.reshape(25 * _CP, _CP)
    return {
        "w1m": padw(params["conv1_w"].reshape(6, 75).T, _K1P, _CP).astype(jnp.bfloat16),
        "b1v": padb(params["conv1_b"], _CP),
        "w2m": padw(params["conv2_w"].reshape(16, 150).T, _K2P, _CP).astype(jnp.bfloat16),
        "b2v": padb(params["conv2_b"], _CP),
        "wf1": wf1,
        "bf1": padb(params["fc1_b"], _CP),
        "wf2": padw(params["fc2_w"].T, _CP, _CP),
        "bf2": padb(params["fc2_b"], _CP),
        "wf3": padw(params["fc3_w"].T, _CP, _CP),
        "bf3": padb(params["fc3_b"], _CP),
    }


# ---------------------------------------------------------------------------
# Forward pass (mirrors Net.forward exactly)
# ---------------------------------------------------------------------------
def net_forward(prepared, x):
    # x: (N, 3, 32, 32) NCHW float32
    n = x.shape[0]
    if n > 128:
        bn = 128                                   # kernel-B batch block
        np_batch = ((n + bn - 1) // bn) * bn
    else:
        bn = max(8, ((n + 7) // 8) * 8)
        np_batch = bn
    p1 = _conv1_pool_patches(x)                                  # (4, N*196, 128) bf16
    pool1_flat = conv1_pool_stage(p1, prepared["w1m"], prepared["b1v"])
    pool1 = pool1_flat[:, :6].reshape(n, 14, 14, 6)              # (N, 14, 14, 6) bf16
    p2 = _conv2_pool_patches(pool1, np_batch)                    # (4, 25, NP, 256) bf16
    out = conv2_fc_stage(p2, prepared["w2m"], prepared["b2v"],
                         prepared["wf1"], prepared["bf1"],
                         prepared["wf2"], prepared["bf2"],
                         prepared["wf3"], prepared["bf3"], bn)
    return out[:n, :20]                                          # real logits


# ---------------------------------------------------------------------------
# Pure-JAX reference (for a built-in correctness check)
# ---------------------------------------------------------------------------
def reference_forward(params, x):
    hp = jax.lax.Precision.HIGHEST

    def conv(v, w, b):
        y = jax.lax.conv_general_dilated(
            v, w, (1, 1), "VALID",
            dimension_numbers=("NCHW", "OIHW", "NCHW"), precision=hp)
        return y + b.reshape(1, -1, 1, 1)

    def pool(v):
        return jax.lax.reduce_window(v, -jnp.inf, jax.lax.max,
                                     (1, 1, 2, 2), (1, 1, 2, 2), "VALID")

    h = pool(jax.nn.relu(conv(x, params["conv1_w"], params["conv1_b"])))
    h = pool(jax.nn.relu(conv(h, params["conv2_w"], params["conv2_b"])))
    h = h.reshape(h.shape[0], -1)
    h = jax.nn.relu(jnp.dot(h, params["fc1_w"].T, precision=hp) + params["fc1_b"])
    h = jax.nn.relu(jnp.dot(h, params["fc2_w"].T, precision=hp) + params["fc2_b"])
    return jnp.dot(h, params["fc3_w"].T, precision=hp) + params["fc3_b"]


if __name__ == "__main__":
    key = jax.random.PRNGKey(0)
    pkey, xkey = jax.random.split(key)
    params = init_params(pkey)
    prepared = prepare_params(params)
    # CIFAR-10 style input: the 16*5*5 flatten implies a 32x32x3 input.
    x = jax.random.normal(xkey, (2, 3, 32, 32), jnp.float32)

    out = jax.jit(net_forward)(prepared, x)
    out = jax.block_until_ready(out)
    assert out.shape == (2, 20) and out.dtype == jnp.float32

    ref = reference_forward(params, x)
    max_err = float(jnp.max(jnp.abs(out - ref)))
    # bf16 conv inputs/weights + bf16 pool1 activations (f32 accumulation)
    # => slightly looser tolerance than the all-f32 version.
    assert jnp.allclose(out, ref, rtol=3e-2, atol=3e-2), (
        "mismatch vs reference: max abs diff = %f" % max_err)
    print("KERNEL_OK")
</pallas_src>

<mosaic_0001>
module attributes {stable_mosaic.version = 11 : i64} {
  func.func @_conv_pool_kernel(%arg0: i32, %arg1: memref<4x392x128xbf16, #tpu.memory_space<vmem>>, %arg2: memref<128x128xbf16, #tpu.memory_space<vmem>>, %arg3: memref<1x128xf32, #tpu.memory_space<vmem>>, %arg4: memref<392x128xbf16, #tpu.memory_space<vmem>>) attributes {dimension_semantics = [#tpu.dimension_semantics<parallel>], iteration_bounds = array<i64: 1>, scalar_prefetch = 0 : i64, scratch_operands = 0 : i64, tpu.core_type = #tpu.core_type<tc>, window_params = [{transform_indices = @transform_0, window_bounds = array<i64: 4, 392, 128>}, {pipeline_mode = #tpu.pipeline_mode<synchronous>, transform_indices = @transform_1, window_bounds = array<i64: 128, 128>}, {pipeline_mode = #tpu.pipeline_mode<synchronous>, transform_indices = @transform_2, window_bounds = array<i64: 1, 128>}, {transform_indices = @transform_3, window_bounds = array<i64: 392, 128>}]} {
    %c0 = arith.constant 0 : index
    %c0_0 = arith.constant 0 : index
    %c0_1 = arith.constant 0 : index
    %0 = vector.load %arg1[%c0, %c0_0, %c0_1] : memref<4x392x128xbf16, #tpu.memory_space<vmem>>, vector<4x392x128xbf16>
    %1 = vector.shape_cast %0 : vector<4x392x128xbf16> to vector<1568x128xbf16>
    %c0_2 = arith.constant 0 : index
    %c0_3 = arith.constant 0 : index
    %2 = vector.load %arg2[%c0_2, %c0_3] : memref<128x128xbf16, #tpu.memory_space<vmem>>, vector<128x128xbf16>
    %cst = arith.constant dense<0.000000e+00> : vector<1568x128xf32>
    %3 = tpu.matmul %1, %2, %cst {dimension_numbers = #tpu.dot_dimension_numbers<[1], [0], [0], [1], [0, 0, 1, 1], [], []>} : vector<1568x128xbf16>, vector<128x128xbf16>, vector<1568x128xf32> -> vector<1568x128xf32>
    %4 = vector.shape_cast %3 : vector<1568x128xf32> to vector<4x392x128xf32>
    %cst_4 = arith.constant dense<0xFF800000> : vector<392x128xf32>
    %5 = vector.multi_reduction <maximumf>, %4, %cst_4 [0] : vector<4x392x128xf32> to vector<392x128xf32>
    %c0_5 = arith.constant 0 : index
    %c0_6 = arith.constant 0 : index
    %6 = vector.load %arg3[%c0_5, %c0_6] : memref<1x128xf32, #tpu.memory_space<vmem>>, vector<1x128xf32>
    %7 = vector.broadcast %6 : vector<1x128xf32> to vector<392x128xf32>
    %8 = arith.addf %5, %7 : vector<392x128xf32>
    %cst_7 = arith.constant 0.000000e+00 : f32
    %9 = vector.broadcast %cst_7 : f32 to vector<392x128xf32>
    %10 = arith.maximumf %8, %9 : vector<392x128xf32>
    %11 = arith.truncf %10 : vector<392x128xf32> to vector<392x128xbf16>
    %c0_8 = arith.constant 0 : index
    %c0_9 = arith.constant 0 : index
    %12 = vector.load %arg4[%c0_8, %c0_9] : memref<392x128xbf16, #tpu.memory_space<vmem>>, vector<392x128xbf16>
    tpu.vector_store %arg4[%c0_8, %c0_9], %11 {strides = array<i32>} : memref<392x128xbf16, #tpu.memory_space<vmem>>, vector<392x128xbf16>,
    return
  }
  func.func @transform_0(%arg0: i32) -> (i32, i32, i32) {
    %c0_i32 = arith.constant 0 : i32
    %c0_i32_0 = arith.constant 0 : i32
    %c0_i32_1 = arith.constant 0 : i32
    return %c0_i32, %arg0, %c0_i32_0 : i32, i32, i32
  }
  func.func @transform_1(%arg0: i32) -> (i32, i32) {
    %c0_i32 = arith.constant 0 : i32
    %c0_i32_0 = arith.constant 0 : i32
    %c0_i32_1 = arith.constant 0 : i32
    return %c0_i32, %c0_i32_0 : i32, i32
  }
  func.func @transform_2(%arg0: i32) -> (i32, i32) {
    %c0_i32 = arith.constant 0 : i32
    %c0_i32_0 = arith.constant 0 : i32
    %c0_i32_1 = arith.constant 0 : i32
    return %c0_i32, %c0_i32_0 : i32, i32
  }
  func.func @transform_3(%arg0: i32) -> (i32, i32) {
    %c0_i32 = arith.constant 0 : i32
    %c0_i32_0 = arith.constant 0 : i32
    return %arg0, %c0_i32 : i32, i32
  }
}

module attributes {stable_mosaic.version = 11 : i64} {
  func.func @_conv2_fc_kernel(%arg0: i32, %arg1: memref<4x25x8x256xbf16, #tpu.memory_space<vmem>>, %arg2: memref<256x128xbf16, #tpu.memory_space<vmem>>, %arg3: memref<1x128xf32, #tpu.memory_space<vmem>>, %arg4: memref<3200x128xf32, #tpu.memory_space<vmem>>, %arg5: memref<1x128xf32, #tpu.memory_space<vmem>>, %arg6: memref<128x128xf32, #tpu.memory_space<vmem>>, %arg7: memref<1x128xf32, #tpu.memory_space<vmem>>, %arg8: memref<128x128xf32, #tpu.memory_space<vmem>>, %arg9: memref<1x128xf32, #tpu.memory_space<vmem>>, %arg10: memref<8x128xf32, #tpu.memory_space<vmem>>) attributes {dimension_semantics = [#tpu.dimension_semantics<parallel>], iteration_bounds = array<i64: 1>, scalar_prefetch = 0 : i64, scratch_operands = 0 : i64, tpu.core_type = #tpu.core_type<tc>, window_params = [{transform_indices = @transform_0, window_bounds = array<i64: 4, 25, 8, 256>}, {pipeline_mode = #tpu.pipeline_mode<synchronous>, transform_indices = @transform_1, window_bounds = array<i64: 256, 128>}, {pipeline_mode = #tpu.pipeline_mode<synchronous>, transform_indices = @transform_2, window_bounds = array<i64: 1, 128>}, {pipeline_mode = #tpu.pipeline_mode<synchronous>, transform_indices = @transform_3, window_bounds = array<i64: 3200, 128>}, {pipeline_mode = #tpu.pipeline_mode<synchronous>, transform_indices = @transform_4, window_bounds = array<i64: 1, 128>}, {pipeline_mode = #tpu.pipeline_mode<synchronous>, transform_indices = @transform_5, window_bounds = array<i64: 128, 128>}, {pipeline_mode = #tpu.pipeline_mode<synchronous>, transform_indices = @transform_6, window_bounds = array<i64: 1, 128>}, {pipeline_mode = #tpu.pipeline_mode<synchronous>, transform_indices = @transform_7, window_bounds = array<i64: 128, 128>}, {pipeline_mode = #tpu.pipeline_mode<synchronous>, transform_indices = @transform_8, window_bounds = array<i64: 1, 128>}, {transform_indices = @transform_9, window_bounds = array<i64: 8, 128>}]} {
    %c0 = arith.constant 0 : index
    %c0_0 = arith.constant 0 : index
    %c0_1 = arith.constant 0 : index
    %c0_2 = arith.constant 0 : index
    %0 = vector.load %arg1[%c0, %c0_0, %c0_1, %c0_2] : memref<4x25x8x256xbf16, #tpu.memory_space<vmem>>, vector<4x25x8x256xbf16>
    %1 = vector.shape_cast %0 : vector<4x25x8x256xbf16> to vector<800x256xbf16>
    %c0_3 = arith.constant 0 : index
    %c0_4 = arith.constant 0 : index
    %2 = vector.load %arg2[%c0_3, %c0_4] : memref<256x128xbf16, #tpu.memory_space<vmem>>, vector<256x128xbf16>
    %cst = arith.constant dense<0.000000e+00> : vector<800x128xf32>
    %3 = tpu.matmul %1, %2, %cst {dimension_numbers = #tpu.dot_dimension_numbers<[1], [0], [0], [1], [0, 0, 1, 1], [], []>} : vector<800x256xbf16>, vector<256x128xbf16>, vector<800x128xf32> -> vector<800x128xf32>
    %4 = vector.shape_cast %3 : vector<800x128xf32> to vector<4x200x128xf32>
    %cst_5 = arith.constant dense<0xFF800000> : vector<200x128xf32>
    %5 = vector.multi_reduction <maximumf>, %4, %cst_5 [0] : vector<4x200x128xf32> to vector<200x128xf32>
    %c0_6 = arith.constant 0 : index
    %c0_7 = arith.constant 0 : index
    %6 = vector.load %arg3[%c0_6, %c0_7] : memref<1x128xf32, #tpu.memory_space<vmem>>, vector<1x128xf32>
    %7 = vector.broadcast %6 : vector<1x128xf32> to vector<200x128xf32>
    %8 = arith.addf %5, %7 : vector<200x128xf32>
    %cst_8 = arith.constant 0.000000e+00 : f32
    %9 = vector.broadcast %cst_8 : f32 to vector<200x128xf32>
    %10 = arith.maximumf %8, %9 : vector<200x128xf32>
    %11 = vector.extract_strided_slice %10 {offsets = [0, 0], sizes = [8, 128], strides = [1, 1]} : vector<200x128xf32> to vector<8x128xf32>
    %c0_9 = arith.constant 0 : index
    %c0_10 = arith.constant 0 : index
    %12 = vector.load %arg4[%c0_9, %c0_10] : memref<3200x128xf32, #tpu.memory_space<vmem>>, vector<128x128xf32>
    %cst_11 = arith.constant dense<0.000000e+00> : vector<8x128xf32>
    %13 = tpu.matmul %11, %12, %cst_11 {dimension_numbers = #tpu.dot_dimension_numbers<[1], [0], [0], [1], [0, 0, 1, 1], [], []>} : vector<8x128xf32>, vector<128x128xf32>, vector<8x128xf32> -> vector<8x128xf32>
    %14 = vector.extract_strided_slice %10 {offsets = [8, 0], sizes = [8, 128], strides = [1, 1]} : vector<200x128xf32> to vector<8x128xf32>
    %c128 = arith.constant 128 : index
    %c0_12 = arith.constant 0 : index
    %15 = vector.load %arg4[%c128, %c0_12] : memref<3200x128xf32, #tpu.memory_space<vmem>>, vector<128x128xf32>
    %cst_13 = arith.constant dense<0.000000e+00> : vector<8x128xf32>
    %16 = tpu.matmul %14, %15, %cst_13 {dimension_numbers = #tpu.dot_dimension_numbers<[1], [0], [0], [1], [0, 0, 1, 1], [], []>} : vector<8x128xf32>, vector<128x128xf32>, vector<8x128xf32> -> vector<8x128xf32>
    %17 = arith.addf %13, %16 : vector<8x128xf32>
    %18 = vector.extract_strided_slice %10 {offsets = [16, 0], sizes = [8, 128], strides = [1, 1]} : vector<200x128xf32> to vector<8x128xf32>
    %c256 = arith.constant 256 : index
    %c0_14 = arith.constant 0 : index
    %19 = vector.load %arg4[%c256, %c0_14] : memref<3200x128xf32, #tpu.memory_space<vmem>>, vector<128x128xf32>
    %cst_15 = arith.constant dense<0.000000e+00> : vector<8x128xf32>
    %20 = tpu.matmul %18, %19, %cst_15 {dimension_numbers = #tpu.dot_dimension_numbers<[1], [0], [0], [1], [0, 0, 1, 1], [], []>} : vector<8x128xf32>, vector<128x128xf32>, vector<8x128xf32> -> vector<8x128xf32>
    %21 = arith.addf %17, %20 : vector<8x128xf32>
    %22 = vector.extract_strided_slice %10 {offsets = [24, 0], sizes = [8, 128], strides = [1, 1]} : vector<200x128xf32> to vector<8x128xf32>
    %c384 = arith.constant 384 : index
    %c0_16 = arith.constant 0 : index
    %23 = vector.load %arg4[%c384, %c0_16] : memref<3200x128xf32, #tpu.memory_space<vmem>>, vector<128x128xf32>
    %cst_17 = arith.constant dense<0.000000e+00> : vector<8x128xf32>
    %24 = tpu.matmul %22, %23, %cst_17 {dimension_numbers = #tpu.dot_dimension_numbers<[1], [0], [0], [1], [0, 0, 1, 1], [], []>} : vector<8x128xf32>, vector<128x128xf32>, vector<8x128xf32> -> vector<8x128xf32>
    %25 = arith.addf %21, %24 : vector<8x128xf32>
    %26 = vector.extract_strided_slice %10 {offsets = [32, 0], sizes = [8, 128], strides = [1, 1]} : vector<200x128xf32> to vector<8x128xf32>
    %c512 = arith.constant 512 : index
    %c0_18 = arith.constant 0 : index
    %27 = vector.load %arg4[%c512, %c0_18] : memref<3200x128xf32, #tpu.memory_space<vmem>>, vector<128x128xf32>
    %cst_19 = arith.constant dense<0.000000e+00> : vector<8x128xf32>
    %28 = tpu.matmul %26, %27, %cst_19 {dimension_numbers = #tpu.dot_dimension_numbers<[1], [0], [0], [1], [0, 0, 1, 1], [], []>} : vector<8x128xf32>, vector<128x128xf32>, vector<8x128xf32> -> vector<8x128xf32>
    %29 = arith.addf %25, %28 : vector<8x128xf32>
    %30 = vector.extract_strided_slice %10 {offsets = [40, 0], sizes = [8, 128], strides = [1, 1]} : vector<200x128xf32> to vector<8x128xf32>
    %c640 = arith.constant 640 : index
    %c0_20 = arith.constant 0 : index
    %31 = vector.load %arg4[%c640, %c0_20] : memref<3200x128xf32, #tpu.memory_space<vmem>>, vector<128x128xf32>
    %cst_21 = arith.constant dense<0.000000e+00> : vector<8x128xf32>
    %32 = tpu.matmul %30, %31, %cst_21 {dimension_numbers = #tpu.dot_dimension_numbers<[1], [0], [0], [1], [0, 0, 1, 1], [], []>} : vector<8x128xf32>, vector<128x128xf32>, vector<8x128xf32> -> vector<8x128xf32>
    %33 = arith.addf %29, %32 : vector<8x128xf32>
    %34 = vector.extract_strided_slice %10 {offsets = [48, 0], sizes = [8, 128], strides = [1, 1]} : vector<200x128xf32> to vector<8x128xf32>
    %c768 = arith.constant 768 : index
    %c0_22 = arith.constant 0 : index
    %35 = vector.load %arg4[%c768, %c0_22] : memref<3200x128xf32, #tpu.memory_space<vmem>>, vector<128x128xf32>
    %cst_23 = arith.constant dense<0.000000e+00> : vector<8x128xf32>
    %36 = tpu.matmul %34, %35, %cst_23 {dimension_numbers = #tpu.dot_dimension_numbers<[1], [0], [0], [1], [0, 0, 1, 1], [], []>} : vector<8x128xf32>, vector<128x128xf32>, vector<8x128xf32> -> vector<8x128xf32>
    %37 = arith.addf %33, %36 : vector<8x128xf32>
    %38 = vector.extract_strided_slice %10 {offsets = [56, 0], sizes = [8, 128], strides = [1, 1]} : vector<200x128xf32> to vector<8x128xf32>
    %c896 = arith.constant 896 : index
    %c0_24 = arith.constant 0 : index
    %39 = vector.load %arg4[%c896, %c0_24] : memref<3200x128xf32, #tpu.memory_space<vmem>>, vector<128x128xf32>
    %cst_25 = arith.constant dense<0.000000e+00> : vector<8x128xf32>
    %40 = tpu.matmul %38, %39, %cst_25 {dimension_numbers = #tpu.dot_dimension_numbers<[1], [0], [0], [1], [0, 0, 1, 1], [], []>} : vector<8x128xf32>, vector<128x128xf32>, vector<8x128xf32> -> vector<8x128xf32>
    %41 = arith.addf %37, %40 : vector<8x128xf32>
    %42 = vector.extract_strided_slice %10 {offsets = [64, 0], sizes = [8, 128], strides = [1, 1]} : vector<200x128xf32> to vector<8x128xf32>
    %c1024 = arith.constant 1024 : index
    %c0_26 = arith.constant 0 : index
    %43 = vector.load %arg4[%c1024, %c0_26] : memref<3200x128xf32, #tpu.memory_space<vmem>>, vector<128x128xf32>
    %cst_27 = arith.constant dense<0.000000e+00> : vector<8x128xf32>
    %44 = tpu.matmul %42, %43, %cst_27 {dimension_numbers = #tpu.dot_dimension_numbers<[1], [0], [0], [1], [0, 0, 1, 1], [], []>} : vector<8x128xf32>, vector<128x128xf32>, vector<8x128xf32> -> vector<8x128xf32>
    %45 = arith.addf %41, %44 : vector<8x128xf32>
    %46 = vector.extract_strided_slice %10 {offsets = [72, 0], sizes = [8, 128], strides = [1, 1]} : vector<200x128xf32> to vector<8x128xf32>
    %c1152 = arith.constant 1152 : index
    %c0_28 = arith.constant 0 : index
    %47 = vector.load %arg4[%c1152, %c0_28] : memref<3200x128xf32, #tpu.memory_space<vmem>>, vector<128x128xf32>
    %cst_29 = arith.constant dense<0.000000e+00> : vector<8x128xf32>
    %48 = tpu.matmul %46, %47, %cst_29 {dimension_numbers = #tpu.dot_dimension_numbers<[1], [0], [0], [1], [0, 0, 1, 1], [], []>} : vector<8x128xf32>, vector<128x128xf32>, vector<8x128xf32> -> vector<8x128xf32>
    %49 = arith.addf %45, %48 : vector<8x128xf32>
    %50 = vector.extract_strided_slice %10 {offsets = [80, 0], sizes = [8, 128], strides = [1, 1]} : vector<200x128xf32> to vector<8x128xf32>
    %c1280 = arith.constant 1280 : index
    %c0_30 = arith.constant 0 : index
    %51 = vector.load %arg4[%c1280, %c0_30] : memref<3200x128xf32, #tpu.memory_space<vmem>>, vector<128x128xf32>
    %cst_31 = arith.constant dense<0.000000e+00> : vector<8x128xf32>
    %52 = tpu.matmul %50, %51, %cst_31 {dimension_numbers = #tpu.dot_dimension_numbers<[1], [0], [0], [1], [0, 0, 1, 1], [], []>} : vector<8x128xf32>, vector<128x128xf32>, vector<8x128xf32> -> vector<8x128xf32>
    %53 = arith.addf %49, %52 : vector<8x128xf32>
    %54 = vector.extract_strided_slice %10 {offsets = [88, 0], sizes = [8, 128], strides = [1, 1]} : vector<200x128xf32> to vector<8x128xf32>
    %c1408 = arith.constant 1408 : index
    %c0_32 = arith.constant 0 : index
    %55 = vector.load %arg4[%c1408, %c0_32] : memref<3200x128xf32, #tpu.memory_space<vmem>>, vector<128x128xf32>
    %cst_33 = arith.constant dense<0.000000e+00> : vector<8x128xf32>
    %56 = tpu.matmul %54, %55, %cst_33 {dimension_numbers = #tpu.dot_dimension_numbers<[1], [0], [0], [1], [0, 0, 1, 1], [], []>} : vector<8x128xf32>, vector<128x128xf32>, vector<8x128xf32> -> vector<8x128xf32>
    %57 = arith.addf %53, %56 : vector<8x128xf32>
    %58 = vector.extract_strided_slice %10 {offsets = [96, 0], sizes = [8, 128], strides = [1, 1]} : vector<200x128xf32> to vector<8x128xf32>
    %c1536 = arith.constant 1536 : index
    %c0_34 = arith.constant 0 : index
    %59 = vector.load %arg4[%c1536, %c0_34] : memref<3200x128xf32, #tpu.memory_space<vmem>>, vector<128x128xf32>
    %cst_35 = arith.constant dense<0.000000e+00> : vector<8x128xf32>
    %60 = tpu.matmul %58, %59, %cst_35 {dimension_numbers = #tpu.dot_dimension_numbers<[1], [0], [0], [1], [0, 0, 1, 1], [], []>} : vector<8x128xf32>, vector<128x128xf32>, vector<8x128xf32> -> vector<8x128xf32>
    %61 = arith.addf %57, %60 : vector<8x128xf32>
    %62 = vector.extract_strided_slice %10 {offsets = [104, 0], sizes = [8, 128], strides = [1, 1]} : vector<200x128xf32> to vector<8x128xf32>
    %c1664 = arith.constant 1664 : index
    %c0_36 = arith.constant 0 : index
    %63 = vector.load %arg4[%c1664, %c0_36] : memref<3200x128xf32, #tpu.memory_space<vmem>>, vector<128x128xf32>
    %cst_37 = arith.constant dense<0.000000e+00> : vector<8x128xf32>
    %64 = tpu.matmul %62, %63, %cst_37 {dimension_numbers = #tpu.dot_dimension_numbers<[1], [0], [0], [1], [0, 0, 1, 1], [], []>} : vector<8x128xf32>, vector<128x128xf32>, vector<8x128xf32> -> vector<8x128xf32>
    %65 = arith.addf %61, %64 : vector<8x128xf32>
    %66 = vector.extract_strided_slice %10 {offsets = [112, 0], sizes = [8, 128], strides = [1, 1]} : vector<200x128xf32> to vector<8x128xf32>
    %c1792 = arith.constant 1792 : index
    %c0_38 = arith.constant 0 : index
    %67 = vector.load %arg4[%c1792, %c0_38] : memref<3200x128xf32, #tpu.memory_space<vmem>>, vector<128x128xf32>
    %cst_39 = arith.constant dense<0.000000e+00> : vector<8x128xf32>
    %68 = tpu.matmul %66, %67, %cst_39 {dimension_numbers = #tpu.dot_dimension_numbers<[1], [0], [0], [1], [0, 0, 1, 1], [], []>} : vector<8x128xf32>, vector<128x128xf32>, vector<8x128xf32> -> vector<8x128xf32>
    %69 = arith.addf %65, %68 : vector<8x128xf32>
    %70 = vector.extract_strided_slice %10 {offsets = [120, 0], sizes = [8, 128], strides = [1, 1]} : vector<200x128xf32> to vector<8x128xf32>
    %c1920 = arith.constant 1920 : index
    %c0_40 = arith.constant 0 : index
    %71 = vector.load %arg4[%c1920, %c0_40] : memref<3200x128xf32, #tpu.memory_space<vmem>>, vector<128x128xf32>
    %cst_41 = arith.constant dense<0.000000e+00> : vector<8x128xf32>
    %72 = tpu.matmul %70, %71, %cst_41 {dimension_numbers = #tpu.dot_dimension_numbers<[1], [0], [0], [1], [0, 0, 1, 1], [], []>} : vector<8x128xf32>, vector<128x128xf32>, vector<8x128xf32> -> vector<8x128xf32>
    %73 = arith.addf %69, %72 : vector<8x128xf32>
    %74 = vector.extract_strided_slice %10 {offsets = [128, 0], sizes = [8, 128], strides = [1, 1]} : vector<200x128xf32> to vector<8x128xf32>
    %c2048 = arith.constant 2048 : index
    %c0_42 = arith.constant 0 : index
    %75 = vector.load %arg4[%c2048, %c0_42] : memref<3200x128xf32, #tpu.memory_space<vmem>>, vector<128x128xf32>
    %cst_43 = arith.constant dense<0.000000e+00> : vector<8x128xf32>
    %76 = tpu.matmul %74, %75, %cst_43 {dimension_numbers = #tpu.dot_dimension_numbers<[1], [0], [0], [1], [0, 0, 1, 1], [], []>} : vector<8x128xf32>, vector<128x128xf32>, vector<8x128xf32> -> vector<8x128xf32>
    %77 = arith.addf %73, %76 : vector<8x128xf32>
    %78 = vector.extract_strided_slice %10 {offsets = [136, 0], sizes = [8, 128], strides = [1, 1]} : vector<200x128xf32> to vector<8x128xf32>
    %c2176 = arith.constant 2176 : index
    %c0_44 = arith.constant 0 : index
    %79 = vector.load %arg4[%c2176, %c0_44] : memref<3200x128xf32, #tpu.memory_space<vmem>>, vector<128x128xf32>
    %cst_45 = arith.constant dense<0.000000e+00> : vector<8x128xf32>
    %80 = tpu.matmul %78, %79, %cst_45 {dimension_numbers = #tpu.dot_dimension_numbers<[1], [0], [0], [1], [0, 0, 1, 1], [], []>} : vector<8x128xf32>, vector<128x128xf32>, vector<8x128xf32> -> vector<8x128xf32>
    %81 = arith.addf %77, %80 : vector<8x128xf32>
    %82 = vector.extract_strided_slice %10 {offsets = [144, 0], sizes = [8, 128], strides = [1, 1]} : vector<200x128xf32> to vector<8x128xf32>
    %c2304 = arith.constant 2304 : index
    %c0_46 = arith.constant 0 : index
    %83 = vector.load %arg4[%c2304, %c0_46] : memref<3200x128xf32, #tpu.memory_space<vmem>>, vector<128x128xf32>
    %cst_47 = arith.constant dense<0.000000e+00> : vector<8x128xf32>
    %84 = tpu.matmul %82, %83, %cst_47 {dimension_numbers = #tpu.dot_dimension_numbers<[1], [0], [0], [1], [0, 0, 1, 1], [], []>} : vector<8x128xf32>, vector<128x128xf32>, vector<8x128xf32> -> vector<8x128xf32>
    %85 = arith.addf %81, %84 : vector<8x128xf32>
    %86 = vector.extract_strided_slice %10 {offsets = [152, 0], sizes = [8, 128], strides = [1, 1]} : vector<200x128xf32> to vector<8x128xf32>
    %c2432 = arith.constant 2432 : index
    %c0_48 = arith.constant 0 : index
    %87 = vector.load %arg4[%c2432, %c0_48] : memref<3200x128xf32, #tpu.memory_space<vmem>>, vector<128x128xf32>
    %cst_49 = arith.constant dense<0.000000e+00> : vector<8x128xf32>
    %88 = tpu.matmul %86, %87, %cst_49 {dimension_numbers = #tpu.dot_dimension_numbers<[1], [0], [0], [1], [0, 0, 1, 1], [], []>} : vector<8x128xf32>, vector<128x128xf32>, vector<8x128xf32> -> vector<8x128xf32>
    %89 = arith.addf %85, %88 : vector<8x128xf32>
    %90 = vector.extract_strided_slice %10 {offsets = [160, 0], sizes = [8, 128], strides = [1, 1]} : vector<200x128xf32> to vector<8x128xf32>
    %c2560 = arith.constant 2560 : index
    %c0_50 = arith.constant 0 : index
    %91 = vector.load %arg4[%c2560, %c0_50] : memref<3200x128xf32, #tpu.memory_space<vmem>>, vector<128x128xf32>
    %cst_51 = arith.constant dense<0.000000e+00> : vector<8x128xf32>
    %92 = tpu.matmul %90, %91, %cst_51 {dimension_numbers = #tpu.dot_dimension_numbers<[1], [0], [0], [1], [0, 0, 1, 1], [], []>} : vector<8x128xf32>, vector<128x128xf32>, vector<8x128xf32> -> vector<8x128xf32>
    %93 = arith.addf %89, %92 : vector<8x128xf32>
    %94 = vector.extract_strided_slice %10 {offsets = [168, 0], sizes = [8, 128], strides = [1, 1]} : vector<200x128xf32> to vector<8x128xf32>
    %c2688 = arith.constant 2688 : index
    %c0_52 = arith.constant 0 : index
    %95 = vector.load %arg4[%c2688, %c0_52] : memref<3200x128xf32, #tpu.memory_space<vmem>>, vector<128x128xf32>
    %cst_53 = arith.constant dense<0.000000e+00> : vector<8x128xf32>
    %96 = tpu.matmul %94, %95, %cst_53 {dimension_numbers = #tpu.dot_dimension_numbers<[1], [0], [0], [1], [0, 0, 1, 1], [], []>} : vector<8x128xf32>, vector<128x128xf32>, vector<8x128xf32> -> vector<8x128xf32>
    %97 = arith.addf %93, %96 : vector<8x128xf32>
    %98 = vector.extract_strided_slice %10 {offsets = [176, 0], sizes = [8, 128], strides = [1, 1]} : vector<200x128xf32> to vector<8x128xf32>
    %c2816 = arith.constant 2816 : index
    %c0_54 = arith.constant 0 : index
    %99 = vector.load %arg4[%c2816, %c0_54] : memref<3200x128xf32, #tpu.memory_space<vmem>>, vector<128x128xf32>
    %cst_55 = arith.constant dense<0.000000e+00> : vector<8x128xf32>
    %100 = tpu.matmul %98, %99, %cst_55 {dimension_numbers = #tpu.dot_dimension_numbers<[1], [0], [0], [1], [0, 0, 1, 1], [], []>} : vector<8x128xf32>, vector<128x128xf32>, vector<8x128xf32> -> vector<8x128xf32>
    %101 = arith.addf %97, %100 : vector<8x128xf32>
    %102 = vector.extract_strided_slice %10 {offsets = [184, 0], sizes = [8, 128], strides = [1, 1]} : vector<200x128xf32> to vector<8x128xf32>
    %c2944 = arith.constant 2944 : index
    %c0_56 = arith.constant 0 : index
    %103 = vector.load %arg4[%c2944, %c0_56] : memref<3200x128xf32, #tpu.memory_space<vmem>>, vector<128x128xf32>
    %cst_57 = arith.constant dense<0.000000e+00> : vector<8x128xf32>
    %104 = tpu.matmul %102, %103, %cst_57 {dimension_numbers = #tpu.dot_dimension_numbers<[1], [0], [0], [1], [0, 0, 1, 1], [], []>} : vector<8x128xf32>, vector<128x128xf32>, vector<8x128xf32> -> vector<8x128xf32>
    %105 = arith.addf %101, %104 : vector<8x128xf32>
    %106 = vector.extract_strided_slice %10 {offsets = [192, 0], sizes = [8, 128], strides = [1, 1]} : vector<200x128xf32> to vector<8x128xf32>
    %c3072 = arith.constant 3072 : index
    %c0_58 = arith.constant 0 : index
    %107 = vector.load %arg4[%c3072, %c0_58] : memref<3200x128xf32, #tpu.memory_space<vmem>>, vector<128x128xf32>
    %cst_59 = arith.constant dense<0.000000e+00> : vector<8x128xf32>
    %108 = tpu.matmul %106, %107, %cst_59 {dimension_numbers = #tpu.dot_dimension_numbers<[1], [0], [0], [1], [0, 0, 1, 1], [], []>} : vector<8x128xf32>, vector<128x128xf32>, vector<8x128xf32> -> vector<8x128xf32>
    %109 = arith.addf %105, %108 : vector<8x128xf32>
    %c0_60 = arith.constant 0 : index
    %c0_61 = arith.constant 0 : index
    %110 = vector.load %arg5[%c0_60, %c0_61] : memref<1x128xf32, #tpu.memory_space<vmem>>, vector<1x128xf32>
    %111 = vector.broadcast %110 : vector<1x128xf32> to vector<8x128xf32>
    %112 = arith.addf %109, %111 : vector<8x128xf32>
    %cst_62 = arith.constant 0.000000e+00 : f32
    %113 = vector.broadcast %cst_62 : f32 to vector<8x128xf32>
    %114 = arith.maximumf %112, %113 : vector<8x128xf32>
    %c0_63 = arith.constant 0 : index
    %c0_64 = arith.constant 0 : index
    %115 = vector.load %arg6[%c0_63, %c0_64] : memref<128x128xf32, #tpu.memory_space<vmem>>, vector<128x128xf32>
    %cst_65 = arith.constant dense<0.000000e+00> : vector<8x128xf32>
    %116 = tpu.matmul %114, %115, %cst_65 {dimension_numbers = #tpu.dot_dimension_numbers<[1], [0], [0], [1], [0, 0, 1, 1], [], []>} : vector<8x128xf32>, vector<128x128xf32>, vector<8x128xf32> -> vector<8x128xf32>
    %c0_66 = arith.constant 0 : index
    %c0_67 = arith.constant 0 : index
    %117 = vector.load %arg7[%c0_66, %c0_67] : memref<1x128xf32, #tpu.memory_space<vmem>>, vector<1x128xf32>
    %118 = vector.broadcast %117 : vector<1x128xf32> to vector<8x128xf32>
    %119 = arith.addf %116, %118 : vector<8x128xf32>
    %cst_68 = arith.constant 0.000000e+00 : f32
    %120 = vector.broadcast %cst_68 : f32 to vector<8x128xf32>
    %121 = arith.maximumf %119, %120 : vector<8x128xf32>
    %c0_69 = arith.constant 0 : index
    %c0_70 = arith.constant 0 : index
    %122 = vector.load %arg8[%c0_69, %c0_70] : memref<128x128xf32, #tpu.memory_space<vmem>>, vector<128x128xf32>
    %cst_71 = arith.constant dense<0.000000e+00> : vector<8x128xf32>
    %123 = tpu.matmul %121, %122, %cst_71 {dimension_numbers = #tpu.dot_dimension_numbers<[1], [0], [0], [1], [0, 0, 1, 1], [], []>} : vector<8x128xf32>, vector<128x128xf32>, vector<8x128xf32> -> vector<8x128xf32>
    %c0_72 = arith.constant 0 : index
    %c0_73 = arith.constant 0 : index
    %124 = vector.load %arg9[%c0_72, %c0_73] : memref<1x128xf32, #tpu.memory_space<vmem>>, vector<1x128xf32>
    %125 = vector.broadcast %124 : vector<1x128xf32> to vector<8x128xf32>
    %126 = arith.addf %123, %125 : vector<8x128xf32>
    %c0_74 = arith.constant 0 : index
    %c0_75 = arith.constant 0 : index
    %127 = vector.load %arg10[%c0_74, %c0_75] : memref<8x128xf32, #tpu.memory_space<vmem>>, vector<8x128xf32>
    tpu.vector_store %arg10[%c0_74, %c0_75], %126 {strides = array<i32>} : memref<8x128xf32, #tpu.memory_space<vmem>>, vector<8x128xf32>,
    return
  }
  func.func @transform_0(%arg0: i32) -> (i32, i32, i32, i32) {
    %c0_i32 = arith.constant 0 : i32
    %c0_i32_0 = arith.constant 0 : i32
    %c0_i32_1 = arith.constant 0 : i32
    %c0_i32_2 = arith.constant 0 : i32
    return %c0_i32, %c0_i32_0, %arg0, %c0_i32_1 : i32, i32, i32, i32
  }
  func.func @transform_1(%arg0: i32) -> (i32, i32) {
    %c0_i32 = arith.constant 0 : i32
    %c0_i32_0 = arith.constant 0 : i32
    %c0_i32_1 = arith.constant 0 : i32
    return %c0_i32, %c0_i32_0 : i32, i32
  }
  func.func @transform_2(%arg0: i32) -> (i32, i32) {
    %c0_i32 = arith.constant 0 : i32
    %c0_i32_0 = arith.constant 0 : i32
    %c0_i32_1 = arith.constant 0 : i32
    return %c0_i32, %c0_i32_0 : i32, i32
  }
  func.func @transform_3(%arg0: i32) -> (i32, i32) {
    %c0_i32 = arith.constant 0 : i32
    %c0_i32_0 = arith.constant 0 : i32
    %c0_i32_1 = arith.constant 0 : i32
    return %c0_i32, %c0_i32_0 : i32, i32
  }
  func.func @transform_4(%arg0: i32) -> (i32, i32) {
    %c0_i32 = arith.constant 0 : i32
    %c0_i32_0 = arith.constant 0 : i32
    %c0_i32_1 = arith.constant 0 : i32
    return %c0_i32, %c0_i32_0 : i32, i32
  }
  func.func @transform_5(%arg0: i32) -> (i32, i32) {
    %c0_i32 = arith.constant 0 : i32
    %c0_i32_0 = arith.constant 0 : i32
    %c0_i32_1 = arith.constant 0 : i32
    return %c0_i32, %c0_i32_0 : i32, i32
  }
  func.func @transform_6(%arg0: i32) -> (i32, i32) {
    %c0_i32 = arith.constant 0 : i32
    %c0_i32_0 = arith.constant 0 : i32
    %c0_i32_1 = arith.constant 0 : i32
    return %c0_i32, %c0_i32_0 : i32, i32
  }
  func.func @transform_7(%arg0: i32) -> (i32, i32) {
    %c0_i32 = arith.constant 0 : i32
    %c0_i32_0 = arith.constant 0 : i32
    %c0_i32_1 = arith.constant 0 : i32
    return %c0_i32, %c0_i32_0 : i32, i32
  }
  func.func @transform_8(%arg0: i32) -> (i32, i32) {
    %c0_i32 = arith.constant 0 : i32
    %c0_i32_0 = arith.constant 0 : i32
    %c0_i32_1 = arith.constant 0 : i32
    return %c0_i32, %c0_i32_0 : i32, i32
  }
  func.func @transform_9(%arg0: i32) -> (i32, i32) {
    %c0_i32 = arith.constant 0 : i32
    %c0_i32_0 = arith.constant 0 : i32
    return %arg0, %c0_i32 : i32, i32
  }
}

</mosaic_0001>

<llo_original>
// kernel: net_forward.2
$region0: #{net_forward.2}
  #allocation0 [shape = 'u32[]', space=smem, size = 0x4, offset = 0x4, fixed_abs, tag = 'smem constant byte address 0x4 - core index']
  #allocation1 [shape = 'u32[144,128]{1,0:T(1,128)}', space=vmem, size = 0x12000, scoped, tag = 'internal scratch']
  %s0 = inlined_call_operand.vmem [shape: bf16[4,392,128], index: 0, kind: input, shape index: {}]
  %s1 = inlined_call_operand.vmem [shape: bf16[128,128], index: 1, kind: input, shape index: {}]
  %s2 = inlined_call_operand.vmem [shape: f32[1,128], index: 2, kind: input, shape index: {}]
  %s3 = inlined_call_operand.vmem [shape: bf16[392,128], index: 3, kind: output, shape index: {}]
  %s4 = sld [smem:[#allocation0]]
  $region22: #{net_forward.2} parent=0
    _
  %s6 = ssub.s32 1, %s4
  %s7 = scalar_select 0, %s6, %s4
  // Predicated region
  $region2: #{net_forward.2} parent=0 // pred_check
    _
  $region3: #{net_forward.2} parent=0 // pred_check_branch
    %9 = sbr.rel (0) target = $region5
  $region4: #{net_forward.2} parent=0 // pred_region
    _
  $region5: #{net_forward.2} parent=0 // pred_fallthru
    _
  // Predicated region
  $region6: #{net_forward.2} parent=0 // pred_check
    _
  $region7: #{net_forward.2} parent=0 // pred_check_branch
    %11 = sbr.rel (0) target = $region9
  $region8: #{net_forward.2} parent=0 // pred_region
    _
  $region9: #{net_forward.2} parent=0 // pred_fallthru
    _
  // Predicated region
  $region10: #{net_forward.2} parent=0 // pred_check
    _
  $region11: #{net_forward.2} parent=0 // pred_check_branch
    %13 = sbr.rel (0) target = $region13
  $region12: #{net_forward.2} parent=0 // pred_region
    _
  $region13: #{net_forward.2} parent=0 // pred_fallthru
    _
  %v15 = vld [vmem:[%s0] sm:$0xf]
  %v16 = vld [vmem:[%s0 + $0x4] sm:$0xf]
  %v17 = vld [vmem:[%s0 + $0x8] sm:$0xf]
  %v18 = vld [vmem:[%s0 + $0xc] sm:$0xf]
  %v19 = vld [vmem:[%s0 + $0x10] sm:$0xf]
  %v20 = vld [vmem:[%s0 + $0x14] sm:$0xf]
  %v21 = vld [vmem:[%s0 + $0x18] sm:$0xf]
  %v22 = vld [vmem:[%s0 + $0x1c] sm:$0xf]
  %v23 = vld [vmem:[%s0 + $0x20] sm:$0xf]
  %v24 = vld [vmem:[%s0 + $0x24] sm:$0xf]
  %v25 = vld [vmem:[%s0 + $0x28] sm:$0xf]
  %v26 = vld [vmem:[%s0 + $0x2c] sm:$0xf]
  %v27 = vld [vmem:[%s0 + $0x30] sm:$0xf]
  %v28 = vld [vmem:[%s0 + $0x34] sm:$0xf]
  %v29 = vld [vmem:[%s0 + $0x38] sm:$0xf]
  %v30 = vld [vmem:[%s0 + $0x3c] sm:$0xf]
  %v31 = vld [vmem:[%s0 + $0x40] sm:$0xf]
  %v32 = vld [vmem:[%s0 + $0x44] sm:$0xf]
  %v33 = vld [vmem:[%s0 + $0x48] sm:$0xf]
  %v34 = vld [vmem:[%s0 + $0x4c] sm:$0xf]
  %v35 = vld [vmem:[%s0 + $0x50] sm:$0xf]
  %v36 = vld [vmem:[%s0 + $0x54] sm:$0xf]
  %v37 = vld [vmem:[%s0 + $0x58] sm:$0xf]
  %v38 = vld [vmem:[%s0 + $0x5c] sm:$0xf]
  %v39 = vld [vmem:[%s0 + $0x60] sm:$0xf]
  %v40 = vld [vmem:[%s0 + $0x64] sm:$0xf]
  %v41 = vld [vmem:[%s0 + $0x68] sm:$0xf]
  %v42 = vld [vmem:[%s0 + $0x6c] sm:$0xf]
  %v43 = vld [vmem:[%s0 + $0x70] sm:$0xf]
  %v44 = vld [vmem:[%s0 + $0x74] sm:$0xf]
  %v45 = vld [vmem:[%s0 + $0x78] sm:$0xf]
  %v46 = vld [vmem:[%s0 + $0x7c] sm:$0xf]
  %v47 = vld [vmem:[%s0 + $0x80] sm:$0xf]
  %v48 = vld [vmem:[%s0 + $0x84] sm:$0xf]
  %v49 = vld [vmem:[%s0 + $0x88] sm:$0xf]
  %v50 = vld [vmem:[%s0 + $0x8c] sm:$0xf]
  %v51 = vld [vmem:[%s0 + $0x90] sm:$0xf]
  %v52 = vld [vmem:[%s0 + $0x94] sm:$0xf]
  %v53 = vld [vmem:[%s0 + $0x98] sm:$0xf]
  %v54 = vld [vmem:[%s0 + $0x9c] sm:$0xf]
  %v55 = vld [vmem:[%s0 + $0xa0] sm:$0xf]
  %v56 = vld [vmem:[%s0 + $0xa4] sm:$0xf]
  %v57 = vld [vmem:[%s0 + $0xa8] sm:$0xf]
  %v58 = vld [vmem:[%s0 + $0xac] sm:$0xf]
  %v59 = vld [vmem:[%s0 + $0xb0] sm:$0xf]
  %v60 = vld [vmem:[%s0 + $0xb4] sm:$0xf]
  %v61 = vld [vmem:[%s0 + $0xb8] sm:$0xf]
  %v62 = vld [vmem:[%s0 + $0xbc] sm:$0xf]
  %v63 = vld [vmem:[%s0 + $0xc0] sm:$0xf]
  %v64 = vld [vmem:[%s0 + $0xc4] sm:$0xf]
  %v65 = vld [vmem:[%s0 + $0xc8] sm:$0xf]
  %v66 = vld [vmem:[%s0 + $0xcc] sm:$0xf]
  %v67 = vld [vmem:[%s0 + $0xd0] sm:$0xf]
  %v68 = vld [vmem:[%s0 + $0xd4] sm:$0xf]
  %v69 = vld [vmem:[%s0 + $0xd8] sm:$0xf]
  %v70 = vld [vmem:[%s0 + $0xdc] sm:$0xf]
  %v71 = vld [vmem:[%s0 + $0xe0] sm:$0xf]
  %v72 = vld [vmem:[%s0 + $0xe4] sm:$0xf]
  %v73 = vld [vmem:[%s0 + $0xe8] sm:$0xf]
  %v74 = vld [vmem:[%s0 + $0xec] sm:$0xf]
  %v75 = vld [vmem:[%s0 + $0xf0] sm:$0xf]
  %v76 = vld [vmem:[%s0 + $0xf4] sm:$0xf]
  %v77 = vld [vmem:[%s0 + $0xf8] sm:$0xf]
  %v78 = vld [vmem:[%s0 + $0xfc] sm:$0xf]
  %v79 = vld [vmem:[%s0 + $0x100] sm:$0xf]
  %v80 = vld [vmem:[%s0 + $0x104] sm:$0xf]
  %v81 = vld [vmem:[%s0 + $0x108] sm:$0xf]
  %v82 = vld [vmem:[%s0 + $0x10c] sm:$0xf]
  %v83 = vld [vmem:[%s0 + $0x110] sm:$0xf]
  %v84 = vld [vmem:[%s0 + $0x114] sm:$0xf]
  %v85 = vld [vmem:[%s0 + $0x118] sm:$0xf]
  %v86 = vld [vmem:[%s0 + $0x11c] sm:$0xf]
  %v87 = vld [vmem:[%s0 + $0x120] sm:$0xf]
  %v88 = vld [vmem:[%s0 + $0x124] sm:$0xf]
  %v89 = vld [vmem:[%s0 + $0x128] sm:$0xf]
  %v90 = vld [vmem:[%s0 + $0x12c] sm:$0xf]
  %v91 = vld [vmem:[%s0 + $0x130] sm:$0xf]
  %v92 = vld [vmem:[%s0 + $0x134] sm:$0xf]
  %v93 = vld [vmem:[%s0 + $0x138] sm:$0xf]
  %v94 = vld [vmem:[%s0 + $0x13c] sm:$0xf]
  %v95 = vld [vmem:[%s0 + $0x140] sm:$0xf]
  %v96 = vld [vmem:[%s0 + $0x144] sm:$0xf]
  %v97 = vld [vmem:[%s0 + $0x148] sm:$0xf]
  %v98 = vld [vmem:[%s0 + $0x14c] sm:$0xf]
  %v99 = vld [vmem:[%s0 + $0x150] sm:$0xf]
  %v100 = vld [vmem:[%s0 + $0x154] sm:$0xf]
  %v101 = vld [vmem:[%s0 + $0x158] sm:$0xf]
  %v102 = vld [vmem:[%s0 + $0x15c] sm:$0xf]
  %v103 = vld [vmem:[%s0 + $0x160] sm:$0xf]
  %v104 = vld [vmem:[%s0 + $0x164] sm:$0xf]
  %v105 = vld [vmem:[%s0 + $0x168] sm:$0xf]
  %v106 = vld [vmem:[%s0 + $0x16c] sm:$0xf]
  %v107 = vld [vmem:[%s0 + $0x170] sm:$0xf]
  %v108 = vld [vmem:[%s0 + $0x174] sm:$0xf]
  %v109 = vld [vmem:[%s0 + $0x178] sm:$0xf]
  %v110 = vld [vmem:[%s0 + $0x17c] sm:$0xf]
  %v111 = vld [vmem:[%s0 + $0x180] sm:$0xf]
  %v112 = vld [vmem:[%s0 + $0x184] sm:$0xf]
  %v113 = vld [vmem:[%s0 + $0x188] sm:$0xf]
  %v114 = vld [vmem:[%s0 + $0x18c] sm:$0xf]
  %v115 = vld [vmem:[%s0 + $0x190] sm:$0xf]
  %v116 = vld [vmem:[%s0 + $0x194] sm:$0xf]
  %v117 = vld [vmem:[%s0 + $0x198] sm:$0xf]
  %v118 = vld [vmem:[%s0 + $0x19c] sm:$0xf]
  %v119 = vld [vmem:[%s0 + $0x1a0] sm:$0xf]
  %v120 = vld [vmem:[%s0 + $0x1a4] sm:$0xf]
  %v121 = vld [vmem:[%s0 + $0x1a8] sm:$0xf]
  %v122 = vld [vmem:[%s0 + $0x1ac] sm:$0xf]
  %v123 = vld [vmem:[%s0 + $0x1b0] sm:$0xf]
  %v124 = vld [vmem:[%s0 + $0x1b4] sm:$0xf]
  %v125 = vld [vmem:[%s0 + $0x1b8] sm:$0xf]
  %v126 = vld [vmem:[%s0 + $0x1bc] sm:$0xf]
  %v127 = vld [vmem:[%s0 + $0x1c0] sm:$0xf]
  %v128 = vld [vmem:[%s0 + $0x1c4] sm:$0xf]
  %v129 = vld [vmem:[%s0 + $0x1c8] sm:$0xf]
  %v130 = vld [vmem:[%s0 + $0x1cc] sm:$0xf]
  %v131 = vld [vmem:[%s0 + $0x1d0] sm:$0xf]
  %v132 = vld [vmem:[%s0 + $0x1d4] sm:$0xf]
  %v133 = vld [vmem:[%s0 + $0x1d8] sm:$0xf]
  %v134 = vld [vmem:[%s0 + $0x1dc] sm:$0xf]
  %v135 = vld [vmem:[%s0 + $0x1e0] sm:$0xf]
  %v136 = vld [vmem:[%s0 + $0x1e4] sm:$0xf]
  %v137 = vld [vmem:[%s0 + $0x1e8] sm:$0xf]
  %v138 = vld [vmem:[%s0 + $0x1ec] sm:$0xf]
  %v139 = vld [vmem:[%s0 + $0x1f0] sm:$0xf]
  %v140 = vld [vmem:[%s0 + $0x1f4] sm:$0xf]
  %v141 = vld [vmem:[%s0 + $0x1f8] sm:$0xf]
  %v142 = vld [vmem:[%s0 + $0x1fc] sm:$0xf]
  %v143 = vld [vmem:[%s0 + $0x200] sm:$0xf]
  %v144 = vld [vmem:[%s0 + $0x204] sm:$0xf]
  %v145 = vld [vmem:[%s0 + $0x208] sm:$0xf]
  %v146 = vld [vmem:[%s0 + $0x20c] sm:$0xf]
  %v147 = vld [vmem:[%s0 + $0x210] sm:$0xf]
  %v148 = vld [vmem:[%s0 + $0x214] sm:$0xf]
  %v149 = vld [vmem:[%s0 + $0x218] sm:$0xf]
  %v150 = vld [vmem:[%s0 + $0x21c] sm:$0xf]
  %v151 = vld [vmem:[%s0 + $0x220] sm:$0xf]
  %v152 = vld [vmem:[%s0 + $0x224] sm:$0xf]
  %v153 = vld [vmem:[%s0 + $0x228] sm:$0xf]
  %v154 = vld [vmem:[%s0 + $0x22c] sm:$0xf]
  %v155 = vld [vmem:[%s0 + $0x230] sm:$0xf]
  %v156 = vld [vmem:[%s0 + $0x234] sm:$0xf]
  %v157 = vld [vmem:[%s0 + $0x238] sm:$0xf]
  %v158 = vld [vmem:[%s0 + $0x23c] sm:$0xf]
  %v159 = vld [vmem:[%s0 + $0x240] sm:$0xf]
  %v160 = vld [vmem:[%s0 + $0x244] sm:$0xf]
  %v161 = vld [vmem:[%s0 + $0x248] sm:$0xf]
  %v162 = vld [vmem:[%s0 + $0x24c] sm:$0xf]
  %v163 = vld [vmem:[%s0 + $0x250] sm:$0xf]
  %v164 = vld [vmem:[%s0 + $0x254] sm:$0xf]
  %v165 = vld [vmem:[%s0 + $0x258] sm:$0xf]
  %v166 = vld [vmem:[%s0 + $0x25c] sm:$0xf]
  %v167 = vld [vmem:[%s0 + $0x260] sm:$0xf]
  %v168 = vld [vmem:[%s0 + $0x264] sm:$0xf]
  %v169 = vld [vmem:[%s0 + $0x268] sm:$0xf]
  %v170 = vld [vmem:[%s0 + $0x26c] sm:$0xf]
  %v171 = vld [vmem:[%s0 + $0x270] sm:$0xf]
  %v172 = vld [vmem:[%s0 + $0x274] sm:$0xf]
  %v173 = vld [vmem:[%s0 + $0x278] sm:$0xf]
  %v174 = vld [vmem:[%s0 + $0x27c] sm:$0xf]
  %v175 = vld [vmem:[%s0 + $0x280] sm:$0xf]
  %v176 = vld [vmem:[%s0 + $0x284] sm:$0xf]
  %v177 = vld [vmem:[%s0 + $0x288] sm:$0xf]
  %v178 = vld [vmem:[%s0 + $0x28c] sm:$0xf]
  %v179 = vld [vmem:[%s0 + $0x290] sm:$0xf]
  %v180 = vld [vmem:[%s0 + $0x294] sm:$0xf]
  %v181 = vld [vmem:[%s0 + $0x298] sm:$0xf]
  %v182 = vld [vmem:[%s0 + $0x29c] sm:$0xf]
  %v183 = vld [vmem:[%s0 + $0x2a0] sm:$0xf]
  %v184 = vld [vmem:[%s0 + $0x2a4] sm:$0xf]
  %v185 = vld [vmem:[%s0 + $0x2a8] sm:$0xf]
  %v186 = vld [vmem:[%s0 + $0x2ac] sm:$0xf]
  %v187 = vld [vmem:[%s0 + $0x2b0] sm:$0xf]
  %v188 = vld [vmem:[%s0 + $0x2b4] sm:$0xf]
  %v189 = vld [vmem:[%s0 + $0x2b8] sm:$0xf]
  %v190 = vld [vmem:[%s0 + $0x2bc] sm:$0xf]
  %v191 = vld [vmem:[%s0 + $0x2c0] sm:$0xf]
  %v192 = vld [vmem:[%s0 + $0x2c4] sm:$0xf]
  %v193 = vld [vmem:[%s0 + $0x2c8] sm:$0xf]
  %v194 = vld [vmem:[%s0 + $0x2cc] sm:$0xf]
  %v195 = vld [vmem:[%s0 + $0x2d0] sm:$0xf]
  %v196 = vld [vmem:[%s0 + $0x2d4] sm:$0xf]
  %v197 = vld [vmem:[%s0 + $0x2d8] sm:$0xf]
  %v198 = vld [vmem:[%s0 + $0x2dc] sm:$0xf]
  %v199 = vld [vmem:[%s0 + $0x2e0] sm:$0xf]
  %v200 = vld [vmem:[%s0 + $0x2e4] sm:$0xf]
  %v201 = vld [vmem:[%s0 + $0x2e8] sm:$0xf]
  %v202 = vld [vmem:[%s0 + $0x2ec] sm:$0xf]
  %v203 = vld [vmem:[%s0 + $0x2f0] sm:$0xf]
  %v204 = vld [vmem:[%s0 + $0x2f4] sm:$0xf]
  %v205 = vld [vmem:[%s0 + $0x2f8] sm:$0xf]
  %v206 = vld [vmem:[%s0 + $0x2fc] sm:$0xf]
  %v207 = vld [vmem:[%s0 + $0x300] sm:$0xf]
  %v208 = vld [vmem:[%s0 + $0x304] sm:$0xf]
  %v209 = vld [vmem:[%s0 + $0x308] sm:$0xf]
  %v210 = vld [vmem:[%s0 + $0x30c] sm:$0xf]
  %v211 = vld [vmem:[%s1] sm:$0xf]
  %v212 = vld [vmem:[%s1 + $0x4] sm:$0xf]
  %v213 = vld [vmem:[%s1 + $0x8] sm:$0xf]
  %v214 = vld [vmem:[%s1 + $0xc] sm:$0xf]
  %v215 = vld [vmem:[%s1 + $0x10] sm:$0xf]
  %v216 = vld [vmem:[%s1 + $0x14] sm:$0xf]
  %v217 = vld [vmem:[%s1 + $0x18] sm:$0xf]
  %v218 = vld [vmem:[%s1 + $0x1c] sm:$0xf]
  %v219 = vld [vmem:[%s1 + $0x20] sm:$0xf]
  %v220 = vld [vmem:[%s1 + $0x24] sm:$0xf]
  %v221 = vld [vmem:[%s1 + $0x28] sm:$0xf]
  %v222 = vld [vmem:[%s1 + $0x2c] sm:$0xf]
  %v223 = vld [vmem:[%s1 + $0x30] sm:$0xf]
  %v224 = vld [vmem:[%s1 + $0x34] sm:$0xf]
  %v225 = vld [vmem:[%s1 + $0x38] sm:$0xf]
  %v226 = vld [vmem:[%s1 + $0x3c] sm:$0xf]
  %v423 = vunpack.c.l.b16 %v15
  %v424 = vunpack.c.l.b16 %v16
  %v425 = vunpack.c.l.b16 %v17
  %v426 = vunpack.c.l.b16 %v18
  %v427 = vunpack.c.l.b16 %v19
  %v428 = vunpack.c.l.b16 %v20
  %v429 = vunpack.c.l.b16 %v21
  %v430 = vunpack.c.l.b16 %v22
  %v431 = vunpack.c.l.b16 %v23
  %v432 = vunpack.c.l.b16 %v24
  %v433 = vunpack.c.l.b16 %v25
  %v434 = vunpack.c.l.b16 %v26
  %v435 = vunpack.c.l.b16 %v27
  %v436 = vunpack.c.l.b16 %v28
  %v437 = vunpack.c.l.b16 %v29
  %v438 = vunpack.c.l.b16 %v30
  %v439 = vunpack.c.l.b16 %v31
  %v440 = vunpack.c.l.b16 %v32
  %v441 = vunpack.c.l.b16 %v33
  %v442 = vunpack.c.l.b16 %v34
  %v443 = vunpack.c.l.b16 %v35
  %v444 = vunpack.c.l.b16 %v36
  %v445 = vunpack.c.l.b16 %v37
  %v446 = vunpack.c.l.b16 %v38
  %v447 = vunpack.c.l.b16 %v39
  %v448 = vunpack.c.l.b16 %v40
  %v449 = vunpack.c.l.b16 %v41
  %v450 = vunpack.c.l.b16 %v42
  %v451 = vunpack.c.l.b16 %v43
  %v452 = vunpack.c.l.b16 %v44
  %v453 = vunpack.c.l.b16 %v45
  %v454 = vunpack.c.l.b16 %v46
  %v455 = vunpack.c.l.b16 %v47
  %v456 = vunpack.c.l.b16 %v48
  %v457 = vunpack.c.l.b16 %v49
  %v458 = vunpack.c.l.b16 %v50
  %v459 = vunpack.c.l.b16 %v51
  %v460 = vunpack.c.l.b16 %v52
  %v461 = vunpack.c.l.b16 %v53
  %v462 = vunpack.c.l.b16 %v54
  %v463 = vunpack.c.l.b16 %v55
  %v464 = vunpack.c.l.b16 %v56
  %v465 = vunpack.c.l.b16 %v57
  %v466 = vunpack.c.l.b16 %v58
  %v467 = vunpack.c.l.b16 %v59
  %v468 = vunpack.c.l.b16 %v60
  %v469 = vunpack.c.l.b16 %v61
  %v470 = vunpack.c.l.b16 %v62
  %v471 = vunpack.c.l.b16 %v63
  %v472 = vunpack.c.l.b16 %v64
  %v473 = vunpack.c.l.b16 %v65
  %v474 = vunpack.c.l.b16 %v66
  %v475 = vunpack.c.l.b16 %v67
  %v476 = vunpack.c.l.b16 %v68
  %v477 = vunpack.c.l.b16 %v69
  %v478 = vunpack.c.l.b16 %v70
  %v479 = vunpack.c.l.b16 %v71
  %v480 = vunpack.c.l.b16 %v72
  %v481 = vunpack.c.l.b16 %v73
  %v482 = vunpack.c.l.b16 %v74
  %v483 = vunpack.c.l.b16 %v75
  %v484 = vunpack.c.l.b16 %v76
  %v485 = vunpack.c.l.b16 %v77
  %v486 = vunpack.c.l.b16 %v78
  %v487 = vunpack.c.l.b16 %v79
  %v488 = vunpack.c.l.b16 %v80
  %v489 = vunpack.c.l.b16 %v81
  %v490 = vunpack.c.l.b16 %v82
  %v491 = vunpack.c.l.b16 %v83
  %v492 = vunpack.c.l.b16 %v84
  %v493 = vunpack.c.l.b16 %v85
  %v494 = vunpack.c.l.b16 %v86
  %v495 = vunpack.c.l.b16 %v87
  %v496 = vunpack.c.l.b16 %v88
  %v497 = vunpack.c.l.b16 %v89
  %v498 = vunpack.c.l.b16 %v90
  %v499 = vunpack.c.l.b16 %v91
  %v500 = vunpack.c.l.b16 %v92
  %v501 = vunpack.c.l.b16 %v93
  %v502 = vunpack.c.l.b16 %v94
  %v503 = vunpack.c.l.b16 %v95
  %v504 = vunpack.c.l.b16 %v96
  %v505 = vunpack.c.l.b16 %v97
  %v506 = vunpack.c.l.b16 %v98
  %v507 = vunpack.c.l.b16 %v99
  %v508 = vunpack.c.l.b16 %v100
  %v509 = vunpack.c.l.b16 %v101
  %v510 = vunpack.c.l.b16 %v102
  %v511 = vunpack.c.l.b16 %v103
  %v512 = vunpack.c.l.b16 %v104
  %v513 = vunpack.c.l.b16 %v105
  %v514 = vunpack.c.l.b16 %v106
  %v515 = vunpack.c.l.b16 %v107
  %v516 = vunpack.c.l.b16 %v108
  %v517 = vunpack.c.l.b16 %v109
  %v518 = vunpack.c.l.b16 %v110
  %v519 = vunpack.c.l.b16 %v111
  %v520 = vunpack.c.l.b16 %v112
  %v521 = vunpack.c.l.b16 %v113
  %v522 = vunpack.c.l.b16 %v114
  %v523 = vunpack.c.l.b16 %v115
  %v524 = vunpack.c.l.b16 %v116
  %v525 = vunpack.c.l.b16 %v117
  %v526 = vunpack.c.l.b16 %v118
  %v527 = vunpack.c.l.b16 %v119
  %v528 = vunpack.c.l.b16 %v120
  %v529 = vunpack.c.l.b16 %v121
  %v530 = vunpack.c.l.b16 %v122
  %v531 = vunpack.c.l.b16 %v123
  %v532 = vunpack.c.l.b16 %v124
  %v533 = vunpack.c.l.b16 %v125
  %v534 = vunpack.c.l.b16 %v126
  %v535 = vunpack.c.l.b16 %v127
  %v536 = vunpack.c.l.b16 %v128
  %v537 = vunpack.c.l.b16 %v129
  %v538 = vunpack.c.l.b16 %v130
  %v539 = vunpack.c.l.b16 %v131
  %v540 = vunpack.c.l.b16 %v132
  %v541 = vunpack.c.l.b16 %v133
  %v542 = vunpack.c.l.b16 %v134
  %v543 = vunpack.c.l.b16 %v135
  %v544 = vunpack.c.l.b16 %v136
  %v545 = vunpack.c.l.b16 %v137
  %v546 = vunpack.c.l.b16 %v138
  %v547 = vunpack.c.l.b16 %v139
  %v548 = vunpack.c.l.b16 %v140
  %v549 = vunpack.c.l.b16 %v141
  %v550 = vunpack.c.l.b16 %v142
  %v551 = vunpack.c.l.b16 %v143
  %v552 = vunpack.c.l.b16 %v144
  %v553 = vunpack.c.l.b16 %v145
  %v554 = vunpack.c.l.b16 %v146
  %v555 = vunpack.c.l.b16 %v147
  %v556 = vunpack.c.l.b16 %v148
  %v557 = vunpack.c.l.b16 %v149
  %v558 = vunpack.c.l.b16 %v150
  %v559 = vunpack.c.l.b16 %v151
  %v560 = vunpack.c.l.b16 %v152
  %v561 = vunpack.c.l.b16 %v153
  %v562 = vunpack.c.l.b16 %v154
  %v563 = vunpack.c.l.b16 %v155
  %v564 = vunpack.c.l.b16 %v156
  %v565 = vunpack.c.l.b16 %v157
  %v566 = vunpack.c.l.b16 %v158
  %v567 = vunpack.c.l.b16 %v159
  %v568 = vunpack.c.l.b16 %v160
  %v569 = vunpack.c.l.b16 %v161
  %v570 = vunpack.c.l.b16 %v162
  %v571 = vunpack.c.l.b16 %v163
  %v572 = vunpack.c.l.b16 %v164
  %v573 = vunpack.c.l.b16 %v165
  %v574 = vunpack.c.l.b16 %v166
  %v575 = vunpack.c.l.b16 %v167
  %v576 = vunpack.c.l.b16 %v168
  %v577 = vunpack.c.l.b16 %v169
  %v578 = vunpack.c.l.b16 %v170
  %v579 = vunpack.c.l.b16 %v171
  %v580 = vunpack.c.l.b16 %v172
  %v581 = vunpack.c.l.b16 %v173
  %v582 = vunpack.c.l.b16 %v174
  %v583 = vunpack.c.l.b16 %v175
  %v584 = vunpack.c.l.b16 %v176
  %v585 = vunpack.c.l.b16 %v177
  %v586 = vunpack.c.l.b16 %v178
  %v587 = vunpack.c.l.b16 %v179
  %v588 = vunpack.c.l.b16 %v180
  %v589 = vunpack.c.l.b16 %v181
  %v590 = vunpack.c.l.b16 %v182
  %v591 = vunpack.c.l.b16 %v183
  %v592 = vunpack.c.l.b16 %v184
  %v593 = vunpack.c.l.b16 %v185
  %v594 = vunpack.c.l.b16 %v186
  %v595 = vunpack.c.l.b16 %v187
  %v596 = vunpack.c.l.b16 %v188
  %v597 = vunpack.c.l.b16 %v189
  %v598 = vunpack.c.l.b16 %v190
  %v599 = vunpack.c.l.b16 %v191
  %v600 = vunpack.c.l.b16 %v192
  %v601 = vunpack.c.l.b16 %v193
  %v602 = vunpack.c.l.b16 %v194
  %v603 = vunpack.c.l.b16 %v195
  %v604 = vunpack.c.l.b16 %v196
  %v605 = vunpack.c.l.b16 %v197
  %v606 = vunpack.c.l.b16 %v198
  %v607 = vunpack.c.l.b16 %v199
  %v608 = vunpack.c.l.b16 %v200
  %v609 = vunpack.c.l.b16 %v201
  %v610 = vunpack.c.l.b16 %v202
  %v611 = vunpack.c.l.b16 %v203
  %v612 = vunpack.c.l.b16 %v204
  %v613 = vunpack.c.l.b16 %v205
  %v614 = vunpack.c.l.b16 %v206
  %v615 = vunpack.c.l.b16 %v207
  %v616 = vunpack.c.l.b16 %v208
  %v617 = vunpack.c.l.b16 %v209
  %v618 = vunpack.c.l.b16 %v210
  %v619 = vpack.c.b16 %v424, %v423
  %v620 = vpack.c.b16 %v426, %v425
  %v621 = vpack.c.b16 %v428, %v427
  %v622 = vpack.c.b16 %v430, %v429
  %v623 = vpack.c.b16 %v432, %v431
  %v624 = vpack.c.b16 %v434, %v433
  %v625 = vpack.c.b16 %v436, %v435
  %v626 = vpack.c.b16 %v438, %v437
  %v627 = vpack.c.b16 %v440, %v439
  %v628 = vpack.c.b16 %v442, %v441
  %v629 = vpack.c.b16 %v444, %v443
  %v630 = vpack.c.b16 %v446, %v445
  %v631 = vpack.c.b16 %v448, %v447
  %v632 = vpack.c.b16 %v450, %v449
  %v633 = vpack.c.b16 %v452, %v451
  %v634 = vpack.c.b16 %v454, %v453
  %v635 = vpack.c.b16 %v456, %v455
  %v636 = vpack.c.b16 %v458, %v457
  %v637 = vpack.c.b16 %v460, %v459
  %v638 = vpack.c.b16 %v462, %v461
  %v639 = vpack.c.b16 %v464, %v463
  %v640 = vpack.c.b16 %v466, %v465
  %v641 = vpack.c.b16 %v468, %v467
  %v642 = vpack.c.b16 %v470, %v469
  %v643 = vpack.c.b16 %v472, %v471
  %v644 = vpack.c.b16 %v474, %v473
  %v645 = vpack.c.b16 %v476, %v475
  %v646 = vpack.c.b16 %v478, %v477
  %v647 = vpack.c.b16 %v480, %v479
  %v648 = vpack.c.b16 %v482, %v481
  %v649 = vpack.c.b16 %v484, %v483
  %v650 = vpack.c.b16 %v486, %v485
  %v651 = vpack.c.b16 %v488, %v487
  %v652 = vpack.c.b16 %v490, %v489
  %v653 = vpack.c.b16 %v492, %v491
  %v654 = vpack.c.b16 %v494, %v493
  %v655 = vpack.c.b16 %v496, %v495
  %v656 = vpack.c.b16 %v498, %v497
  %v657 = vpack.c.b16 %v500, %v499
  %v658 = vpack.c.b16 %v502, %v501
  %v659 = vpack.c.b16 %v504, %v503
  %v660 = vpack.c.b16 %v506, %v505
  %v661 = vpack.c.b16 %v508, %v507
  %v662 = vpack.c.b16 %v510, %v509
  %v663 = vpack.c.b16 %v512, %v511
  %v664 = vpack.c.b16 %v514, %v513
  %v665 = vpack.c.b16 %v516, %v515
  %v666 = vpack.c.b16 %v518, %v517
  %v667 = vpack.c.b16 %v520, %v519
  %v668 = vpack.c.b16 %v522, %v521
  %v669 = vpack.c.b16 %v524, %v523
  %v670 = vpack.c.b16 %v526, %v525
  %v671 = vpack.c.b16 %v528, %v527
  %v672 = vpack.c.b16 %v530, %v529
  %v673 = vpack.c.b16 %v532, %v531
  %v674 = vpack.c.b16 %v534, %v533
  %v675 = vpack.c.b16 %v536, %v535
  %v676 = vpack.c.b16 %v538, %v537
  %v677 = vpack.c.b16 %v540, %v539
  %v678 = vpack.c.b16 %v542, %v541
  %v679 = vpack.c.b16 %v544, %v543
  %v680 = vpack.c.b16 %v546, %v545
  %v681 = vpack.c.b16 %v548, %v547
  %v682 = vpack.c.b16 %v550, %v549
  %v683 = vpack.c.b16 %v552, %v551
  %v684 = vpack.c.b16 %v554, %v553
  %v685 = vpack.c.b16 %v556, %v555
  %v686 = vpack.c.b16 %v558, %v557
  %v687 = vpack.c.b16 %v560, %v559
  %v688 = vpack.c.b16 %v562, %v561
  %v689 = vpack.c.b16 %v564, %v563
  %v690 = vpack.c.b16 %v566, %v565
  %v691 = vpack.c.b16 %v568, %v567
  %v692 = vpack.c.b16 %v570, %v569
  %v693 = vpack.c.b16 %v572, %v571
  %v694 = vpack.c.b16 %v574, %v573
  %v695 = vpack.c.b16 %v576, %v575
  %v696 = vpack.c.b16 %v578, %v577
  %v697 = vpack.c.b16 %v580, %v579
  %v698 = vpack.c.b16 %v582, %v581
  %v699 = vpack.c.b16 %v584, %v583
  %v700 = vpack.c.b16 %v586, %v585
  %v701 = vpack.c.b16 %v588, %v587
  %v702 = vpack.c.b16 %v590, %v589
  %v703 = vpack.c.b16 %v592, %v591
  %v704 = vpack.c.b16 %v594, %v593
  %v705 = vpack.c.b16 %v596, %v595
  %v706 = vpack.c.b16 %v598, %v597
  %v707 = vpack.c.b16 %v600, %v599
  %v708 = vpack.c.b16 %v602, %v601
  %v709 = vpack.c.b16 %v604, %v603
  %v710 = vpack.c.b16 %v606, %v605
  %v711 = vpack.c.b16 %v608, %v607
  %v712 = vpack.c.b16 %v610, %v609
  %v713 = vpack.c.b16 %v612, %v611
  %v714 = vpack.c.b16 %v614, %v613
  %v715 = vpack.c.b16 %v616, %v615
  %v716 = vpack.c.b16 %v618, %v617
  %v831 = vunpack.c.l.b16 %v211
  %v832 = vunpack.c.l.b16 %v212
  %v833 = vunpack.c.l.b16 %v213
  %v834 = vunpack.c.l.b16 %v214
  %v835 = vunpack.c.l.b16 %v215
  %v836 = vunpack.c.l.b16 %v216
  %v837 = vunpack.c.l.b16 %v217
  %v838 = vunpack.c.l.b16 %v218
  %v839 = vunpack.c.l.b16 %v219
  %v840 = vunpack.c.l.b16 %v220
  %v841 = vunpack.c.l.b16 %v221
  %v842 = vunpack.c.l.b16 %v222
  %v843 = vunpack.c.l.b16 %v223
  %v844 = vunpack.c.l.b16 %v224
  %v845 = vunpack.c.l.b16 %v225
  %v846 = vunpack.c.l.b16 %v226
  %v847 = vpack.c.b16 %v832, %v831
  %v848 = vpack.c.b16 %v834, %v833
  %v849 = vpack.c.b16 %v836, %v835
  %v850 = vpack.c.b16 %v838, %v837
  %v851 = vpack.c.b16 %v840, %v839
  %v852 = vpack.c.b16 %v842, %v841
  %v853 = vpack.c.b16 %v844, %v843
  %v854 = vpack.c.b16 %v846, %v845
  %863 = vmatprep.subr.bf16.mxu0 0
  %864 = vmatpush1.bf16.msra.mxu0 %v847
  %865 = vmatprep.subr.bf16.mxu0 0
  %866 = vmatpush1.bf16.msra.mxu0 %v848
  %867 = vmatprep.subr.bf16.mxu0 0
  %868 = vmatpush1.bf16.msra.mxu0 %v849
  %869 = vmatprep.subr.bf16.mxu0 0
  %870 = vmatpush1.bf16.msra.mxu0 %v850
  %871 = vmatprep.subr.bf16.mxu0 0
  %872 = vmatpush1.bf16.msra.mxu0 %v851
  %873 = vmatprep.subr.bf16.mxu0 0
  %874 = vmatpush1.bf16.msra.mxu0 %v852
  %875 = vmatprep.subr.bf16.mxu0 0
  %876 = vmatpush1.bf16.msra.mxu0 %v853
  %877 = vmatprep.subr.bf16.mxu0 0
  %878 = vmatpush1.bf16.msra.mxu0 %v854
  %879 = vmatprep.subr.bf16.mxu0 0
  %880 = vmatpush1.bf16.msra.mxu0 0
  %881 = vmatprep.subr.bf16.mxu0 0
  %882 = vmatpush1.bf16.msra.mxu0 0
  %883 = vmatprep.subr.bf16.mxu0 0
  %884 = vmatpush1.bf16.msra.mxu0 0
  %885 = vmatprep.subr.bf16.mxu0 0
  %886 = vmatpush1.bf16.msra.mxu0 0
  %887 = vmatprep.subr.bf16.mxu0 0
  %888 = vmatpush1.bf16.msra.mxu0 0
  %889 = vmatprep.subr.bf16.mxu0 0
  %890 = vmatpush1.bf16.msra.mxu0 0
  %891 = vmatprep.subr.bf16.mxu0 0
  %892 = vmatpush1.bf16.msra.mxu0 0
  %893 = vmatprep.subr.bf16.mxu0 0
  %894 = vmatpush1.bf16.msra.mxu0 0
  %895 = vmatprep.mubr.bf16.mxu0 0
  %896 = vmatmul.mubr.bf16.gmra.mrb[0].mxu0 %v619
  %v897 = vpop.f32.mrb[0].mxu0
  %v898 = vadd.f32 0.0, %v897
  %v899 = vpop.f32.mrb[0].mxu0
  %v900 = vpop.f32.mrb[0].mxu0
  %v901 = vadd.f32 0.0, %v900
  %v902 = vpop.f32.mrb[0].mxu0
  %903 = vmatprep.mubr.bf16.mxu0 0
  %904 = vmatmul.mubr.bf16.gmra.mrb[0].mxu0 %v620
  %v905 = vpop.f32.mrb[0].mxu0
  %v906 = vadd.f32 0.0, %v905
  %v907 = vpop.f32.mrb[0].mxu0
  %v908 = vpop.f32.mrb[0].mxu0
  %v909 = vadd.f32 0.0, %v908
  %v910 = vpop.f32.mrb[0].mxu0
  %911 = vmatprep.mubr.bf16.mxu0 0
  %912 = vmatmul.mubr.bf16.gmra.mrb[0].mxu0 %v621
  %v913 = vpop.f32.mrb[0].mxu0
  %v914 = vadd.f32 0.0, %v913
  %v915 = vpop.f32.mrb[0].mxu0
  %v916 = vpop.f32.mrb[0].mxu0
  %v917 = vadd.f32 0.0, %v916
  %v918 = vpop.f32.mrb[0].mxu0
  %919 = vmatprep.mubr.bf16.mxu0 0
  %920 = vmatmul.mubr.bf16.gmra.mrb[0].mxu0 %v622
  %v921 = vpop.f32.mrb[0].mxu0
  %v922 = vadd.f32 0.0, %v921
  %v923 = vpop.f32.mrb[0].mxu0
  %v924 = vpop.f32.mrb[0].mxu0
  %v925 = vadd.f32 0.0, %v924
  %v926 = vpop.f32.mrb[0].mxu0
  %927 = vmatprep.mubr.bf16.mxu0 0
  %928 = vmatmul.mubr.bf16.gmra.mrb[0].mxu0 %v623
  %v929 = vpop.f32.mrb[0].mxu0
  %v930 = vadd.f32 0.0, %v929
  %v931 = vpop.f32.mrb[0].mxu0
  %v932 = vpop.f32.mrb[0].mxu0
  %v933 = vadd.f32 0.0, %v932
  %v934 = vpop.f32.mrb[0].mxu0
  %935 = vmatprep.mubr.bf16.mxu0 0
  %936 = vmatmul.mubr.bf16.gmra.mrb[0].mxu0 %v624
  %v937 = vpop.f32.mrb[0].mxu0
  %v938 = vadd.f32 0.0, %v937
  %v939 = vpop.f32.mrb[0].mxu0
  %v940 = vpop.f32.mrb[0].mxu0
  %v941 = vadd.f32 0.0, %v940
  %v942 = vpop.f32.mrb[0].mxu0
  %943 = vmatprep.mubr.bf16.mxu0 0
  %944 = vmatmul.mubr.bf16.gmra.mrb[0].mxu0 %v625
  %v945 = vpop.f32.mrb[0].mxu0
  %v946 = vadd.f32 0.0, %v945
  %v947 = vpop.f32.mrb[0].mxu0
  %v948 = vpop.f32.mrb[0].mxu0
  %v949 = vadd.f32 0.0, %v948
  %v950 = vpop.f32.mrb[0].mxu0
  %951 = vmatprep.mubr.bf16.mxu0 0
  %952 = vmatmul.mubr.bf16.gmra.mrb[0].mxu0 %v626
  %v953 = vpop.f32.mrb[0].mxu0
  %v954 = vadd.f32 0.0, %v953
  %v955 = vpop.f32.mrb[0].mxu0
  %v956 = vpop.f32.mrb[0].mxu0
  %v957 = vadd.f32 0.0, %v956
  %v958 = vpop.f32.mrb[0].mxu0
  %959 = vmatprep.mubr.bf16.mxu0 0
  %960 = vmatmul.mubr.bf16.gmra.mrb[0].mxu0 %v627
  %v961 = vpop.f32.mrb[0].mxu0
  %v962 = vadd.f32 0.0, %v961
  %v963 = vpop.f32.mrb[0].mxu0
  %v964 = vpop.f32.mrb[0].mxu0
  %v965 = vadd.f32 0.0, %v964
  %v966 = vpop.f32.mrb[0].mxu0
  %967 = vmatprep.mubr.bf16.mxu0 0
  %968 = vmatmul.mubr.bf16.gmra.mrb[0].mxu0 %v628
  %v969 = vpop.f32.mrb[0].mxu0
  %v970 = vadd.f32 0.0, %v969
  %v971 = vpop.f32.mrb[0].mxu0
  %v972 = vpop.f32.mrb[0].mxu0
  %v973 = vadd.f32 0.0, %v972
  %v974 = vpop.f32.mrb[0].mxu0
  %975 = vmatprep.mubr.bf16.mxu0 0
  %976 = vmatmul.mubr.bf16.gmra.mrb[0].mxu0 %v629
  %v977 = vpop.f32.mrb[0].mxu0
  %v978 = vadd.f32 0.0, %v977
  %v979 = vpop.f32.mrb[0].mxu0
  %v980 = vpop.f32.mrb[0].mxu0
  %v981 = vadd.f32 0.0, %v980
  %v982 = vpop.f32.mrb[0].mxu0
  %983 = vmatprep.mubr.bf16.mxu0 0
  %984 = vmatmul.mubr.bf16.gmra.mrb[0].mxu0 %v630
  %v985 = vpop.f32.mrb[0].mxu0
  %v986 = vadd.f32 0.0, %v985
  %v987 = vpop.f32.mrb[0].mxu0
  %v988 = vpop.f32.mrb[0].mxu0
  %v989 = vadd.f32 0.0, %v988
  %v990 = vpop.f32.mrb[0].mxu0
  %991 = vmatprep.mubr.bf16.mxu0 0
  %992 = vmatmul.mubr.bf16.gmra.mrb[0].mxu0 %v631
  %v993 = vpop.f32.mrb[0].mxu0
  %v994 = vadd.f32 0.0, %v993
  %v995 = vpop.f32.mrb[0].mxu0
  %v996 = vpop.f32.mrb[0].mxu0
  %v997 = vadd.f32 0.0, %v996
  %v998 = vpop.f32.mrb[0].mxu0
  %999 = vmatprep.mubr.bf16.mxu0 0
  %1000 = vmatmul.mubr.bf16.gmra.mrb[0].mxu0 %v632
  %v1001 = vpop.f32.mrb[0].mxu0
  %v1002 = vadd.f32 0.0, %v1001
  %v1003 = vpop.f32.mrb[0].mxu0
  %v1004 = vpop.f32.mrb[0].mxu0
  %v1005 = vadd.f32 0.0, %v1004
  %v1006 = vpop.f32.mrb[0].mxu0
  %1007 = vmatprep.mubr.bf16.mxu0 0
  %1008 = vmatmul.mubr.bf16.gmra.mrb[0].mxu0 %v633
  %v1009 = vpop.f32.mrb[0].mxu0
  %v1010 = vadd.f32 0.0, %v1009
  %v1011 = vpop.f32.mrb[0].mxu0
  %v1012 = vpop.f32.mrb[0].mxu0
  %v1013 = vadd.f32 0.0, %v1012
  %v1014 = vpop.f32.mrb[0].mxu0
  %1015 = vmatprep.mubr.bf16.mxu0 0
  %1016 = vmatmul.mubr.bf16.gmra.mrb[0].mxu0 %v634
  %v1017 = vpop.f32.mrb[0].mxu0
  %v1018 = vadd.f32 0.0, %v1017
  %v1019 = vpop.f32.mrb[0].mxu0
  %v1020 = vpop.f32.mrb[0].mxu0
  %v1021 = vadd.f32 0.0, %v1020
  %v1022 = vpop.f32.mrb[0].mxu0
  %1023 = vmatprep.mubr.bf16.mxu0 0
  %1024 = vmatmul.mubr.bf16.gmra.mrb[0].mxu0 %v635
  %v1025 = vpop.f32.mrb[0].mxu0
  %v1026 = vadd.f32 0.0, %v1025
  %v1027 = vpop.f32.mrb[0].mxu0
  %v1028 = vpop.f32.mrb[0].mxu0
  %v1029 = vadd.f32 0.0, %v1028
  %v1030 = vpop.f32.mrb[0].mxu0
  %1031 = vmatprep.mubr.bf16.mxu0 0
  %1032 = vmatmul.mubr.bf16.gmra.mrb[0].mxu0 %v636
  %v1033 = vpop.f32.mrb[0].mxu0
  %v1034 = vadd.f32 0.0, %v1033
  %v1035 = vpop.f32.mrb[0].mxu0
  %v1036 = vpop.f32.mrb[0].mxu0
  %v1037 = vadd.f32 0.0, %v1036
  %v1038 = vpop.f32.mrb[0].mxu0
  %1039 = vmatprep.mubr.bf16.mxu0 0
  %1040 = vmatmul.mubr.bf16.gmra.mrb[0].mxu0 %v637
  %v1041 = vpop.f32.mrb[0].mxu0
  %v1042 = vadd.f32 0.0, %v1041
  %v1043 = vpop.f32.mrb[0].mxu0
  %v1044 = vpop.f32.mrb[0].mxu0
  %v1045 = vadd.f32 0.0, %v1044
  %v1046 = vpop.f32.mrb[0].mxu0
  %1047 = vmatprep.mubr.bf16.mxu0 0
  %1048 = vmatmul.mubr.bf16.gmra.mrb[0].mxu0 %v638
  %v1049 = vpop.f32.mrb[0].mxu0
  %v1050 = vadd.f32 0.0, %v1049
  %v1051 = vpop.f32.mrb[0].mxu0
  %v1052 = vpop.f32.mrb[0].mxu0
  %v1053 = vadd.f32 0.0, %v1052
  %v1054 = vpop.f32.mrb[0].mxu0
  %1055 = vmatprep.mubr.bf16.mxu0 0
  %1056 = vmatmul.mubr.bf16.gmra.mrb[0].mxu0 %v639
  %v1057 = vpop.f32.mrb[0].mxu0
  %v1058 = vadd.f32 0.0, %v1057
  %v1059 = vpop.f32.mrb[0].mxu0
  %v1060 = vpop.f32.mrb[0].mxu0
  %v1061 = vadd.f32 0.0, %v1060
  %v1062 = vpop.f32.mrb[0].mxu0
  %1063 = vmatprep.mubr.bf16.mxu0 0
  %1064 = vmatmul.mubr.bf16.gmra.mrb[0].mxu0 %v640
  %v1065 = vpop.f32.mrb[0].mxu0
  %v1066 = vadd.f32 0.0, %v1065
  %v1067 = vpop.f32.mrb[0].mxu0
  %v1068 = vpop.f32.mrb[0].mxu0
  %v1069 = vadd.f32 0.0, %v1068
  %v1070 = vpop.f32.mrb[0].mxu0
  %1071 = vmatprep.mubr.bf16.mxu0 0
  %1072 = vmatmul.mubr.bf16.gmra.mrb[0].mxu0 %v641
  %v1073 = vpop.f32.mrb[0].mxu0
  %v1074 = vadd.f32 0.0, %v1073
  %v1075 = vpop.f32.mrb[0].mxu0
  %v1076 = vpop.f32.mrb[0].mxu0
  %v1077 = vadd.f32 0.0, %v1076
  %v1078 = vpop.f32.mrb[0].mxu0
  %1079 = vmatprep.mubr.bf16.mxu0 0
  %1080 = vmatmul.mubr.bf16.gmra.mrb[0].mxu0 %v642
  %v1081 = vpop.f32.mrb[0].mxu0
  %v1082 = vadd.f32 0.0, %v1081
  %v1083 = vpop.f32.mrb[0].mxu0
  %v1084 = vpop.f32.mrb[0].mxu0
  %v1085 = vadd.f32 0.0, %v1084
  %v1086 = vpop.f32.mrb[0].mxu0
  %1087 = vmatprep.mubr.bf16.mxu0 0
  %1088 = vmatmul.mubr.bf16.gmra.mrb[0].mxu0 %v643
  %v1089 = vpop.f32.mrb[0].mxu0
  %v1090 = vadd.f32 0.0, %v1089
  %v1091 = vpop.f32.mrb[0].mxu0
  %v1092 = vpop.f32.mrb[0].mxu0
  %v1093 = vadd.f32 0.0, %v1092
  %v1094 = vpop.f32.mrb[0].mxu0
  %1095 = vmatprep.mubr.bf16.mxu0 0
  %1096 = vmatmul.mubr.bf16.gmra.mrb[0].mxu0 %v644
  %v1097 = vpop.f32.mrb[0].mxu0
  %v1098 = vadd.f32 0.0, %v1097
  %v1099 = vpop.f32.mrb[0].mxu0
  %v1100 = vpop.f32.mrb[0].mxu0
  %v1101 = vadd.f32 0.0, %v1100
  %v1102 = vpop.f32.mrb[0].mxu0
  %1103 = vmatprep.mubr.bf16.mxu0 0
  %1104 = vmatmul.mubr.bf16.gmra.mrb[0].mxu0 %v645
  %v1105 = vpop.f32.mrb[0].mxu0
  %v1106 = vadd.f32 0.0, %v1105
  %v1107 = vpop.f32.mrb[0].mxu0
  %v1108 = vpop.f32.mrb[0].mxu0
  %v1109 = vadd.f32 0.0, %v1108
  %v1110 = vpop.f32.mrb[0].mxu0
  %1111 = vmatprep.mubr.bf16.mxu0 0
  %1112 = vmatmul.mubr.bf16.gmra.mrb[0].mxu0 %v646
  %v1113 = vpop.f32.mrb[0].mxu0
  %v1114 = vadd.f32 0.0, %v1113
  %v1115 = vpop.f32.mrb[0].mxu0
  %v1116 = vpop.f32.mrb[0].mxu0
  %v1117 = vadd.f32 0.0, %v1116
  %v1118 = vpop.f32.mrb[0].mxu0
  %1119 = vmatprep.mubr.bf16.mxu0 0
  %1120 = vmatmul.mubr.bf16.gmra.mrb[0].mxu0 %v647
  %v1121 = vpop.f32.mrb[0].mxu0
  %v1122 = vadd.f32 0.0, %v1121
  %v1123 = vpop.f32.mrb[0].mxu0
  %v1124 = vpop.f32.mrb[0].mxu0
  %v1125 = vadd.f32 0.0, %v1124
  %v1126 = vpop.f32.mrb[0].mxu0
  %1127 = vmatprep.mubr.bf16.mxu0 0
  %1128 = vmatmul.mubr.bf16.gmra.mrb[0].mxu0 %v648
  %v1129 = vpop.f32.mrb[0].mxu0
  %v1130 = vadd.f32 0.0, %v1129
  %v1131 = vpop.f32.mrb[0].mxu0
  %v1132 = vpop.f32.mrb[0].mxu0
  %v1133 = vadd.f32 0.0, %v1132
  %v1134 = vpop.f32.mrb[0].mxu0
  %1135 = vmatprep.mubr.bf16.mxu0 0
  %1136 = vmatmul.mubr.bf16.gmra.mrb[0].mxu0 %v649
  %v1137 = vpop.f32.mrb[0].mxu0
  %v1138 = vadd.f32 0.0, %v1137
  %v1139 = vpop.f32.mrb[0].mxu0
  %v1140 = vpop.f32.mrb[0].mxu0
  %v1141 = vadd.f32 0.0, %v1140
  %v1142 = vpop.f32.mrb[0].mxu0
  %1143 = vmatprep.mubr.bf16.mxu0 0
  %1144 = vmatmul.mubr.bf16.gmra.mrb[0].mxu0 %v650
  %v1145 = vpop.f32.mrb[0].mxu0
  %v1146 = vadd.f32 0.0, %v1145
  %v1147 = vpop.f32.mrb[0].mxu0
  %v1148 = vpop.f32.mrb[0].mxu0
  %v1149 = vadd.f32 0.0, %v1148
  %v1150 = vpop.f32.mrb[0].mxu0
  %1151 = vmatprep.mubr.bf16.mxu0 0
  %1152 = vmatmul.mubr.bf16.gmra.mrb[0].mxu0 %v651
  %v1153 = vpop.f32.mrb[0].mxu0
  %v1154 = vadd.f32 0.0, %v1153
  %v1155 = vpop.f32.mrb[0].mxu0
  %v1156 = vpop.f32.mrb[0].mxu0
  %v1157 = vadd.f32 0.0, %v1156
  %v1158 = vpop.f32.mrb[0].mxu0
  %1159 = vmatprep.mubr.bf16.mxu0 0
  %1160 = vmatmul.mubr.bf16.gmra.mrb[0].mxu0 %v652
  %v1161 = vpop.f32.mrb[0].mxu0
  %v1162 = vadd.f32 0.0, %v1161
  %v1163 = vpop.f32.mrb[0].mxu0
  %v1164 = vpop.f32.mrb[0].mxu0
  %v1165 = vadd.f32 0.0, %v1164
  %v1166 = vpop.f32.mrb[0].mxu0
  %1167 = vmatprep.mubr.bf16.mxu0 0
  %1168 = vmatmul.mubr.bf16.gmra.mrb[0].mxu0 %v653
  %v1169 = vpop.f32.mrb[0].mxu0
  %v1170 = vadd.f32 0.0, %v1169
  %v1171 = vpop.f32.mrb[0].mxu0
  %v1172 = vpop.f32.mrb[0].mxu0
  %v1173 = vadd.f32 0.0, %v1172
  %v1174 = vpop.f32.mrb[0].mxu0
  %1175 = vmatprep.mubr.bf16.mxu0 0
  %1176 = vmatmul.mubr.bf16.gmra.mrb[0].mxu0 %v654
  %v1177 = vpop.f32.mrb[0].mxu0
  %v1178 = vadd.f32 0.0, %v1177
  %v1179 = vpop.f32.mrb[0].mxu0
  %v1180 = vpop.f32.mrb[0].mxu0
  %v1181 = vadd.f32 0.0, %v1180
  %v1182 = vpop.f32.mrb[0].mxu0
  %1183 = vmatprep.mubr.bf16.mxu0 0
  %1184 = vmatmul.mubr.bf16.gmra.mrb[0].mxu0 %v655
  %v1185 = vpop.f32.mrb[0].mxu0
  %v1186 = vadd.f32 0.0, %v1185
  %v1187 = vpop.f32.mrb[0].mxu0
  %v1188 = vpop.f32.mrb[0].mxu0
  %v1189 = vadd.f32 0.0, %v1188
  %v1190 = vpop.f32.mrb[0].mxu0
  %1191 = vmatprep.mubr.bf16.mxu0 0
  %1192 = vmatmul.mubr.bf16.gmra.mrb[0].mxu0 %v656
  %v1193 = vpop.f32.mrb[0].mxu0
  %v1194 = vadd.f32 0.0, %v1193
  %v1195 = vpop.f32.mrb[0].mxu0
  %v1196 = vpop.f32.mrb[0].mxu0
  %v1197 = vadd.f32 0.0, %v1196
  %v1198 = vpop.f32.mrb[0].mxu0
  %1199 = vmatprep.mubr.bf16.mxu0 0
  %1200 = vmatmul.mubr.bf16.gmra.mrb[0].mxu0 %v657
  %v1201 = vpop.f32.mrb[0].mxu0
  %v1202 = vadd.f32 0.0, %v1201
  %v1203 = vpop.f32.mrb[0].mxu0
  %v1204 = vpop.f32.mrb[0].mxu0
  %v1205 = vadd.f32 0.0, %v1204
  %v1206 = vpop.f32.mrb[0].mxu0
  %1207 = vmatprep.mubr.bf16.mxu0 0
  %1208 = vmatmul.mubr.bf16.gmra.mrb[0].mxu0 %v658
  %v1209 = vpop.f32.mrb[0].mxu0
  %v1210 = vadd.f32 0.0, %v1209
  %v1211 = vpop.f32.mrb[0].mxu0
  %v1212 = vpop.f32.mrb[0].mxu0
  %v1213 = vadd.f32 0.0, %v1212
  %v1214 = vpop.f32.mrb[0].mxu0
  %1215 = vmatprep.mubr.bf16.mxu0 0
  %1216 = vmatmul.mubr.bf16.gmra.mrb[0].mxu0 %v659
  %v1217 = vpop.f32.mrb[0].mxu0
  %v1218 = vadd.f32 0.0, %v1217
  %v1219 = vpop.f32.mrb[0].mxu0
  %v1220 = vpop.f32.mrb[0].mxu0
  %v1221 = vadd.f32 0.0, %v1220
  %v1222 = vpop.f32.mrb[0].mxu0
  %1223 = vmatprep.mubr.bf16.mxu0 0
  %1224 = vmatmul.mubr.bf16.gmra.mrb[0].mxu0 %v660
  %v1225 = vpop.f32.mrb[0].mxu0
  %v1226 = vadd.f32 0.0, %v1225
  %v1227 = vpop.f32.mrb[0].mxu0
  %v1228 = vpop.f32.mrb[0].mxu0
  %v1229 = vadd.f32 0.0, %v1228
  %v1230 = vpop.f32.mrb[0].mxu0
  %1231 = vmatprep.mubr.bf16.mxu0 0
  %1232 = vmatmul.mubr.bf16.gmra.mrb[0].mxu0 %v661
  %v1233 = vpop.f32.mrb[0].mxu0
  %v1234 = vadd.f32 0.0, %v1233
  %v1235 = vpop.f32.mrb[0].mxu0
  %v1236 = vpop.f32.mrb[0].mxu0
  %v1237 = vadd.f32 0.0, %v1236
  %v1238 = vpop.f32.mrb[0].mxu0
  %1239 = vmatprep.mubr.bf16.mxu0 0
  %1240 = vmatmul.mubr.bf16.gmra.mrb[0].mxu0 %v662
  %v1241 = vpop.f32.mrb[0].mxu0
  %v1242 = vadd.f32 0.0, %v1241
  %v1243 = vpop.f32.mrb[0].mxu0
  %v1244 = vpop.f32.mrb[0].mxu0
  %v1245 = vadd.f32 0.0, %v1244
  %v1246 = vpop.f32.mrb[0].mxu0
  %1247 = vmatprep.mubr.bf16.mxu0 0
  %1248 = vmatmul.mubr.bf16.gmra.mrb[0].mxu0 %v663
  %v1249 = vpop.f32.mrb[0].mxu0
  %v1250 = vadd.f32 0.0, %v1249
  %v1251 = vpop.f32.mrb[0].mxu0
  %v1252 = vpop.f32.mrb[0].mxu0
  %v1253 = vadd.f32 0.0, %v1252
  %v1254 = vpop.f32.mrb[0].mxu0
  %1255 = vmatprep.mubr.bf16.mxu0 0
  %1256 = vmatmul.mubr.bf16.gmra.mrb[0].mxu0 %v664
  %v1257 = vpop.f32.mrb[0].mxu0
  %v1258 = vadd.f32 0.0, %v1257
  %v1259 = vpop.f32.mrb[0].mxu0
  %v1260 = vpop.f32.mrb[0].mxu0
  %v1261 = vadd.f32 0.0, %v1260
  %v1262 = vpop.f32.mrb[0].mxu0
  %1263 = vmatprep.mubr.bf16.mxu0 0
  %1264 = vmatmul.mubr.bf16.gmra.mrb[0].mxu0 %v665
  %v1265 = vpop.f32.mrb[0].mxu0
  %v1266 = vadd.f32 0.0, %v1265
  %v1267 = vpop.f32.mrb[0].mxu0
  %v1268 = vpop.f32.mrb[0].mxu0
  %v1269 = vadd.f32 0.0, %v1268
  %v1270 = vpop.f32.mrb[0].mxu0
  %1271 = vmatprep.mubr.bf16.mxu0 0
  %1272 = vmatmul.mubr.bf16.gmra.mrb[0].mxu0 %v666
  %v1273 = vpop.f32.mrb[0].mxu0
  %v1274 = vadd.f32 0.0, %v1273
  %v1275 = vpop.f32.mrb[0].mxu0
  %v1276 = vpop.f32.mrb[0].mxu0
  %v1277 = vadd.f32 0.0, %v1276
  %v1278 = vpop.f32.mrb[0].mxu0
  %1279 = vmatprep.mubr.bf16.mxu0 0
  %1280 = vmatmul.mubr.bf16.gmra.mrb[0].mxu0 %v667
  %v1281 = vpop.f32.mrb[0].mxu0
  %v1282 = vadd.f32 0.0, %v1281
  %v1283 = vpop.f32.mrb[0].mxu0
  %v1284 = vpop.f32.mrb[0].mxu0
  %v1285 = vadd.f32 0.0, %v1284
  %v1286 = vpop.f32.mrb[0].mxu0
  %1287 = vmatprep.mubr.bf16.mxu0 0
  %1288 = vmatmul.mubr.bf16.gmra.mrb[0].mxu0 %v668
  %v1289 = vpop.f32.mrb[0].mxu0
  %v1290 = vadd.f32 0.0, %v1289
  %v1291 = vpop.f32.mrb[0].mxu0
  %v1292 = vpop.f32.mrb[0].mxu0
  %v1293 = vadd.f32 0.0, %v1292
  %v1294 = vpop.f32.mrb[0].mxu0
  %1295 = vmatprep.mubr.bf16.mxu0 0
  %1296 = vmatmul.mubr.bf16.gmra.mrb[0].mxu0 %v669
  %v1297 = vpop.f32.mrb[0].mxu0
  %v1298 = vadd.f32 0.0, %v1297
  %v1299 = vpop.f32.mrb[0].mxu0
  %v1300 = vpop.f32.mrb[0].mxu0
  %v1301 = vadd.f32 0.0, %v1300
  %v1302 = vpop.f32.mrb[0].mxu0
  %1303 = vmatprep.mubr.bf16.mxu0 0
  %1304 = vmatmul.mubr.bf16.gmra.mrb[0].mxu0 %v670
  %v1305 = vpop.f32.mrb[0].mxu0
  %v1306 = vadd.f32 0.0, %v1305
  %v1307 = vpop.f32.mrb[0].mxu0
  %v1308 = vpop.f32.mrb[0].mxu0
  %v1309 = vadd.f32 0.0, %v1308
  %v1310 = vpop.f32.mrb[0].mxu0
  %1311 = vmatprep.mubr.bf16.mxu0 0
  %1312 = vmatmul.mubr.bf16.gmra.mrb[0].mxu0 %v671
  %v1313 = vpop.f32.mrb[0].mxu0
  %v1314 = vadd.f32 0.0, %v1313
  %v1315 = vpop.f32.mrb[0].mxu0
  %v1316 = vpop.f32.mrb[0].mxu0
  %v1317 = vadd.f32 0.0, %v1316
  %v1318 = vpop.f32.mrb[0].mxu0
  %1319 = vmatprep.mubr.bf16.mxu0 0
  %1320 = vmatmul.mubr.bf16.gmra.mrb[0].mxu0 %v672
  %v1321 = vpop.f32.mrb[0].mxu0
  %v1322 = vadd.f32 0.0, %v1321
  %v1323 = vpop.f32.mrb[0].mxu0
  %v1324 = vpop.f32.mrb[0].mxu0
  %v1325 = vadd.f32 0.0, %v1324
  %v1326 = vpop.f32.mrb[0].mxu0
  %1327 = vmatprep.mubr.bf16.mxu0 0
  %1328 = vmatmul.mubr.bf16.gmra.mrb[0].mxu0 %v673
  %v1329 = vpop.f32.mrb[0].mxu0
  %v1330 = vadd.f32 0.0, %v1329
  %v1331 = vpop.f32.mrb[0].mxu0
  %v1332 = vpop.f32.mrb[0].mxu0
  %v1333 = vadd.f32 0.0, %v1332
  %v1334 = vpop.f32.mrb[0].mxu0
  %1335 = vmatprep.mubr.bf16.mxu0 0
  %1336 = vmatmul.mubr.bf16.gmra.mrb[0].mxu0 %v674
  %v1337 = vpop.f32.mrb[0].mxu0
  %v1338 = vadd.f32 0.0, %v1337
  %v1339 = vpop.f32.mrb[0].mxu0
  %v1340 = vpop.f32.mrb[0].mxu0
  %v1341 = vadd.f32 0.0, %v1340
  %v1342 = vpop.f32.mrb[0].mxu0
  %1343 = vmatprep.mubr.bf16.mxu0 0
  %1344 = vmatmul.mubr.bf16.gmra.mrb[0].mxu0 %v675
  %v1345 = vpop.f32.mrb[0].mxu0
  %v1346 = vadd.f32 0.0, %v1345
  %v1347 = vpop.f32.mrb[0].mxu0
  %v1348 = vpop.f32.mrb[0].mxu0
  %v1349 = vadd.f32 0.0, %v1348
  %v1350 = vpop.f32.mrb[0].mxu0
  %1351 = vmatprep.mubr.bf16.mxu0 0
  %1352 = vmatmul.mubr.bf16.gmra.mrb[0].mxu0 %v676
  %v1353 = vpop.f32.mrb[0].mxu0
  %v1354 = vadd.f32 0.0, %v1353
  %v1355 = vpop.f32.mrb[0].mxu0
  %v1356 = vpop.f32.mrb[0].mxu0
  %v1357 = vadd.f32 0.0, %v1356
  %v1358 = vpop.f32.mrb[0].mxu0
  %1359 = vmatprep.mubr.bf16.mxu0 0
  %1360 = vmatmul.mubr.bf16.gmra.mrb[0].mxu0 %v677
  %v1361 = vpop.f32.mrb[0].mxu0
  %v1362 = vadd.f32 0.0, %v1361
  %v1363 = vpop.f32.mrb[0].mxu0
  %v1364 = vpop.f32.mrb[0].mxu0
  %v1365 = vadd.f32 0.0, %v1364
  %v1366 = vpop.f32.mrb[0].mxu0
  %1367 = vmatprep.mubr.bf16.mxu0 0
  %1368 = vmatmul.mubr.bf16.gmra.mrb[0].mxu0 %v678
  %v1369 = vpop.f32.mrb[0].mxu0
  %v1370 = vadd.f32 0.0, %v1369
  %v1371 = vpop.f32.mrb[0].mxu0
  %v1372 = vpop.f32.mrb[0].mxu0
  %v1373 = vadd.f32 0.0, %v1372
  %v1374 = vpop.f32.mrb[0].mxu0
  %1375 = vmatprep.mubr.bf16.mxu0 0
  %1376 = vmatmul.mubr.bf16.gmra.mrb[0].mxu0 %v679
  %v1377 = vpop.f32.mrb[0].mxu0
  %v1378 = vadd.f32 0.0, %v1377
  %v1379 = vpop.f32.mrb[0].mxu0
  %v1380 = vpop.f32.mrb[0].mxu0
  %v1381 = vadd.f32 0.0, %v1380
  %v1382 = vpop.f32.mrb[0].mxu0
  %1383 = vmatprep.mubr.bf16.mxu0 0
  %1384 = vmatmul.mubr.bf16.gmra.mrb[0].mxu0 %v680
  %v1385 = vpop.f32.mrb[0].mxu0
  %v1386 = vadd.f32 0.0, %v1385
  %v1387 = vpop.f32.mrb[0].mxu0
  %v1388 = vpop.f32.mrb[0].mxu0
  %v1389 = vadd.f32 0.0, %v1388
  %v1390 = vpop.f32.mrb[0].mxu0
  %1391 = vmatprep.mubr.bf16.mxu0 0
  %1392 = vmatmul.mubr.bf16.gmra.mrb[0].mxu0 %v681
  %v1393 = vpop.f32.mrb[0].mxu0
  %v1394 = vadd.f32 0.0, %v1393
  %v1395 = vpop.f32.mrb[0].mxu0
  %v1396 = vpop.f32.mrb[0].mxu0
  %v1397 = vadd.f32 0.0, %v1396
  %v1398 = vpop.f32.mrb[0].mxu0
  %1399 = vmatprep.mubr.bf16.mxu0 0
  %1400 = vmatmul.mubr.bf16.gmra.mrb[0].mxu0 %v682
  %v1401 = vpop.f32.mrb[0].mxu0
  %v1402 = vadd.f32 0.0, %v1401
  %v1403 = vpop.f32.mrb[0].mxu0
  %v1404 = vpop.f32.mrb[0].mxu0
  %v1405 = vadd.f32 0.0, %v1404
  %v1406 = vpop.f32.mrb[0].mxu0
  %1407 = vmatprep.mubr.bf16.mxu0 0
  %1408 = vmatmul.mubr.bf16.gmra.mrb[0].mxu0 %v683
  %v1409 = vpop.f32.mrb[0].mxu0
  %v1410 = vadd.f32 0.0, %v1409
  %v1411 = vpop.f32.mrb[0].mxu0
  %v1412 = vpop.f32.mrb[0].mxu0
  %v1413 = vadd.f32 0.0, %v1412
  %v1414 = vpop.f32.mrb[0].mxu0
  %1415 = vmatprep.mubr.bf16.mxu0 0
  %1416 = vmatmul.mubr.bf16.gmra.mrb[0].mxu0 %v684
  %v1417 = vpop.f32.mrb[0].mxu0
  %v1418 = vadd.f32 0.0, %v1417
  %v1419 = vpop.f32.mrb[0].mxu0
  %v1420 = vpop.f32.mrb[0].mxu0
  %v1421 = vadd.f32 0.0, %v1420
  %v1422 = vpop.f32.mrb[0].mxu0
  %1423 = vmatprep.mubr.bf16.mxu0 0
  %1424 = vmatmul.mubr.bf16.gmra.mrb[0].mxu0 %v685
  %v1425 = vpop.f32.mrb[0].mxu0
  %v1426 = vadd.f32 0.0, %v1425
  %v1427 = vpop.f32.mrb[0].mxu0
  %v1428 = vpop.f32.mrb[0].mxu0
  %v1429 = vadd.f32 0.0, %v1428
  %v1430 = vpop.f32.mrb[0].mxu0
  %1431 = vmatprep.mubr.bf16.mxu0 0
  %1432 = vmatmul.mubr.bf16.gmra.mrb[0].mxu0 %v686
  %v1433 = vpop.f32.mrb[0].mxu0
  %v1434 = vadd.f32 0.0, %v1433
  %v1435 = vpop.f32.mrb[0].mxu0
  %v1436 = vpop.f32.mrb[0].mxu0
  %v1437 = vadd.f32 0.0, %v1436
  %v1438 = vpop.f32.mrb[0].mxu0
  %1439 = vmatprep.mubr.bf16.mxu0 0
  %1440 = vmatmul.mubr.bf16.gmra.mrb[0].mxu0 %v687
  %v1441 = vpop.f32.mrb[0].mxu0
  %v1442 = vadd.f32 0.0, %v1441
  %v1443 = vpop.f32.mrb[0].mxu0
  %v1444 = vpop.f32.mrb[0].mxu0
  %v1445 = vadd.f32 0.0, %v1444
  %v1446 = vpop.f32.mrb[0].mxu0
  %1447 = vmatprep.mubr.bf16.mxu0 0
  %1448 = vmatmul.mubr.bf16.gmra.mrb[0].mxu0 %v688
  %v1449 = vpop.f32.mrb[0].mxu0
  %v1450 = vadd.f32 0.0, %v1449
  %v1451 = vpop.f32.mrb[0].mxu0
  %v1452 = vpop.f32.mrb[0].mxu0
  %v1453 = vadd.f32 0.0, %v1452
  %v1454 = vpop.f32.mrb[0].mxu0
  %1455 = vmatprep.mubr.bf16.mxu0 0
  %1456 = vmatmul.mubr.bf16.gmra.mrb[0].mxu0 %v689
  %v1457 = vpop.f32.mrb[0].mxu0
  %v1458 = vadd.f32 0.0, %v1457
  %v1459 = vpop.f32.mrb[0].mxu0
  %v1460 = vpop.f32.mrb[0].mxu0
  %v1461 = vadd.f32 0.0, %v1460
  %v1462 = vpop.f32.mrb[0].mxu0
  %1463 = vmatprep.mubr.bf16.mxu0 0
  %1464 = vmatmul.mubr.bf16.gmra.mrb[0].mxu0 %v690
  %v1465 = vpop.f32.mrb[0].mxu0
  %v1466 = vadd.f32 0.0, %v1465
  %v1467 = vpop.f32.mrb[0].mxu0
  %v1468 = vpop.f32.mrb[0].mxu0
  %v1469 = vadd.f32 0.0, %v1468
  %v1470 = vpop.f32.mrb[0].mxu0
  %1471 = vmatprep.mubr.bf16.mxu0 0
  %1472 = vmatmul.mubr.bf16.gmra.mrb[0].mxu0 %v691
  %v1473 = vpop.f32.mrb[0].mxu0
  %v1474 = vadd.f32 0.0, %v1473
  %v1475 = vpop.f32.mrb[0].mxu0
  %v1476 = vpop.f32.mrb[0].mxu0
  %v1477 = vadd.f32 0.0, %v1476
  %v1478 = vpop.f32.mrb[0].mxu0
  %1479 = vmatprep.mubr.bf16.mxu0 0
  %1480 = vmatmul.mubr.bf16.gmra.mrb[0].mxu0 %v692
  %v1481 = vpop.f32.mrb[0].mxu0
  %v1482 = vadd.f32 0.0, %v1481
  %v1483 = vpop.f32.mrb[0].mxu0
  %v1484 = vpop.f32.mrb[0].mxu0
  %v1485 = vadd.f32 0.0, %v1484
  %v1486 = vpop.f32.mrb[0].mxu0
  %1487 = vmatprep.mubr.bf16.mxu0 0
  %1488 = vmatmul.mubr.bf16.gmra.mrb[0].mxu0 %v693
  %v1489 = vpop.f32.mrb[0].mxu0
  %v1490 = vadd.f32 0.0, %v1489
  %v1491 = vpop.f32.mrb[0].mxu0
  %v1492 = vpop.f32.mrb[0].mxu0
  %v1493 = vadd.f32 0.0, %v1492
  %v1494 = vpop.f32.mrb[0].mxu0
  %1495 = vmatprep.mubr.bf16.mxu0 0
  %1496 = vmatmul.mubr.bf16.gmra.mrb[0].mxu0 %v694
  %v1497 = vpop.f32.mrb[0].mxu0
  %v1498 = vadd.f32 0.0, %v1497
  %v1499 = vpop.f32.mrb[0].mxu0
  %v1500 = vpop.f32.mrb[0].mxu0
  %v1501 = vadd.f32 0.0, %v1500
  %v1502 = vpop.f32.mrb[0].mxu0
  %1503 = vmatprep.mubr.bf16.mxu0 0
  %1504 = vmatmul.mubr.bf16.gmra.mrb[0].mxu0 %v695
  %v1505 = vpop.f32.mrb[0].mxu0
  %v1506 = vadd.f32 0.0, %v1505
  %v1507 = vpop.f32.mrb[0].mxu0
  %v1508 = vpop.f32.mrb[0].mxu0
  %v1509 = vadd.f32 0.0, %v1508
  %v1510 = vpop.f32.mrb[0].mxu0
  %1511 = vmatprep.mubr.bf16.mxu0 0
  %1512 = vmatmul.mubr.bf16.gmra.mrb[0].mxu0 %v696
  %v1513 = vpop.f32.mrb[0].mxu0
  %v1514 = vadd.f32 0.0, %v1513
  %v1515 = vpop.f32.mrb[0].mxu0
  %v1516 = vpop.f32.mrb[0].mxu0
  %v1517 = vadd.f32 0.0, %v1516
  %v1518 = vpop.f32.mrb[0].mxu0
  %1519 = vmatprep.mubr.bf16.mxu0 0
  %1520 = vmatmul.mubr.bf16.gmra.mrb[0].mxu0 %v697
  %v1521 = vpop.f32.mrb[0].mxu0
  %v1522 = vadd.f32 0.0, %v1521
  %v1523 = vpop.f32.mrb[0].mxu0
  %v1524 = vpop.f32.mrb[0].mxu0
  %v1525 = vadd.f32 0.0, %v1524
  %v1526 = vpop.f32.mrb[0].mxu0
  %1527 = vmatprep.mubr.bf16.mxu0 0
  %1528 = vmatmul.mubr.bf16.gmra.mrb[0].mxu0 %v698
  %v1529 = vpop.f32.mrb[0].mxu0
  %v1530 = vadd.f32 0.0, %v1529
  %v1531 = vpop.f32.mrb[0].mxu0
  %v1532 = vpop.f32.mrb[0].mxu0
  %v1533 = vadd.f32 0.0, %v1532
  %v1534 = vpop.f32.mrb[0].mxu0
  %1535 = vmatprep.mubr.bf16.mxu0 0
  %1536 = vmatmul.mubr.bf16.gmra.mrb[0].mxu0 %v699
  %v1537 = vpop.f32.mrb[0].mxu0
  %v1538 = vadd.f32 0.0, %v1537
  %v1539 = vpop.f32.mrb[0].mxu0
  %v1540 = vpop.f32.mrb[0].mxu0
  %v1541 = vadd.f32 0.0, %v1540
  %v1542 = vpop.f32.mrb[0].mxu0
  %1543 = vmatprep.mubr.bf16.mxu0 0
  %1544 = vmatmul.mubr.bf16.gmra.mrb[0].mxu0 %v700
  %v1545 = vpop.f32.mrb[0].mxu0
  %v1546 = vadd.f32 0.0, %v1545
  %v1547 = vpop.f32.mrb[0].mxu0
  %v1548 = vpop.f32.mrb[0].mxu0
  %v1549 = vadd.f32 0.0, %v1548
  %v1550 = vpop.f32.mrb[0].mxu0
  %1551 = vmatprep.mubr.bf16.mxu0 0
  %1552 = vmatmul.mubr.bf16.gmra.mrb[0].mxu0 %v701
  %v1553 = vpop.f32.mrb[0].mxu0
  %v1554 = vadd.f32 0.0, %v1553
  %v1555 = vpop.f32.mrb[0].mxu0
  %v1556 = vpop.f32.mrb[0].mxu0
  %v1557 = vadd.f32 0.0, %v1556
  %v1558 = vpop.f32.mrb[0].mxu0
  %1559 = vmatprep.mubr.bf16.mxu0 0
  %1560 = vmatmul.mubr.bf16.gmra.mrb[0].mxu0 %v702
  %v1561 = vpop.f32.mrb[0].mxu0
  %v1562 = vadd.f32 0.0, %v1561
  %v1563 = vpop.f32.mrb[0].mxu0
  %v1564 = vpop.f32.mrb[0].mxu0
  %v1565 = vadd.f32 0.0, %v1564
  %v1566 = vpop.f32.mrb[0].mxu0
  %1567 = vmatprep.mubr.bf16.mxu0 0
  %1568 = vmatmul.mubr.bf16.gmra.mrb[0].mxu0 %v703
  %v1569 = vpop.f32.mrb[0].mxu0
  %v1570 = vadd.f32 0.0, %v1569
  %v1571 = vpop.f32.mrb[0].mxu0
  %v1572 = vpop.f32.mrb[0].mxu0
  %v1573 = vadd.f32 0.0, %v1572
  %v1574 = vpop.f32.mrb[0].mxu0
  %1575 = vmatprep.mubr.bf16.mxu0 0
  %1576 = vmatmul.mubr.bf16.gmra.mrb[0].mxu0 %v704
  %v1577 = vpop.f32.mrb[0].mxu0
  %v1578 = vadd.f32 0.0, %v1577
  %v1579 = vpop.f32.mrb[0].mxu0
  %v1580 = vpop.f32.mrb[0].mxu0
  %v1581 = vadd.f32 0.0, %v1580
  %v1582 = vpop.f32.mrb[0].mxu0
  %1583 = vmatprep.mubr.bf16.mxu0 0
  %1584 = vmatmul.mubr.bf16.gmra.mrb[0].mxu0 %v705
  %v1585 = vpop.f32.mrb[0].mxu0
  %v1586 = vadd.f32 0.0, %v1585
  %v1587 = vpop.f32.mrb[0].mxu0
  %v1588 = vpop.f32.mrb[0].mxu0
  %v1589 = vadd.f32 0.0, %v1588
  %v1590 = vpop.f32.mrb[0].mxu0
  %1591 = vmatprep.mubr.bf16.mxu0 0
  %1592 = vmatmul.mubr.bf16.gmra.mrb[0].mxu0 %v706
  %v1593 = vpop.f32.mrb[0].mxu0
  %v1594 = vadd.f32 0.0, %v1593
  %v1595 = vpop.f32.mrb[0].mxu0
  %v1596 = vpop.f32.mrb[0].mxu0
  %v1597 = vadd.f32 0.0, %v1596
  %v1598 = vpop.f32.mrb[0].mxu0
  %1599 = vmatprep.mubr.bf16.mxu0 0
  %1600 = vmatmul.mubr.bf16.gmra.mrb[0].mxu0 %v707
  %v1601 = vpop.f32.mrb[0].mxu0
  %v1602 = vadd.f32 0.0, %v1601
  %v1603 = vpop.f32.mrb[0].mxu0
  %v1604 = vpop.f32.mrb[0].mxu0
  %v1605 = vadd.f32 0.0, %v1604
  %v1606 = vpop.f32.mrb[0].mxu0
  %1607 = vmatprep.mubr.bf16.mxu0 0
  %1608 = vmatmul.mubr.bf16.gmra.mrb[0].mxu0 %v708
  %v1609 = vpop.f32.mrb[0].mxu0
  %v1610 = vadd.f32 0.0, %v1609
  %v1611 = vpop.f32.mrb[0].mxu0
  %v1612 = vpop.f32.mrb[0].mxu0
  %v1613 = vadd.f32 0.0, %v1612
  %v1614 = vpop.f32.mrb[0].mxu0
  %1615 = vmatprep.mubr.bf16.mxu0 0
  %1616 = vmatmul.mubr.bf16.gmra.mrb[0].mxu0 %v709
  %v1617 = vpop.f32.mrb[0].mxu0
  %v1618 = vadd.f32 0.0, %v1617
  %v1619 = vpop.f32.mrb[0].mxu0
  %v1620 = vpop.f32.mrb[0].mxu0
  %v1621 = vadd.f32 0.0, %v1620
  %v1622 = vpop.f32.mrb[0].mxu0
  %1623 = vmatprep.mubr.bf16.mxu0 0
  %1624 = vmatmul.mubr.bf16.gmra.mrb[0].mxu0 %v710
  %v1625 = vpop.f32.mrb[0].mxu0
  %v1626 = vadd.f32 0.0, %v1625
  %v1627 = vpop.f32.mrb[0].mxu0
  %v1628 = vpop.f32.mrb[0].mxu0
  %v1629 = vadd.f32 0.0, %v1628
  %v1630 = vpop.f32.mrb[0].mxu0
  %1631 = vmatprep.mubr.bf16.mxu0 0
  %1632 = vmatmul.mubr.bf16.gmra.mrb[0].mxu0 %v711
  %v1633 = vpop.f32.mrb[0].mxu0
  %v1634 = vadd.f32 0.0, %v1633
  %v1635 = vpop.f32.mrb[0].mxu0
  %v1636 = vpop.f32.mrb[0].mxu0
  %v1637 = vadd.f32 0.0, %v1636
  %v1638 = vpop.f32.mrb[0].mxu0
  %1639 = vmatprep.mubr.bf16.mxu0 0
  %1640 = vmatmul.mubr.bf16.gmra.mrb[0].mxu0 %v712
  %v1641 = vpop.f32.mrb[0].mxu0
  %v1642 = vadd.f32 0.0, %v1641
  %v1643 = vpop.f32.mrb[0].mxu0
  %v1644 = vpop.f32.mrb[0].mxu0
  %v1645 = vadd.f32 0.0, %v1644
  %v1646 = vpop.f32.mrb[0].mxu0
  %1647 = vmatprep.mubr.bf16.mxu0 0
  %1648 = vmatmul.mubr.bf16.gmra.mrb[0].mxu0 %v713
  %v1649 = vpop.f32.mrb[0].mxu0
  %v1650 = vadd.f32 0.0, %v1649
  %v1651 = vpop.f32.mrb[0].mxu0
  %v1652 = vpop.f32.mrb[0].mxu0
  %v1653 = vadd.f32 0.0, %v1652
  %v1654 = vpop.f32.mrb[0].mxu0
  %1655 = vmatprep.mubr.bf16.mxu0 0
  %1656 = vmatmul.mubr.bf16.gmra.mrb[0].mxu0 %v714
  %v1657 = vpop.f32.mrb[0].mxu0
  %v1658 = vadd.f32 0.0, %v1657
  %v1659 = vpop.f32.mrb[0].mxu0
  %v1660 = vpop.f32.mrb[0].mxu0
  %v1661 = vadd.f32 0.0, %v1660
  %v1662 = vpop.f32.mrb[0].mxu0
  %1663 = vmatprep.mubr.bf16.mxu0 0
  %1664 = vmatmul.mubr.bf16.gmra.mrb[0].mxu0 %v715
  %v1665 = vpop.f32.mrb[0].mxu0
  %v1666 = vadd.f32 0.0, %v1665
  %v1667 = vpop.f32.mrb[0].mxu0
  %v1668 = vpop.f32.mrb[0].mxu0
  %v1669 = vadd.f32 0.0, %v1668
  %v1670 = vpop.f32.mrb[0].mxu0
  %1671 = vmatprep.mubr.bf16.mxu0 0
  %1672 = vmatmul.mubr.bf16.gmra.mrb[0].mxu0 %v716
  %v1673 = vpop.f32.mrb[0].mxu0
  %v1674 = vadd.f32 0.0, %v1673
  %v1675 = vpop.f32.mrb[0].mxu0
  %v1676 = vpop.f32.mrb[0].mxu0
  %v1677 = vadd.f32 0.0, %v1676
  %v1678 = vpop.f32.mrb[0].mxu0
  %1679 = vdwg.mxu0
  %v1680 = vmax.f32 %v898, %v1093
  %v1681 = vmax.f32 %v1680, %v1290
  %v1682 = vmax.f32 %v1681, %v1485
  %v1683 = vmax.f32 %v901, %v1098
  %v1684 = vmax.f32 %v1683, %v1293
  %v1685 = vmax.f32 %v1684, %v1490
  %v1686 = vmax.f32 %v906, %v1101
  %v1687 = vmax.f32 %v1686, %v1298
  %v1688 = vmax.f32 %v1687, %v1493
  %v1689 = vmax.f32 %v909, %v1106
  %v1690 = vmax.f32 %v1689, %v1301
  %v1691 = vmax.f32 %v1690, %v1498
  %v1692 = vmax.f32 %v914, %v1109
  %v1693 = vmax.f32 %v1692, %v1306
  %v1694 = vmax.f32 %v1693, %v1501
  %v1695 = vmax.f32 %v917, %v1114
  %v1696 = vmax.f32 %v1695, %v1309
  %v1697 = vmax.f32 %v1696, %v1506
  %v1698 = vmax.f32 %v922, %v1117
  %v1699 = vmax.f32 %v1698, %v1314
  %v1700 = vmax.f32 %v1699, %v1509
  %v1701 = vmax.f32 %v925, %v1122
  %v1702 = vmax.f32 %v1701, %v1317
  %v1703 = vmax.f32 %v1702, %v1514
  %v1704 = vmax.f32 %v930, %v1125
  %v1705 = vmax.f32 %v1704, %v1322
  %v1706 = vmax.f32 %v1705, %v1517
  %v1707 = vmax.f32 %v933, %v1130
  %v1708 = vmax.f32 %v1707, %v1325
  %v1709 = vmax.f32 %v1708, %v1522
  %v1710 = vmax.f32 %v938, %v1133
  %v1711 = vmax.f32 %v1710, %v1330
  %v1712 = vmax.f32 %v1711, %v1525
  %v1713 = vmax.f32 %v941, %v1138
  %v1714 = vmax.f32 %v1713, %v1333
  %v1715 = vmax.f32 %v1714, %v1530
  %v1716 = vmax.f32 %v946, %v1141
  %v1717 = vmax.f32 %v1716, %v1338
  %v1718 = vmax.f32 %v1717, %v1533
  %v1719 = vmax.f32 %v949, %v1146
  %v1720 = vmax.f32 %v1719, %v1341
  %v1721 = vmax.f32 %v1720, %v1538
  %v1722 = vmax.f32 %v954, %v1149
  %v1723 = vmax.f32 %v1722, %v1346
  %v1724 = vmax.f32 %v1723, %v1541
  %v1725 = vmax.f32 %v957, %v1154
  %v1726 = vmax.f32 %v1725, %v1349
  %v1727 = vmax.f32 %v1726, %v1546
  %v1728 = vmax.f32 %v962, %v1157
  %v1729 = vmax.f32 %v1728, %v1354
  %v1730 = vmax.f32 %v1729, %v1549
  %v1731 = vmax.f32 %v965, %v1162
  %v1732 = vmax.f32 %v1731, %v1357
  %v1733 = vmax.f32 %v1732, %v1554
  %v1734 = vmax.f32 %v970, %v1165
  %v1735 = vmax.f32 %v1734, %v1362
  %v1736 = vmax.f32 %v1735, %v1557
  %v1737 = vmax.f32 %v973, %v1170
  %v1738 = vmax.f32 %v1737, %v1365
  %v1739 = vmax.f32 %v1738, %v1562
  %v1740 = vmax.f32 %v978, %v1173
  %v1741 = vmax.f32 %v1740, %v1370
  %v1742 = vmax.f32 %v1741, %v1565
  %v1743 = vmax.f32 %v981, %v1178
  %v1744 = vmax.f32 %v1743, %v1373
  %v1745 = vmax.f32 %v1744, %v1570
  %v1746 = vmax.f32 %v986, %v1181
  %v1747 = vmax.f32 %v1746, %v1378
  %v1748 = vmax.f32 %v1747, %v1573
  %v1749 = vmax.f32 %v989, %v1186
  %v1750 = vmax.f32 %v1749, %v1381
  %v1751 = vmax.f32 %v1750, %v1578
  %v1752 = vmax.f32 %v994, %v1189
  %v1753 = vmax.f32 %v1752, %v1386
  %v1754 = vmax.f32 %v1753, %v1581
  %v1755 = vmax.f32 %v997, %v1194
  %v1756 = vmax.f32 %v1755, %v1389
  %v1757 = vmax.f32 %v1756, %v1586
  %v1758 = vmax.f32 %v1002, %v1197
  %v1759 = vmax.f32 %v1758, %v1394
  %v1760 = vmax.f32 %v1759, %v1589
  %v1761 = vmax.f32 %v1005, %v1202
  %v1762 = vmax.f32 %v1761, %v1397
  %v1763 = vmax.f32 %v1762, %v1594
  %v1764 = vmax.f32 %v1010, %v1205
  %v1765 = vmax.f32 %v1764, %v1402
  %v1766 = vmax.f32 %v1765, %v1597
  %v1767 = vmax.f32 %v1013, %v1210
  %v1768 = vmax.f32 %v1767, %v1405
  %v1769 = vmax.f32 %v1768, %v1602
  %v1770 = vmax.f32 %v1018, %v1213
  %v1771 = vmax.f32 %v1770, %v1410
  %v1772 = vmax.f32 %v1771, %v1605
  %v1773 = vmax.f32 %v1021, %v1218
  %v1774 = vmax.f32 %v1773, %v1413
  %v1775 = vmax.f32 %v1774, %v1610
  %v1776 = vmax.f32 %v1026, %v1221
  %v1777 = vmax.f32 %v1776, %v1418
  %v1778 = vmax.f32 %v1777, %v1613
  %v1779 = vmax.f32 %v1029, %v1226
  %v1780 = vmax.f32 %v1779, %v1421
  %v1781 = vmax.f32 %v1780, %v1618
  %v1782 = vmax.f32 %v1034, %v1229
  %v1783 = vmax.f32 %v1782, %v1426
  %v1784 = vmax.f32 %v1783, %v1621
  %v1785 = vmax.f32 %v1037, %v1234
  %v1786 = vmax.f32 %v1785, %v1429
  %v1787 = vmax.f32 %v1786, %v1626
  %v1788 = vmax.f32 %v1042, %v1237
  %v1789 = vmax.f32 %v1788, %v1434
  %v1790 = vmax.f32 %v1789, %v1629
  %v1791 = vmax.f32 %v1045, %v1242
  %v1792 = vmax.f32 %v1791, %v1437
  %v1793 = vmax.f32 %v1792, %v1634
  %v1794 = vmax.f32 %v1050, %v1245
  %v1795 = vmax.f32 %v1794, %v1442
  %v1796 = vmax.f32 %v1795, %v1637
  %v1797 = vmax.f32 %v1053, %v1250
  %v1798 = vmax.f32 %v1797, %v1445
  %v1799 = vmax.f32 %v1798, %v1642
  %v1800 = vmax.f32 %v1058, %v1253
  %v1801 = vmax.f32 %v1800, %v1450
  %v1802 = vmax.f32 %v1801, %v1645
  %v1803 = vmax.f32 %v1061, %v1258
  %v1804 = vmax.f32 %v1803, %v1453
  %v1805 = vmax.f32 %v1804, %v1650
  %v1806 = vmax.f32 %v1066, %v1261
  %v1807 = vmax.f32 %v1806, %v1458
  %v1808 = vmax.f32 %v1807, %v1653
  %v1809 = vmax.f32 %v1069, %v1266
  %v1810 = vmax.f32 %v1809, %v1461
  %v1811 = vmax.f32 %v1810, %v1658
  %v1812 = vmax.f32 %v1074, %v1269
  %v1813 = vmax.f32 %v1812, %v1466
  %v1814 = vmax.f32 %v1813, %v1661
  %v1815 = vmax.f32 %v1077, %v1274
  %v1816 = vmax.f32 %v1815, %v1469
  %v1817 = vmax.f32 %v1816, %v1666
  %v1818 = vmax.f32 %v1082, %v1277
  %v1819 = vmax.f32 %v1818, %v1474
  %v1820 = vmax.f32 %v1819, %v1669
  %v1821 = vmax.f32 %v1085, %v1282
  %v1822 = vmax.f32 %v1821, %v1477
  %v1823 = vmax.f32 %v1822, %v1674
  %v1824 = vmax.f32 %v1090, %v1285
  %v1825 = vmax.f32 %v1824, %v1482
  %v1826 = vmax.f32 %v1825, %v1677
  %v1827 = vld [vmem:[%s2] sm:$0x1]
  %v1829 = vlaneseq
  %v1830 = vshrl.u32 %v1829, 7
  %v1831 = vsub.s32 0, %v1830
  %v1832 = vrot.slane %v1827, %v1831
  %v1834 = vadd.f32 %v1682, %v1832
  %v1835 = vadd.f32 %v1685, %v1832
  %v1836 = vadd.f32 %v1688, %v1832
  %v1837 = vadd.f32 %v1691, %v1832
  %v1838 = vadd.f32 %v1694, %v1832
  %v1839 = vadd.f32 %v1697, %v1832
  %v1840 = vadd.f32 %v1700, %v1832
  %v1841 = vadd.f32 %v1703, %v1832
  %v1842 = vadd.f32 %v1706, %v1832
  %v1843 = vadd.f32 %v1709, %v1832
  %v1844 = vadd.f32 %v1712, %v1832
  %v1845 = vadd.f32 %v1715, %v1832
  %v1846 = vadd.f32 %v1718, %v1832
  %v1847 = vadd.f32 %v1721, %v1832
  %v1848 = vadd.f32 %v1724, %v1832
  %v1849 = vadd.f32 %v1727, %v1832
  %v1850 = vadd.f32 %v1730, %v1832
  %v1851 = vadd.f32 %v1733, %v1832
  %v1852 = vadd.f32 %v1736, %v1832
  %v1853 = vadd.f32 %v1739, %v1832
  %v1854 = vadd.f32 %v1742, %v1832
  %v1855 = vadd.f32 %v1745, %v1832
  %v1856 = vadd.f32 %v1748, %v1832
  %v1857 = vadd.f32 %v1751, %v1832
  %v1858 = vadd.f32 %v1754, %v1832
  %v1859 = vadd.f32 %v1757, %v1832
  %v1860 = vadd.f32 %v1760, %v1832
  %v1861 = vadd.f32 %v1763, %v1832
  %v1862 = vadd.f32 %v1766, %v1832
  %v1863 = vadd.f32 %v1769, %v1832
  %v1864 = vadd.f32 %v1772, %v1832
  %v1865 = vadd.f32 %v1775, %v1832
  %v1866 = vadd.f32 %v1778, %v1832
  %v1867 = vadd.f32 %v1781, %v1832
  %v1868 = vadd.f32 %v1784, %v1832
  %v1869 = vadd.f32 %v1787, %v1832
  %v1870 = vadd.f32 %v1790, %v1832
  %v1871 = vadd.f32 %v1793, %v1832
  %v1872 = vadd.f32 %v1796, %v1832
  %v1873 = vadd.f32 %v1799, %v1832
  %v1874 = vadd.f32 %v1802, %v1832
  %v1875 = vadd.f32 %v1805, %v1832
  %v1876 = vadd.f32 %v1808, %v1832
  %v1877 = vadd.f32 %v1811, %v1832
  %v1878 = vadd.f32 %v1814, %v1832
  %v1879 = vadd.f32 %v1817, %v1832
  %v1880 = vadd.f32 %v1820, %v1832
  %v1881 = vadd.f32 %v1823, %v1832
  %v1882 = vadd.f32 %v1826, %v1832
  %v1883 = vmax.f32 %v1834, 0.0
  %v1884 = vmax.f32 %v1835, 0.0
  %v1885 = vmax.f32 %v1836, 0.0
  %v1886 = vmax.f32 %v1837, 0.0
  %v1887 = vmax.f32 %v1838, 0.0
  %v1888 = vmax.f32 %v1839, 0.0
  %v1889 = vmax.f32 %v1840, 0.0
  %v1890 = vmax.f32 %v1841, 0.0
  %v1891 = vmax.f32 %v1842, 0.0
  %v1892 = vmax.f32 %v1843, 0.0
  %v1893 = vmax.f32 %v1844, 0.0
  %v1894 = vmax.f32 %v1845, 0.0
  %v1895 = vmax.f32 %v1846, 0.0
  %v1896 = vmax.f32 %v1847, 0.0
  %v1897 = vmax.f32 %v1848, 0.0
  %v1898 = vmax.f32 %v1849, 0.0
  %v1899 = vmax.f32 %v1850, 0.0
  %v1900 = vmax.f32 %v1851, 0.0
  %v1901 = vmax.f32 %v1852, 0.0
  %v1902 = vmax.f32 %v1853, 0.0
  %v1903 = vmax.f32 %v1854, 0.0
  %v1904 = vmax.f32 %v1855, 0.0
  %v1905 = vmax.f32 %v1856, 0.0
  %v1906 = vmax.f32 %v1857, 0.0
  %v1907 = vmax.f32 %v1858, 0.0
  %v1908 = vmax.f32 %v1859, 0.0
  %v1909 = vmax.f32 %v1860, 0.0
  %v1910 = vmax.f32 %v1861, 0.0
  %v1911 = vmax.f32 %v1862, 0.0
  %v1912 = vmax.f32 %v1863, 0.0
  %v1913 = vmax.f32 %v1864, 0.0
  %v1914 = vmax.f32 %v1865, 0.0
  %v1915 = vmax.f32 %v1866, 0.0
  %v1916 = vmax.f32 %v1867, 0.0
  %v1917 = vmax.f32 %v1868, 0.0
  %v1918 = vmax.f32 %v1869, 0.0
  %v1919 = vmax.f32 %v1870, 0.0
  %v1920 = vmax.f32 %v1871, 0.0
  %v1921 = vmax.f32 %v1872, 0.0
  %v1922 = vmax.f32 %v1873, 0.0
  %v1923 = vmax.f32 %v1874, 0.0
  %v1924 = vmax.f32 %v1875, 0.0
  %v1925 = vmax.f32 %v1876, 0.0
  %v1926 = vmax.f32 %v1877, 0.0
  %v1927 = vmax.f32 %v1878, 0.0
  %v1928 = vmax.f32 %v1879, 0.0
  %v1929 = vmax.f32 %v1880, 0.0
  %v1930 = vmax.f32 %v1881, 0.0
  %v1931 = vmax.f32 %v1882, 0.0
  %v1932 = vpack.c.bf16 %v1884, %v1883
  %v1933 = vpack.c.bf16 %v1886, %v1885
  %v1934 = vpack.c.bf16 %v1888, %v1887
  %v1935 = vpack.c.bf16 %v1890, %v1889
  %v1936 = vpack.c.bf16 %v1892, %v1891
  %v1937 = vpack.c.bf16 %v1894, %v1893
  %v1938 = vpack.c.bf16 %v1896, %v1895
  %v1939 = vpack.c.bf16 %v1898, %v1897
  %v1940 = vpack.c.bf16 %v1900, %v1899
  %v1941 = vpack.c.bf16 %v1902, %v1901
  %v1942 = vpack.c.bf16 %v1904, %v1903
  %v1943 = vpack.c.bf16 %v1906, %v1905
  %v1944 = vpack.c.bf16 %v1908, %v1907
  %v1945 = vpack.c.bf16 %v1910, %v1909
  %v1946 = vpack.c.bf16 %v1912, %v1911
  %v1947 = vpack.c.bf16 %v1914, %v1913
  %v1948 = vpack.c.bf16 %v1916, %v1915
  %v1949 = vpack.c.bf16 %v1918, %v1917
  %v1950 = vpack.c.bf16 %v1920, %v1919
  %v1951 = vpack.c.bf16 %v1922, %v1921
  %v1952 = vpack.c.bf16 %v1924, %v1923
  %v1953 = vpack.c.bf16 %v1926, %v1925
  %v1954 = vpack.c.bf16 %v1928, %v1927
  %v1955 = vpack.c.bf16 %v1930, %v1929
  %v1956 = vpack.c.bf16 %v1931, %v1931
  %v1982 = vunpack.c.l.b16 %v1932
  %v1983 = vunpack.c.h.b16 %v1932
  %v1984 = vunpack.c.l.b16 %v1933
  %v1985 = vunpack.c.h.b16 %v1933
  %v1986 = vunpack.c.l.b16 %v1934
  %v1987 = vunpack.c.h.b16 %v1934
  %v1988 = vunpack.c.l.b16 %v1935
  %v1989 = vunpack.c.h.b16 %v1935
  %v1990 = vunpack.c.l.b16 %v1936
  %v1991 = vunpack.c.h.b16 %v1936
  %v1992 = vunpack.c.l.b16 %v1937
  %v1993 = vunpack.c.h.b16 %v1937
  %v1994 = vunpack.c.l.b16 %v1938
  %v1995 = vunpack.c.h.b16 %v1938
  %v1996 = vunpack.c.l.b16 %v1939
  %v1997 = vunpack.c.h.b16 %v1939
  %v1998 = vunpack.c.l.b16 %v1940
  %v1999 = vunpack.c.h.b16 %v1940
  %v2000 = vunpack.c.l.b16 %v1941
  %v2001 = vunpack.c.h.b16 %v1941
  %v2002 = vunpack.c.l.b16 %v1942
  %v2003 = vunpack.c.h.b16 %v1942
  %v2004 = vunpack.c.l.b16 %v1943
  %v2005 = vunpack.c.h.b16 %v1943
  %v2006 = vunpack.c.l.b16 %v1944
  %v2007 = vunpack.c.h.b16 %v1944
  %v2008 = vunpack.c.l.b16 %v1945
  %v2009 = vunpack.c.h.b16 %v1945
  %v2010 = vunpack.c.l.b16 %v1946
  %v2011 = vunpack.c.h.b16 %v1946
  %v2012 = vunpack.c.l.b16 %v1947
  %v2013 = vunpack.c.h.b16 %v1947
  %v2014 = vunpack.c.l.b16 %v1948
  %v2015 = vunpack.c.h.b16 %v1948
  %v2016 = vunpack.c.l.b16 %v1949
  %v2017 = vunpack.c.h.b16 %v1949
  %v2018 = vunpack.c.l.b16 %v1950
  %v2019 = vunpack.c.h.b16 %v1950
  %v2020 = vunpack.c.l.b16 %v1951
  %v2021 = vunpack.c.h.b16 %v1951
  %v2022 = vunpack.c.l.b16 %v1952
  %v2023 = vunpack.c.h.b16 %v1952
  %v2024 = vunpack.c.l.b16 %v1953
  %v2025 = vunpack.c.h.b16 %v1953
  %v2026 = vunpack.c.l.b16 %v1954
  %v2027 = vunpack.c.h.b16 %v1954
  %v2028 = vunpack.c.l.b16 %v1955
  %v2029 = vunpack.c.h.b16 %v1955
  %v2030 = vunpack.c.l.b16 %v1956
  %v2031 = vpack.c.b16 %v1982, %v1982
  %v2032 = vpack.c.b16 %v1983, %v1983
  %v2033 = vpack.c.b16 %v1984, %v1984
  %v2034 = vpack.c.b16 %v1985, %v1985
  %v2035 = vpack.c.b16 %v1986, %v1986
  %v2036 = vpack.c.b16 %v1987, %v1987
  %v2037 = vpack.c.b16 %v1988, %v1988
  %v2038 = vpack.c.b16 %v1989, %v1989
  %v2039 = vpack.c.b16 %v1990, %v1990
  %v2040 = vpack.c.b16 %v1991, %v1991
  %v2041 = vpack.c.b16 %v1992, %v1992
  %v2042 = vpack.c.b16 %v1993, %v1993
  %v2043 = vpack.c.b16 %v1994, %v1994
  %v2044 = vpack.c.b16 %v1995, %v1995
  %v2045 = vpack.c.b16 %v1996, %v1996
  %v2046 = vpack.c.b16 %v1997, %v1997
  %v2047 = vpack.c.b16 %v1998, %v1998
  %v2048 = vpack.c.b16 %v1999, %v1999
  %v2049 = vpack.c.b16 %v2000, %v2000
  %v2050 = vpack.c.b16 %v2001, %v2001
  %v2051 = vpack.c.b16 %v2002, %v2002
  %v2052 = vpack.c.b16 %v2003, %v2003
  %v2053 = vpack.c.b16 %v2004, %v2004
  %v2054 = vpack.c.b16 %v2005, %v2005
  %v2055 = vpack.c.b16 %v2006, %v2006
  %v2056 = vpack.c.b16 %v2007, %v2007
  %v2057 = vpack.c.b16 %v2008, %v2008
  %v2058 = vpack.c.b16 %v2009, %v2009
  %v2059 = vpack.c.b16 %v2010, %v2010
  %v2060 = vpack.c.b16 %v2011, %v2011
  %v2061 = vpack.c.b16 %v2012, %v2012
  %v2062 = vpack.c.b16 %v2013, %v2013
  %v2063 = vpack.c.b16 %v2014, %v2014
  %v2064 = vpack.c.b16 %v2015, %v2015
  %v2065 = vpack.c.b16 %v2016, %v2016
  %v2066 = vpack.c.b16 %v2017, %v2017
  %v2067 = vpack.c.b16 %v2018, %v2018
  %v2068 = vpack.c.b16 %v2019, %v2019
  %v2069 = vpack.c.b16 %v2020, %v2020
  %v2070 = vpack.c.b16 %v2021, %v2021
  %v2071 = vpack.c.b16 %v2022, %v2022
  %v2072 = vpack.c.b16 %v2023, %v2023
  %v2073 = vpack.c.b16 %v2024, %v2024
  %v2074 = vpack.c.b16 %v2025, %v2025
  %v2075 = vpack.c.b16 %v2026, %v2026
  %v2076 = vpack.c.b16 %v2027, %v2027
  %v2077 = vpack.c.b16 %v2028, %v2028
  %v2078 = vpack.c.b16 %v2029, %v2029
  %v2079 = vpack.c.b16 %v2030, %v2030
  %2129 = vst [vmem:[%s3] sm:$0xf] %v2031
  %2130 = vst [vmem:[%s3 + $0x4] sm:$0xf] %v2032
  %2131 = vst [vmem:[%s3 + $0x8] sm:$0xf] %v2033
  %2132 = vst [vmem:[%s3 + $0xc] sm:$0xf] %v2034
  %2133 = vst [vmem:[%s3 + $0x10] sm:$0xf] %v2035
  %2134 = vst [vmem:[%s3 + $0x14] sm:$0xf] %v2036
  %2135 = vst [vmem:[%s3 + $0x18] sm:$0xf] %v2037
  %2136 = vst [vmem:[%s3 + $0x1c] sm:$0xf] %v2038
  %2137 = vst [vmem:[%s3 + $0x20] sm:$0xf] %v2039
  %2138 = vst [vmem:[%s3 + $0x24] sm:$0xf] %v2040
  %2139 = vst [vmem:[%s3 + $0x28] sm:$0xf] %v2041
  %2140 = vst [vmem:[%s3 + $0x2c] sm:$0xf] %v2042
  %2141 = vst [vmem:[%s3 + $0x30] sm:$0xf] %v2043
  %2142 = vst [vmem:[%s3 + $0x34] sm:$0xf] %v2044
  %2143 = vst [vmem:[%s3 + $0x38] sm:$0xf] %v2045
  %2144 = vst [vmem:[%s3 + $0x3c] sm:$0xf] %v2046
  %2145 = vst [vmem:[%s3 + $0x40] sm:$0xf] %v2047
  %2146 = vst [vmem:[%s3 + $0x44] sm:$0xf] %v2048
  %2147 = vst [vmem:[%s3 + $0x48] sm:$0xf] %v2049
  %2148 = vst [vmem:[%s3 + $0x4c] sm:$0xf] %v2050
  %2149 = vst [vmem:[%s3 + $0x50] sm:$0xf] %v2051
  %2150 = vst [vmem:[%s3 + $0x54] sm:$0xf] %v2052
  %2151 = vst [vmem:[%s3 + $0x58] sm:$0xf] %v2053
  %2152 = vst [vmem:[%s3 + $0x5c] sm:$0xf] %v2054
  %2153 = vst [vmem:[%s3 + $0x60] sm:$0xf] %v2055
  %2154 = vst [vmem:[%s3 + $0x64] sm:$0xf] %v2056
  %2155 = vst [vmem:[%s3 + $0x68] sm:$0xf] %v2057
  %2156 = vst [vmem:[%s3 + $0x6c] sm:$0xf] %v2058
  %2157 = vst [vmem:[%s3 + $0x70] sm:$0xf] %v2059
  %2158 = vst [vmem:[%s3 + $0x74] sm:$0xf] %v2060
  %2159 = vst [vmem:[%s3 + $0x78] sm:$0xf] %v2061
  %2160 = vst [vmem:[%s3 + $0x7c] sm:$0xf] %v2062
  %2161 = vst [vmem:[%s3 + $0x80] sm:$0xf] %v2063
  %2162 = vst [vmem:[%s3 + $0x84] sm:$0xf] %v2064
  %2163 = vst [vmem:[%s3 + $0x88] sm:$0xf] %v2065
  %2164 = vst [vmem:[%s3 + $0x8c] sm:$0xf] %v2066
  %2165 = vst [vmem:[%s3 + $0x90] sm:$0xf] %v2067
  %2166 = vst [vmem:[%s3 + $0x94] sm:$0xf] %v2068
  %2167 = vst [vmem:[%s3 + $0x98] sm:$0xf] %v2069
  %2168 = vst [vmem:[%s3 + $0x9c] sm:$0xf] %v2070
  %2169 = vst [vmem:[%s3 + $0xa0] sm:$0xf] %v2071
  %2170 = vst [vmem:[%s3 + $0xa4] sm:$0xf] %v2072
  %2171 = vst [vmem:[%s3 + $0xa8] sm:$0xf] %v2073
  %2172 = vst [vmem:[%s3 + $0xac] sm:$0xf] %v2074
  %2173 = vst [vmem:[%s3 + $0xb0] sm:$0xf] %v2075
  %2174 = vst [vmem:[%s3 + $0xb4] sm:$0xf] %v2076
  %2175 = vst [vmem:[%s3 + $0xb8] sm:$0xf] %v2077
  %2176 = vst [vmem:[%s3 + $0xbc] sm:$0xf] %v2078
  %2177 = vst [vmem:[%s3 + $0xc0] sm:$0xf] %v2079
  // Predicated region
  $region14: #{net_forward.2} parent=0 // pred_check
    _
  $region15: #{net_forward.2} parent=0 // pred_check_branch
    %2179 = sbr.rel (0) target = $region17
  $region16: #{net_forward.2} parent=0 // pred_region
    _
  $region17: #{net_forward.2} parent=0 // pred_fallthru
    _
  // Predicated region
  $region18: #{net_forward.2} parent=0 // pred_check
    _
  $region19: #{net_forward.2} parent=0 // pred_check_branch
    %2181 = sbr.rel (0) target = $region21
  $region20: #{net_forward.2} parent=0 // pred_region
    _
  $region21: #{net_forward.2} parent=0 // pred_fallthru
    _

// kernel: net_forward.3
$region0: #{net_forward.3}
  #allocation0 [shape = 'u32[]', space=smem, size = 0x4, offset = 0x4, fixed_abs, tag = 'smem constant byte address 0x4 - core index']
  #allocation1 [shape = 'u32[144,128]{1,0:T(1,128)}', space=vmem, size = 0x12000, scoped, tag = 'internal scratch']
  %s0 = inlined_call_operand.vmem [shape: bf16[4,25,8,256], index: 0, kind: input, shape index: {}]
  %s1 = inlined_call_operand.vmem [shape: bf16[256,128], index: 1, kind: input, shape index: {}]
  %s2 = inlined_call_operand.vmem [shape: f32[1,128], index: 2, kind: input, shape index: {}]
  %s3 = inlined_call_operand.vmem [shape: f32[3200,128], index: 3, kind: input, shape index: {}]
  %s4 = inlined_call_operand.vmem [shape: f32[1,128], index: 4, kind: input, shape index: {}]
  %s5 = inlined_call_operand.vmem [shape: f32[128,128], index: 5, kind: input, shape index: {}]
  %s6 = inlined_call_operand.vmem [shape: f32[1,128], index: 6, kind: input, shape index: {}]
  %s7 = inlined_call_operand.vmem [shape: f32[128,128], index: 7, kind: input, shape index: {}]
  %s8 = inlined_call_operand.vmem [shape: f32[1,128], index: 8, kind: input, shape index: {}]
  %s9 = inlined_call_operand.vmem [shape: f32[8,128], index: 9, kind: output, shape index: {}]
  %s10 = sld [smem:[#allocation0]]
  $region46: #{net_forward.3} parent=0
    _
  %s12 = ssub.s32 1, %s10
  %s13 = scalar_select 0, %s12, %s10
  // Predicated region
  $region2: #{net_forward.3} parent=0 // pred_check
    _
  $region3: #{net_forward.3} parent=0 // pred_check_branch
    %15 = sbr.rel (0) target = $region5
  $region4: #{net_forward.3} parent=0 // pred_region
    _
  $region5: #{net_forward.3} parent=0 // pred_fallthru
    _
  // Predicated region
  $region6: #{net_forward.3} parent=0 // pred_check
    _
  $region7: #{net_forward.3} parent=0 // pred_check_branch
    %17 = sbr.rel (0) target = $region9
  $region8: #{net_forward.3} parent=0 // pred_region
    _
  $region9: #{net_forward.3} parent=0 // pred_fallthru
    _
  // Predicated region
  $region10: #{net_forward.3} parent=0 // pred_check
    _
  $region11: #{net_forward.3} parent=0 // pred_check_branch
    %19 = sbr.rel (0) target = $region13
  $region12: #{net_forward.3} parent=0 // pred_region
    _
  $region13: #{net_forward.3} parent=0 // pred_fallthru
    _
  // Predicated region
  $region14: #{net_forward.3} parent=0 // pred_check
    _
  $region15: #{net_forward.3} parent=0 // pred_check_branch
    %21 = sbr.rel (0) target = $region17
  $region16: #{net_forward.3} parent=0 // pred_region
    _
  $region17: #{net_forward.3} parent=0 // pred_fallthru
    _
  // Predicated region
  $region18: #{net_forward.3} parent=0 // pred_check
    _
  $region19: #{net_forward.3} parent=0 // pred_check_branch
    %23 = sbr.rel (0) target = $region21
  $region20: #{net_forward.3} parent=0 // pred_region
    _
  $region21: #{net_forward.3} parent=0 // pred_fallthru
    _
  // Predicated region
  $region22: #{net_forward.3} parent=0 // pred_check
    _
  $region23: #{net_forward.3} parent=0 // pred_check_branch
    %25 = sbr.rel (0) target = $region25
  $region24: #{net_forward.3} parent=0 // pred_region
    _
  $region25: #{net_forward.3} parent=0 // pred_fallthru
    _
  // Predicated region
  $region26: #{net_forward.3} parent=0 // pred_check
    _
  $region27: #{net_forward.3} parent=0 // pred_check_branch
    %27 = sbr.rel (0) target = $region29
  $region28: #{net_forward.3} parent=0 // pred_region
    _
  $region29: #{net_forward.3} parent=0 // pred_fallthru
    _
  // Predicated region
  $region30: #{net_forward.3} parent=0 // pred_check
    _
  $region31: #{net_forward.3} parent=0 // pred_check_branch
    %29 = sbr.rel (0) target = $region33
  $region32: #{net_forward.3} parent=0 // pred_region
    _
  $region33: #{net_forward.3} parent=0 // pred_fallthru
    _
  // Predicated region
  $region34: #{net_forward.3} parent=0 // pred_check
    _
  $region35: #{net_forward.3} parent=0 // pred_check_branch
    %31 = sbr.rel (0) target = $region37
  $region36: #{net_forward.3} parent=0 // pred_region
    _
  $region37: #{net_forward.3} parent=0 // pred_fallthru
    _
  %v33 = vld [vmem:[%s0] sm:$0xff]
  %v34 = vld [vmem:[%s0 + $0x8] sm:$0xff]
  %v35 = vld [vmem:[%s0 + $0x10] sm:$0xff]
  %v36 = vld [vmem:[%s0 + $0x18] sm:$0xff]
  %v37 = vld [vmem:[%s0 + $0x20] sm:$0xff]
  %v38 = vld [vmem:[%s0 + $0x28] sm:$0xff]
  %v39 = vld [vmem:[%s0 + $0x30] sm:$0xff]
  %v40 = vld [vmem:[%s0 + $0x38] sm:$0xff]
  %v41 = vld [vmem:[%s0 + $0x40] sm:$0xff]
  %v42 = vld [vmem:[%s0 + $0x48] sm:$0xff]
  %v43 = vld [vmem:[%s0 + $0x50] sm:$0xff]
  %v44 = vld [vmem:[%s0 + $0x58] sm:$0xff]
  %v45 = vld [vmem:[%s0 + $0x60] sm:$0xff]
  %v46 = vld [vmem:[%s0 + $0x68] sm:$0xff]
  %v47 = vld [vmem:[%s0 + $0x70] sm:$0xff]
  %v48 = vld [vmem:[%s0 + $0x78] sm:$0xff]
  %v49 = vld [vmem:[%s0 + $0x80] sm:$0xff]
  %v50 = vld [vmem:[%s0 + $0x88] sm:$0xff]
  %v51 = vld [vmem:[%s0 + $0x90] sm:$0xff]
  %v52 = vld [vmem:[%s0 + $0x98] sm:$0xff]
  %v53 = vld [vmem:[%s0 + $0xa0] sm:$0xff]
  %v54 = vld [vmem:[%s0 + $0xa8] sm:$0xff]
  %v55 = vld [vmem:[%s0 + $0xb0] sm:$0xff]
  %v56 = vld [vmem:[%s0 + $0xb8] sm:$0xff]
  %v57 = vld [vmem:[%s0 + $0xc0] sm:$0xff]
  %v58 = vld [vmem:[%s0 + $0xc8] sm:$0xff]
  %v59 = vld [vmem:[%s0 + $0xd0] sm:$0xff]
  %v60 = vld [vmem:[%s0 + $0xd8] sm:$0xff]
  %v61 = vld [vmem:[%s0 + $0xe0] sm:$0xff]
  %v62 = vld [vmem:[%s0 + $0xe8] sm:$0xff]
  %v63 = vld [vmem:[%s0 + $0xf0] sm:$0xff]
  %v64 = vld [vmem:[%s0 + $0xf8] sm:$0xff]
  %v65 = vld [vmem:[%s0 + $0x100] sm:$0xff]
  %v66 = vld [vmem:[%s0 + $0x108] sm:$0xff]
  %v67 = vld [vmem:[%s0 + $0x110] sm:$0xff]
  %v68 = vld [vmem:[%s0 + $0x118] sm:$0xff]
  %v69 = vld [vmem:[%s0 + $0x120] sm:$0xff]
  %v70 = vld [vmem:[%s0 + $0x128] sm:$0xff]
  %v71 = vld [vmem:[%s0 + $0x130] sm:$0xff]
  %v72 = vld [vmem:[%s0 + $0x138] sm:$0xff]
  %v73 = vld [vmem:[%s0 + $0x140] sm:$0xff]
  %v74 = vld [vmem:[%s0 + $0x148] sm:$0xff]
  %v75 = vld [vmem:[%s0 + $0x150] sm:$0xff]
  %v76 = vld [vmem:[%s0 + $0x158] sm:$0xff]
  %v77 = vld [vmem:[%s0 + $0x160] sm:$0xff]
  %v78 = vld [vmem:[%s0 + $0x168] sm:$0xff]
  %v79 = vld [vmem:[%s0 + $0x170] sm:$0xff]
  %v80 = vld [vmem:[%s0 + $0x178] sm:$0xff]
  %v81 = vld [vmem:[%s0 + $0x180] sm:$0xff]
  %v82 = vld [vmem:[%s0 + $0x188] sm:$0xff]
  %v83 = vld [vmem:[%s0 + $0x190] sm:$0xff]
  %v84 = vld [vmem:[%s0 + $0x198] sm:$0xff]
  %v85 = vld [vmem:[%s0 + $0x1a0] sm:$0xff]
  %v86 = vld [vmem:[%s0 + $0x1a8] sm:$0xff]
  %v87 = vld [vmem:[%s0 + $0x1b0] sm:$0xff]
  %v88 = vld [vmem:[%s0 + $0x1b8] sm:$0xff]
  %v89 = vld [vmem:[%s0 + $0x1c0] sm:$0xff]
  %v90 = vld [vmem:[%s0 + $0x1c8] sm:$0xff]
  %v91 = vld [vmem:[%s0 + $0x1d0] sm:$0xff]
  %v92 = vld [vmem:[%s0 + $0x1d8] sm:$0xff]
  %v93 = vld [vmem:[%s0 + $0x1e0] sm:$0xff]
  %v94 = vld [vmem:[%s0 + $0x1e8] sm:$0xff]
  %v95 = vld [vmem:[%s0 + $0x1f0] sm:$0xff]
  %v96 = vld [vmem:[%s0 + $0x1f8] sm:$0xff]
  %v97 = vld [vmem:[%s0 + $0x200] sm:$0xff]
  %v98 = vld [vmem:[%s0 + $0x208] sm:$0xff]
  %v99 = vld [vmem:[%s0 + $0x210] sm:$0xff]
  %v100 = vld [vmem:[%s0 + $0x218] sm:$0xff]
  %v101 = vld [vmem:[%s0 + $0x220] sm:$0xff]
  %v102 = vld [vmem:[%s0 + $0x228] sm:$0xff]
  %v103 = vld [vmem:[%s0 + $0x230] sm:$0xff]
  %v104 = vld [vmem:[%s0 + $0x238] sm:$0xff]
  %v105 = vld [vmem:[%s0 + $0x240] sm:$0xff]
  %v106 = vld [vmem:[%s0 + $0x248] sm:$0xff]
  %v107 = vld [vmem:[%s0 + $0x250] sm:$0xff]
  %v108 = vld [vmem:[%s0 + $0x258] sm:$0xff]
  %v109 = vld [vmem:[%s0 + $0x260] sm:$0xff]
  %v110 = vld [vmem:[%s0 + $0x268] sm:$0xff]
  %v111 = vld [vmem:[%s0 + $0x270] sm:$0xff]
  %v112 = vld [vmem:[%s0 + $0x278] sm:$0xff]
  %v113 = vld [vmem:[%s0 + $0x280] sm:$0xff]
  %v114 = vld [vmem:[%s0 + $0x288] sm:$0xff]
  %v115 = vld [vmem:[%s0 + $0x290] sm:$0xff]
  %v116 = vld [vmem:[%s0 + $0x298] sm:$0xff]
  %v117 = vld [vmem:[%s0 + $0x2a0] sm:$0xff]
  %v118 = vld [vmem:[%s0 + $0x2a8] sm:$0xff]
  %v119 = vld [vmem:[%s0 + $0x2b0] sm:$0xff]
  %v120 = vld [vmem:[%s0 + $0x2b8] sm:$0xff]
  %v121 = vld [vmem:[%s0 + $0x2c0] sm:$0xff]
  %v122 = vld [vmem:[%s0 + $0x2c8] sm:$0xff]
  %v123 = vld [vmem:[%s0 + $0x2d0] sm:$0xff]
  %v124 = vld [vmem:[%s0 + $0x2d8] sm:$0xff]
  %v125 = vld [vmem:[%s0 + $0x2e0] sm:$0xff]
  %v126 = vld [vmem:[%s0 + $0x2e8] sm:$0xff]
  %v127 = vld [vmem:[%s0 + $0x2f0] sm:$0xff]
  %v128 = vld [vmem:[%s0 + $0x2f8] sm:$0xff]
  %v129 = vld [vmem:[%s0 + $0x300] sm:$0xff]
  %v130 = vld [vmem:[%s0 + $0x308] sm:$0xff]
  %v131 = vld [vmem:[%s0 + $0x310] sm:$0xff]
  %v132 = vld [vmem:[%s0 + $0x318] sm:$0xff]
  %v133 = vld [vmem:[%s1] sm:$0xf]
  %v134 = vld [vmem:[%s1 + $0x4] sm:$0xf]
  %v135 = vld [vmem:[%s1 + $0x8] sm:$0xf]
  %v136 = vld [vmem:[%s1 + $0xc] sm:$0xf]
  %v137 = vld [vmem:[%s1 + $0x10] sm:$0xf]
  %v138 = vld [vmem:[%s1 + $0x14] sm:$0xf]
  %v139 = vld [vmem:[%s1 + $0x18] sm:$0xf]
  %v140 = vld [vmem:[%s1 + $0x1c] sm:$0xf]
  %v141 = vld [vmem:[%s1 + $0x20] sm:$0xf]
  %v142 = vld [vmem:[%s1 + $0x24] sm:$0xf]
  %v143 = vld [vmem:[%s1 + $0x28] sm:$0xf]
  %v144 = vld [vmem:[%s1 + $0x2c] sm:$0xf]
  %v145 = vld [vmem:[%s1 + $0x30] sm:$0xf]
  %v146 = vld [vmem:[%s1 + $0x34] sm:$0xf]
  %v147 = vld [vmem:[%s1 + $0x38] sm:$0xf]
  %v148 = vld [vmem:[%s1 + $0x3c] sm:$0xf]
  %v149 = vld [vmem:[%s1 + $0x40] sm:$0xf]
  %v150 = vld [vmem:[%s1 + $0x44] sm:$0xf]
  %v151 = vld [vmem:[%s1 + $0x48] sm:$0xf]
  %v152 = vld [vmem:[%s1 + $0x4c] sm:$0xf]
  %v153 = vld [vmem:[%s1 + $0x50] sm:$0xf]
  %v154 = vld [vmem:[%s1 + $0x54] sm:$0xf]
  %v155 = vld [vmem:[%s1 + $0x58] sm:$0xf]
  %v156 = vld [vmem:[%s1 + $0x5c] sm:$0xf]
  %v157 = vld [vmem:[%s1 + $0x60] sm:$0xf]
  %v158 = vld [vmem:[%s1 + $0x64] sm:$0xf]
  %v159 = vld [vmem:[%s1 + $0x68] sm:$0xf]
  %v160 = vld [vmem:[%s1 + $0x6c] sm:$0xf]
  %v161 = vld [vmem:[%s1 + $0x70] sm:$0xf]
  %v162 = vld [vmem:[%s1 + $0x74] sm:$0xf]
  %v163 = vld [vmem:[%s1 + $0x78] sm:$0xf]
  %v164 = vld [vmem:[%s1 + $0x7c] sm:$0xf]
  %v265 = vunpack.c.l.b16 %v33
  %v266 = vunpack.c.h.b16 %v33
  %v267 = vunpack.c.l.b16 %v34
  %v268 = vunpack.c.h.b16 %v34
  %v269 = vunpack.c.l.b16 %v35
  %v270 = vunpack.c.h.b16 %v35
  %v271 = vunpack.c.l.b16 %v36
  %v272 = vunpack.c.h.b16 %v36
  %v273 = vunpack.c.l.b16 %v37
  %v274 = vunpack.c.h.b16 %v37
  %v275 = vunpack.c.l.b16 %v38
  %v276 = vunpack.c.h.b16 %v38
  %v277 = vunpack.c.l.b16 %v39
  %v278 = vunpack.c.h.b16 %v39
  %v279 = vunpack.c.l.b16 %v40
  %v280 = vunpack.c.h.b16 %v40
  %v281 = vunpack.c.l.b16 %v41
  %v282 = vunpack.c.h.b16 %v41
  %v283 = vunpack.c.l.b16 %v42
  %v284 = vunpack.c.h.b16 %v42
  %v285 = vunpack.c.l.b16 %v43
  %v286 = vunpack.c.h.b16 %v43
  %v287 = vunpack.c.l.b16 %v44
  %v288 = vunpack.c.h.b16 %v44
  %v289 = vunpack.c.l.b16 %v45
  %v290 = vunpack.c.h.b16 %v45
  %v291 = vunpack.c.l.b16 %v46
  %v292 = vunpack.c.h.b16 %v46
  %v293 = vunpack.c.l.b16 %v47
  %v294 = vunpack.c.h.b16 %v47
  %v295 = vunpack.c.l.b16 %v48
  %v296 = vunpack.c.h.b16 %v48
  %v297 = vunpack.c.l.b16 %v49
  %v298 = vunpack.c.h.b16 %v49
  %v299 = vunpack.c.l.b16 %v50
  %v300 = vunpack.c.h.b16 %v50
  %v301 = vunpack.c.l.b16 %v51
  %v302 = vunpack.c.h.b16 %v51
  %v303 = vunpack.c.l.b16 %v52
  %v304 = vunpack.c.h.b16 %v52
  %v305 = vunpack.c.l.b16 %v53
  %v306 = vunpack.c.h.b16 %v53
  %v307 = vunpack.c.l.b16 %v54
  %v308 = vunpack.c.h.b16 %v54
  %v309 = vunpack.c.l.b16 %v55
  %v310 = vunpack.c.h.b16 %v55
  %v311 = vunpack.c.l.b16 %v56
  %v312 = vunpack.c.h.b16 %v56
  %v313 = vunpack.c.l.b16 %v57
  %v314 = vunpack.c.h.b16 %v57
  %v315 = vunpack.c.l.b16 %v58
  %v316 = vunpack.c.h.b16 %v58
  %v317 = vunpack.c.l.b16 %v59
  %v318 = vunpack.c.h.b16 %v59
  %v319 = vunpack.c.l.b16 %v60
  %v320 = vunpack.c.h.b16 %v60
  %v321 = vunpack.c.l.b16 %v61
  %v322 = vunpack.c.h.b16 %v61
  %v323 = vunpack.c.l.b16 %v62
  %v324 = vunpack.c.h.b16 %v62
  %v325 = vunpack.c.l.b16 %v63
  %v326 = vunpack.c.h.b16 %v63
  %v327 = vunpack.c.l.b16 %v64
  %v328 = vunpack.c.h.b16 %v64
  %v329 = vunpack.c.l.b16 %v65
  %v330 = vunpack.c.h.b16 %v65
  %v331 = vunpack.c.l.b16 %v66
  %v332 = vunpack.c.h.b16 %v66
  %v333 = vunpack.c.l.b16 %v67
  %v334 = vunpack.c.h.b16 %v67
  %v335 = vunpack.c.l.b16 %v68
  %v336 = vunpack.c.h.b16 %v68
  %v337 = vunpack.c.l.b16 %v69
  %v338 = vunpack.c.h.b16 %v69
  %v339 = vunpack.c.l.b16 %v70
  %v340 = vunpack.c.h.b16 %v70
  %v341 = vunpack.c.l.b16 %v71
  %v342 = vunpack.c.h.b16 %v71
  %v343 = vunpack.c.l.b16 %v72
  %v344 = vunpack.c.h.b16 %v72
  %v345 = vunpack.c.l.b16 %v73
  %v346 = vunpack.c.h.b16 %v73
  %v347 = vunpack.c.l.b16 %v74
  %v348 = vunpack.c.h.b16 %v74
  %v349 = vunpack.c.l.b16 %v75
  %v350 = vunpack.c.h.b16 %v75
  %v351 = vunpack.c.l.b16 %v76
  %v352 = vunpack.c.h.b16 %v76
  %v353 = vunpack.c.l.b16 %v77
  %v354 = vunpack.c.h.b16 %v77
  %v355 = vunpack.c.l.b16 %v78
  %v356 = vunpack.c.h.b16 %v78
  %v357 = vunpack.c.l.b16 %v79
  %v358 = vunpack.c.h.b16 %v79
  %v359 = vunpack.c.l.b16 %v80
  %v360 = vunpack.c.h.b16 %v80
  %v361 = vunpack.c.l.b16 %v81
  %v362 = vunpack.c.h.b16 %v81
  %v363 = vunpack.c.l.b16 %v82
  %v364 = vunpack.c.h.b16 %v82
  %v365 = vunpack.c.l.b16 %v83
  %v366 = vunpack.c.h.b16 %v83
  %v367 = vunpack.c.l.b16 %v84
  %v368 = vunpack.c.h.b16 %v84
  %v369 = vunpack.c.l.b16 %v85
  %v370 = vunpack.c.h.b16 %v85
  %v371 = vunpack.c.l.b16 %v86
  %v372 = vunpack.c.h.b16 %v86
  %v373 = vunpack.c.l.b16 %v87
  %v374 = vunpack.c.h.b16 %v87
  %v375 = vunpack.c.l.b16 %v88
  %v376 = vunpack.c.h.b16 %v88
  %v377 = vunpack.c.l.b16 %v89
  %v378 = vunpack.c.h.b16 %v89
  %v379 = vunpack.c.l.b16 %v90
  %v380 = vunpack.c.h.b16 %v90
  %v381 = vunpack.c.l.b16 %v91
  %v382 = vunpack.c.h.b16 %v91
  %v383 = vunpack.c.l.b16 %v92
  %v384 = vunpack.c.h.b16 %v92
  %v385 = vunpack.c.l.b16 %v93
  %v386 = vunpack.c.h.b16 %v93
  %v387 = vunpack.c.l.b16 %v94
  %v388 = vunpack.c.h.b16 %v94
  %v389 = vunpack.c.l.b16 %v95
  %v390 = vunpack.c.h.b16 %v95
  %v391 = vunpack.c.l.b16 %v96
  %v392 = vunpack.c.h.b16 %v96
  %v393 = vunpack.c.l.b16 %v97
  %v394 = vunpack.c.h.b16 %v97
  %v395 = vunpack.c.l.b16 %v98
  %v396 = vunpack.c.h.b16 %v98
  %v397 = vunpack.c.l.b16 %v99
  %v398 = vunpack.c.h.b16 %v99
  %v399 = vunpack.c.l.b16 %v100
  %v400 = vunpack.c.h.b16 %v100
  %v401 = vunpack.c.l.b16 %v101
  %v402 = vunpack.c.h.b16 %v101
  %v403 = vunpack.c.l.b16 %v102
  %v404 = vunpack.c.h.b16 %v102
  %v405 = vunpack.c.l.b16 %v103
  %v406 = vunpack.c.h.b16 %v103
  %v407 = vunpack.c.l.b16 %v104
  %v408 = vunpack.c.h.b16 %v104
  %v409 = vunpack.c.l.b16 %v105
  %v410 = vunpack.c.h.b16 %v105
  %v411 = vunpack.c.l.b16 %v106
  %v412 = vunpack.c.h.b16 %v106
  %v413 = vunpack.c.l.b16 %v107
  %v414 = vunpack.c.h.b16 %v107
  %v415 = vunpack.c.l.b16 %v108
  %v416 = vunpack.c.h.b16 %v108
  %v417 = vunpack.c.l.b16 %v109
  %v418 = vunpack.c.h.b16 %v109
  %v419 = vunpack.c.l.b16 %v110
  %v420 = vunpack.c.h.b16 %v110
  %v421 = vunpack.c.l.b16 %v111
  %v422 = vunpack.c.h.b16 %v111
  %v423 = vunpack.c.l.b16 %v112
  %v424 = vunpack.c.h.b16 %v112
  %v425 = vunpack.c.l.b16 %v113
  %v426 = vunpack.c.h.b16 %v113
  %v427 = vunpack.c.l.b16 %v114
  %v428 = vunpack.c.h.b16 %v114
  %v429 = vunpack.c.l.b16 %v115
  %v430 = vunpack.c.h.b16 %v115
  %v431 = vunpack.c.l.b16 %v116
  %v432 = vunpack.c.h.b16 %v116
  %v433 = vunpack.c.l.b16 %v117
  %v434 = vunpack.c.h.b16 %v117
  %v435 = vunpack.c.l.b16 %v118
  %v436 = vunpack.c.h.b16 %v118
  %v437 = vunpack.c.l.b16 %v119
  %v438 = vunpack.c.h.b16 %v119
  %v439 = vunpack.c.l.b16 %v120
  %v440 = vunpack.c.h.b16 %v120
  %v441 = vunpack.c.l.b16 %v121
  %v442 = vunpack.c.h.b16 %v121
  %v443 = vunpack.c.l.b16 %v122
  %v444 = vunpack.c.h.b16 %v122
  %v445 = vunpack.c.l.b16 %v123
  %v446 = vunpack.c.h.b16 %v123
  %v447 = vunpack.c.l.b16 %v124
  %v448 = vunpack.c.h.b16 %v124
  %v449 = vunpack.c.l.b16 %v125
  %v450 = vunpack.c.h.b16 %v125
  %v451 = vunpack.c.l.b16 %v126
  %v452 = vunpack.c.h.b16 %v126
  %v453 = vunpack.c.l.b16 %v127
  %v454 = vunpack.c.h.b16 %v127
  %v455 = vunpack.c.l.b16 %v128
  %v456 = vunpack.c.h.b16 %v128
  %v457 = vunpack.c.l.b16 %v129
  %v458 = vunpack.c.h.b16 %v129
  %v459 = vunpack.c.l.b16 %v130
  %v460 = vunpack.c.h.b16 %v130
  %v461 = vunpack.c.l.b16 %v131
  %v462 = vunpack.c.h.b16 %v131
  %v463 = vunpack.c.l.b16 %v132
  %v464 = vunpack.c.h.b16 %v132
  %v465 = vpack.c.b16 %v267, %v265
  %v466 = vpack.c.b16 %v268, %v266
  %v467 = vpack.c.b16 %v271, %v269
  %v468 = vpack.c.b16 %v272, %v270
  %v469 = vpack.c.b16 %v275, %v273
  %v470 = vpack.c.b16 %v276, %v274
  %v471 = vpack.c.b16 %v279, %v277
  %v472 = vpack.c.b16 %v280, %v278
  %v473 = vpack.c.b16 %v283, %v281
  %v474 = vpack.c.b16 %v284, %v282
  %v475 = vpack.c.b16 %v287, %v285
  %v476 = vpack.c.b16 %v288, %v286
  %v477 = vpack.c.b16 %v291, %v289
  %v478 = vpack.c.b16 %v292, %v290
  %v479 = vpack.c.b16 %v295, %v293
  %v480 = vpack.c.b16 %v296, %v294
  %v481 = vpack.c.b16 %v299, %v297
  %v482 = vpack.c.b16 %v300, %v298
  %v483 = vpack.c.b16 %v303, %v301
  %v484 = vpack.c.b16 %v304, %v302
  %v485 = vpack.c.b16 %v307, %v305
  %v486 = vpack.c.b16 %v308, %v306
  %v487 = vpack.c.b16 %v311, %v309
  %v488 = vpack.c.b16 %v312, %v310
  %v489 = vpack.c.b16 %v315, %v313
  %v490 = vpack.c.b16 %v316, %v314
  %v491 = vpack.c.b16 %v319, %v317
  %v492 = vpack.c.b16 %v320, %v318
  %v493 = vpack.c.b16 %v323, %v321
  %v494 = vpack.c.b16 %v324, %v322
  %v495 = vpack.c.b16 %v327, %v325
  %v496 = vpack.c.b16 %v328, %v326
  %v497 = vpack.c.b16 %v331, %v329
  %v498 = vpack.c.b16 %v332, %v330
  %v499 = vpack.c.b16 %v335, %v333
  %v500 = vpack.c.b16 %v336, %v334
  %v501 = vpack.c.b16 %v339, %v337
  %v502 = vpack.c.b16 %v340, %v338
  %v503 = vpack.c.b16 %v343, %v341
  %v504 = vpack.c.b16 %v344, %v342
  %v505 = vpack.c.b16 %v347, %v345
  %v506 = vpack.c.b16 %v348, %v346
  %v507 = vpack.c.b16 %v351, %v349
  %v508 = vpack.c.b16 %v352, %v350
  %v509 = vpack.c.b16 %v355, %v353
  %v510 = vpack.c.b16 %v356, %v354
  %v511 = vpack.c.b16 %v359, %v357
  %v512 = vpack.c.b16 %v360, %v358
  %v513 = vpack.c.b16 %v363, %v361
  %v514 = vpack.c.b16 %v364, %v362
  %v515 = vpack.c.b16 %v367, %v365
  %v516 = vpack.c.b16 %v368, %v366
  %v517 = vpack.c.b16 %v371, %v369
  %v518 = vpack.c.b16 %v372, %v370
  %v519 = vpack.c.b16 %v375, %v373
  %v520 = vpack.c.b16 %v376, %v374
  %v521 = vpack.c.b16 %v379, %v377
  %v522 = vpack.c.b16 %v380, %v378
  %v523 = vpack.c.b16 %v383, %v381
  %v524 = vpack.c.b16 %v384, %v382
  %v525 = vpack.c.b16 %v387, %v385
  %v526 = vpack.c.b16 %v388, %v386
  %v527 = vpack.c.b16 %v391, %v389
  %v528 = vpack.c.b16 %v392, %v390
  %v529 = vpack.c.b16 %v395, %v393
  %v530 = vpack.c.b16 %v396, %v394
  %v531 = vpack.c.b16 %v399, %v397
  %v532 = vpack.c.b16 %v400, %v398
  %v533 = vpack.c.b16 %v403, %v401
  %v534 = vpack.c.b16 %v404, %v402
  %v535 = vpack.c.b16 %v407, %v405
  %v536 = vpack.c.b16 %v408, %v406
  %v537 = vpack.c.b16 %v411, %v409
  %v538 = vpack.c.b16 %v412, %v410
  %v539 = vpack.c.b16 %v415, %v413
  %v540 = vpack.c.b16 %v416, %v414
  %v541 = vpack.c.b16 %v419, %v417
  %v542 = vpack.c.b16 %v420, %v418
  %v543 = vpack.c.b16 %v423, %v421
  %v544 = vpack.c.b16 %v424, %v422
  %v545 = vpack.c.b16 %v427, %v425
  %v546 = vpack.c.b16 %v428, %v426
  %v547 = vpack.c.b16 %v431, %v429
  %v548 = vpack.c.b16 %v432, %v430
  %v549 = vpack.c.b16 %v435, %v433
  %v550 = vpack.c.b16 %v436, %v434
  %v551 = vpack.c.b16 %v439, %v437
  %v552 = vpack.c.b16 %v440, %v438
  %v553 = vpack.c.b16 %v443, %v441
  %v554 = vpack.c.b16 %v444, %v442
  %v555 = vpack.c.b16 %v447, %v445
  %v556 = vpack.c.b16 %v448, %v446
  %v557 = vpack.c.b16 %v451, %v449
  %v558 = vpack.c.b16 %v452, %v450
  %v559 = vpack.c.b16 %v455, %v453
  %v560 = vpack.c.b16 %v456, %v454
  %v561 = vpack.c.b16 %v459, %v457
  %v562 = vpack.c.b16 %v460, %v458
  %v563 = vpack.c.b16 %v463, %v461
  %v564 = vpack.c.b16 %v464, %v462
  %v697 = vunpack.c.l.b16 %v133
  %v698 = vunpack.c.l.b16 %v134
  %v699 = vunpack.c.l.b16 %v135
  %v700 = vunpack.c.l.b16 %v136
  %v701 = vunpack.c.l.b16 %v137
  %v702 = vunpack.c.l.b16 %v138
  %v703 = vunpack.c.l.b16 %v139
  %v704 = vunpack.c.l.b16 %v140
  %v705 = vunpack.c.l.b16 %v141
  %v706 = vunpack.c.l.b16 %v142
  %v707 = vunpack.c.l.b16 %v143
  %v708 = vunpack.c.l.b16 %v144
  %v709 = vunpack.c.l.b16 %v145
  %v710 = vunpack.c.l.b16 %v146
  %v711 = vunpack.c.l.b16 %v147
  %v712 = vunpack.c.l.b16 %v148
  %v713 = vunpack.c.l.b16 %v149
  %v714 = vunpack.c.l.b16 %v150
  %v715 = vunpack.c.l.b16 %v151
  %v716 = vunpack.c.l.b16 %v152
  %v717 = vunpack.c.l.b16 %v153
  %v718 = vunpack.c.l.b16 %v154
  %v719 = vunpack.c.l.b16 %v155
  %v720 = vunpack.c.l.b16 %v156
  %v721 = vunpack.c.l.b16 %v157
  %v722 = vunpack.c.l.b16 %v158
  %v723 = vunpack.c.l.b16 %v159
  %v724 = vunpack.c.l.b16 %v160
  %v725 = vunpack.c.l.b16 %v161
  %v726 = vunpack.c.l.b16 %v162
  %v727 = vunpack.c.l.b16 %v163
  %v728 = vunpack.c.l.b16 %v164
  %v729 = vpack.c.b16 %v698, %v697
  %v730 = vpack.c.b16 %v700, %v699
  %v731 = vpack.c.b16 %v702, %v701
  %v732 = vpack.c.b16 %v704, %v703
  %v733 = vpack.c.b16 %v706, %v705
  %v734 = vpack.c.b16 %v708, %v707
  %v735 = vpack.c.b16 %v710, %v709
  %v736 = vpack.c.b16 %v712, %v711
  %v737 = vpack.c.b16 %v714, %v713
  %v738 = vpack.c.b16 %v716, %v715
  %v739 = vpack.c.b16 %v718, %v717
  %v740 = vpack.c.b16 %v720, %v719
  %v741 = vpack.c.b16 %v722, %v721
  %v742 = vpack.c.b16 %v724, %v723
  %v743 = vpack.c.b16 %v726, %v725
  %v744 = vpack.c.b16 %v728, %v727
  %761 = vmatprep.subr.bf16.mxu0 0
  %762 = vmatpush1.bf16.msra.mxu0 %v729
  %763 = vmatprep.subr.bf16.mxu0 0
  %764 = vmatpush1.bf16.msra.mxu0 %v730
  %765 = vmatprep.subr.bf16.mxu0 0
  %766 = vmatpush1.bf16.msra.mxu0 %v731
  %767 = vmatprep.subr.bf16.mxu0 0
  %768 = vmatpush1.bf16.msra.mxu0 %v732
  %769 = vmatprep.subr.bf16.mxu0 0
  %770 = vmatpush1.bf16.msra.mxu0 %v733
  %771 = vmatprep.subr.bf16.mxu0 0
  %772 = vmatpush1.bf16.msra.mxu0 %v734
  %773 = vmatprep.subr.bf16.mxu0 0
  %774 = vmatpush1.bf16.msra.mxu0 %v735
  %775 = vmatprep.subr.bf16.mxu0 0
  %776 = vmatpush1.bf16.msra.mxu0 %v736
  %777 = vmatprep.subr.bf16.mxu0 0
  %778 = vmatpush1.bf16.msra.mxu0 %v737
  %779 = vmatprep.subr.bf16.mxu0 0
  %780 = vmatpush1.bf16.msra.mxu0 %v738
  %781 = vmatprep.subr.bf16.mxu0 0
  %782 = vmatpush1.bf16.msra.mxu0 %v739
  %783 = vmatprep.subr.bf16.mxu0 0
  %784 = vmatpush1.bf16.msra.mxu0 %v740
  %785 = vmatprep.subr.bf16.mxu0 0
  %786 = vmatpush1.bf16.msra.mxu0 %v741
  %787 = vmatprep.subr.bf16.mxu0 0
  %788 = vmatpush1.bf16.msra.mxu0 %v742
  %789 = vmatprep.subr.bf16.mxu0 0
  %790 = vmatpush1.bf16.msra.mxu0 %v743
  %791 = vmatprep.subr.bf16.mxu0 0
  %792 = vmatpush1.bf16.msra.mxu0 %v744
  %793 = vmatprep.mubr.bf16.mxu0 %v466
  %794 = vmatmul.mubr.bf16.gmra.mrb[0].mxu0 %v465
  %v795 = vpop.f32.mrb[0].mxu0
  %v796 = vadd.f32 0.0, %v795
  %v797 = vpop.f32.mrb[0].mxu0
  %v798 = vpop.f32.mrb[0].mxu0
  %v799 = vadd.f32 0.0, %v798
  %v800 = vpop.f32.mrb[0].mxu0
  %801 = vmatprep.mubr.bf16.mxu0 %v468
  %802 = vmatmul.mubr.bf16.gmra.mrb[0].mxu0 %v467
  %v803 = vpop.f32.mrb[0].mxu0
  %v804 = vadd.f32 0.0, %v803
  %v805 = vpop.f32.mrb[0].mxu0
  %v806 = vpop.f32.mrb[0].mxu0
  %v807 = vadd.f32 0.0, %v806
  %v808 = vpop.f32.mrb[0].mxu0
  %809 = vmatprep.mubr.bf16.mxu0 %v470
  %810 = vmatmul.mubr.bf16.gmra.mrb[0].mxu0 %v469
  %v811 = vpop.f32.mrb[0].mxu0
  %v812 = vadd.f32 0.0, %v811
  %v813 = vpop.f32.mrb[0].mxu0
  %v814 = vpop.f32.mrb[0].mxu0
  %v815 = vadd.f32 0.0, %v814
  %v816 = vpop.f32.mrb[0].mxu0
  %817 = vmatprep.mubr.bf16.mxu0 %v472
  %818 = vmatmul.mubr.bf16.gmra.mrb[0].mxu0 %v471
  %v819 = vpop.f32.mrb[0].mxu0
  %v820 = vadd.f32 0.0, %v819
  %v821 = vpop.f32.mrb[0].mxu0
  %v822 = vpop.f32.mrb[0].mxu0
  %v823 = vadd.f32 0.0, %v822
  %v824 = vpop.f32.mrb[0].mxu0
  %825 = vmatprep.mubr.bf16.mxu0 %v474
  %826 = vmatmul.mubr.bf16.gmra.mrb[0].mxu0 %v473
  %v827 = vpop.f32.mrb[0].mxu0
  %v828 = vadd.f32 0.0, %v827
  %v829 = vpop.f32.mrb[0].mxu0
  %v830 = vpop.f32.mrb[0].mxu0
  %v831 = vadd.f32 0.0, %v830
  %v832 = vpop.f32.mrb[0].mxu0
  %833 = vmatprep.mubr.bf16.mxu0 %v476
  %834 = vmatmul.mubr.bf16.gmra.mrb[0].mxu0 %v475
  %v835 = vpop.f32.mrb[0].mxu0
  %v836 = vadd.f32 0.0, %v835
  %v837 = vpop.f32.mrb[0].mxu0
  %v838 = vpop.f32.mrb[0].mxu0
  %v839 = vadd.f32 0.0, %v838
  %v840 = vpop.f32.mrb[0].mxu0
  %841 = vmatprep.mubr.bf16.mxu0 %v478
  %842 = vmatmul.mubr.bf16.gmra.mrb[0].mxu0 %v477
  %v843 = vpop.f32.mrb[0].mxu0
  %v844 = vadd.f32 0.0, %v843
  %v845 = vpop.f32.mrb[0].mxu0
  %v846 = vpop.f32.mrb[0].mxu0
  %v847 = vadd.f32 0.0, %v846
  %v848 = vpop.f32.mrb[0].mxu0
  %849 = vmatprep.mubr.bf16.mxu0 %v480
  %850 = vmatmul.mubr.bf16.gmra.mrb[0].mxu0 %v479
  %v851 = vpop.f32.mrb[0].mxu0
  %v852 = vadd.f32 0.0, %v851
  %v853 = vpop.f32.mrb[0].mxu0
  %v854 = vpop.f32.mrb[0].mxu0
  %v855 = vadd.f32 0.0, %v854
  %v856 = vpop.f32.mrb[0].mxu0
  %857 = vmatprep.mubr.bf16.mxu0 %v482
  %858 = vmatmul.mubr.bf16.gmra.mrb[0].mxu0 %v481
  %v859 = vpop.f32.mrb[0].mxu0
  %v860 = vadd.f32 0.0, %v859
  %v861 = vpop.f32.mrb[0].mxu0
  %v862 = vpop.f32.mrb[0].mxu0
  %v863 = vadd.f32 0.0, %v862
  %v864 = vpop.f32.mrb[0].mxu0
  %865 = vmatprep.mubr.bf16.mxu0 %v484
  %866 = vmatmul.mubr.bf16.gmra.mrb[0].mxu0 %v483
  %v867 = vpop.f32.mrb[0].mxu0
  %v868 = vadd.f32 0.0, %v867
  %v869 = vpop.f32.mrb[0].mxu0
  %v870 = vpop.f32.mrb[0].mxu0
  %v871 = vadd.f32 0.0, %v870
  %v872 = vpop.f32.mrb[0].mxu0
  %873 = vmatprep.mubr.bf16.mxu0 %v486
  %874 = vmatmul.mubr.bf16.gmra.mrb[0].mxu0 %v485
  %v875 = vpop.f32.mrb[0].mxu0
  %v876 = vadd.f32 0.0, %v875
  %v877 = vpop.f32.mrb[0].mxu0
  %v878 = vpop.f32.mrb[0].mxu0
  %v879 = vadd.f32 0.0, %v878
  %v880 = vpop.f32.mrb[0].mxu0
  %881 = vmatprep.mubr.bf16.mxu0 %v488
  %882 = vmatmul.mubr.bf16.gmra.mrb[0].mxu0 %v487
  %v883 = vpop.f32.mrb[0].mxu0
  %v884 = vadd.f32 0.0, %v883
  %v885 = vpop.f32.mrb[0].mxu0
  %v886 = vpop.f32.mrb[0].mxu0
  %v887 = vadd.f32 0.0, %v886
  %v888 = vpop.f32.mrb[0].mxu0
  %889 = vmatprep.mubr.bf16.mxu0 %v490
  %890 = vmatmul.mubr.bf16.gmra.mrb[0].mxu0 %v489
  %v891 = vpop.f32.mrb[0].mxu0
  %v892 = vadd.f32 0.0, %v891
  %v893 = vpop.f32.mrb[0].mxu0
  %v894 = vpop.f32.mrb[0].mxu0
  %v895 = vadd.f32 0.0, %v894
  %v896 = vpop.f32.mrb[0].mxu0
  %897 = vmatprep.mubr.bf16.mxu0 %v492
  %898 = vmatmul.mubr.bf16.gmra.mrb[0].mxu0 %v491
  %v899 = vpop.f32.mrb[0].mxu0
  %v900 = vadd.f32 0.0, %v899
  %v901 = vpop.f32.mrb[0].mxu0
  %v902 = vpop.f32.mrb[0].mxu0
  %v903 = vadd.f32 0.0, %v902
  %v904 = vpop.f32.mrb[0].mxu0
  %905 = vmatprep.mubr.bf16.mxu0 %v494
  %906 = vmatmul.mubr.bf16.gmra.mrb[0].mxu0 %v493
  %v907 = vpop.f32.mrb[0].mxu0
  %v908 = vadd.f32 0.0, %v907
  %v909 = vpop.f32.mrb[0].mxu0
  %v910 = vpop.f32.mrb[0].mxu0
  %v911 = vadd.f32 0.0, %v910
  %v912 = vpop.f32.mrb[0].mxu0
  %913 = vmatprep.mubr.bf16.mxu0 %v496
  %914 = vmatmul.mubr.bf16.gmra.mrb[0].mxu0 %v495
  %v915 = vpop.f32.mrb[0].mxu0
  %v916 = vadd.f32 0.0, %v915
  %v917 = vpop.f32.mrb[0].mxu0
  %v918 = vpop.f32.mrb[0].mxu0
  %v919 = vadd.f32 0.0, %v918
  %v920 = vpop.f32.mrb[0].mxu0
  %921 = vmatprep.mubr.bf16.mxu0 %v498
  %922 = vmatmul.mubr.bf16.gmra.mrb[0].mxu0 %v497
  %v923 = vpop.f32.mrb[0].mxu0
  %v924 = vadd.f32 0.0, %v923
  %v925 = vpop.f32.mrb[0].mxu0
  %v926 = vpop.f32.mrb[0].mxu0
  %v927 = vadd.f32 0.0, %v926
  %v928 = vpop.f32.mrb[0].mxu0
  %929 = vmatprep.mubr.bf16.mxu0 %v500
  %930 = vmatmul.mubr.bf16.gmra.mrb[0].mxu0 %v499
  %v931 = vpop.f32.mrb[0].mxu0
  %v932 = vadd.f32 0.0, %v931
  %v933 = vpop.f32.mrb[0].mxu0
  %v934 = vpop.f32.mrb[0].mxu0
  %v935 = vadd.f32 0.0, %v934
  %v936 = vpop.f32.mrb[0].mxu0
  %937 = vmatprep.mubr.bf16.mxu0 %v502
  %938 = vmatmul.mubr.bf16.gmra.mrb[0].mxu0 %v501
  %v939 = vpop.f32.mrb[0].mxu0
  %v940 = vadd.f32 0.0, %v939
  %v941 = vpop.f32.mrb[0].mxu0
  %v942 = vpop.f32.mrb[0].mxu0
  %v943 = vadd.f32 0.0, %v942
  %v944 = vpop.f32.mrb[0].mxu0
  %945 = vmatprep.mubr.bf16.mxu0 %v504
  %946 = vmatmul.mubr.bf16.gmra.mrb[0].mxu0 %v503
  %v947 = vpop.f32.mrb[0].mxu0
  %v948 = vadd.f32 0.0, %v947
  %v949 = vpop.f32.mrb[0].mxu0
  %v950 = vpop.f32.mrb[0].mxu0
  %v951 = vadd.f32 0.0, %v950
  %v952 = vpop.f32.mrb[0].mxu0
  %953 = vmatprep.mubr.bf16.mxu0 %v506
  %954 = vmatmul.mubr.bf16.gmra.mrb[0].mxu0 %v505
  %v955 = vpop.f32.mrb[0].mxu0
  %v956 = vadd.f32 0.0, %v955
  %v957 = vpop.f32.mrb[0].mxu0
  %v958 = vpop.f32.mrb[0].mxu0
  %v959 = vadd.f32 0.0, %v958
  %v960 = vpop.f32.mrb[0].mxu0
  %961 = vmatprep.mubr.bf16.mxu0 %v508
  %962 = vmatmul.mubr.bf16.gmra.mrb[0].mxu0 %v507
  %v963 = vpop.f32.mrb[0].mxu0
  %v964 = vadd.f32 0.0, %v963
  %v965 = vpop.f32.mrb[0].mxu0
  %v966 = vpop.f32.mrb[0].mxu0
  %v967 = vadd.f32 0.0, %v966
  %v968 = vpop.f32.mrb[0].mxu0
  %969 = vmatprep.mubr.bf16.mxu0 %v510
  %970 = vmatmul.mubr.bf16.gmra.mrb[0].mxu0 %v509
  %v971 = vpop.f32.mrb[0].mxu0
  %v972 = vadd.f32 0.0, %v971
  %v973 = vpop.f32.mrb[0].mxu0
  %v974 = vpop.f32.mrb[0].mxu0
  %v975 = vadd.f32 0.0, %v974
  %v976 = vpop.f32.mrb[0].mxu0
  %977 = vmatprep.mubr.bf16.mxu0 %v512
  %978 = vmatmul.mubr.bf16.gmra.mrb[0].mxu0 %v511
  %v979 = vpop.f32.mrb[0].mxu0
  %v980 = vadd.f32 0.0, %v979
  %v981 = vpop.f32.mrb[0].mxu0
  %v982 = vpop.f32.mrb[0].mxu0
  %v983 = vadd.f32 0.0, %v982
  %v984 = vpop.f32.mrb[0].mxu0
  %985 = vmatprep.mubr.bf16.mxu0 %v514
  %986 = vmatmul.mubr.bf16.gmra.mrb[0].mxu0 %v513
  %v987 = vpop.f32.mrb[0].mxu0
  %v988 = vadd.f32 0.0, %v987
  %v989 = vpop.f32.mrb[0].mxu0
  %v990 = vpop.f32.mrb[0].mxu0
  %v991 = vadd.f32 0.0, %v990
  %v992 = vpop.f32.mrb[0].mxu0
  %993 = vmatprep.mubr.bf16.mxu0 %v516
  %994 = vmatmul.mubr.bf16.gmra.mrb[0].mxu0 %v515
  %v995 = vpop.f32.mrb[0].mxu0
  %v996 = vadd.f32 0.0, %v995
  %v997 = vpop.f32.mrb[0].mxu0
  %v998 = vpop.f32.mrb[0].mxu0
  %v999 = vadd.f32 0.0, %v998
  %v1000 = vpop.f32.mrb[0].mxu0
  %1001 = vmatprep.mubr.bf16.mxu0 %v518
  %1002 = vmatmul.mubr.bf16.gmra.mrb[0].mxu0 %v517
  %v1003 = vpop.f32.mrb[0].mxu0
  %v1004 = vadd.f32 0.0, %v1003
  %v1005 = vpop.f32.mrb[0].mxu0
  %v1006 = vpop.f32.mrb[0].mxu0
  %v1007 = vadd.f32 0.0, %v1006
  %v1008 = vpop.f32.mrb[0].mxu0
  %1009 = vmatprep.mubr.bf16.mxu0 %v520
  %1010 = vmatmul.mubr.bf16.gmra.mrb[0].mxu0 %v519
  %v1011 = vpop.f32.mrb[0].mxu0
  %v1012 = vadd.f32 0.0, %v1011
  %v1013 = vpop.f32.mrb[0].mxu0
  %v1014 = vpop.f32.mrb[0].mxu0
  %v1015 = vadd.f32 0.0, %v1014
  %v1016 = vpop.f32.mrb[0].mxu0
  %1017 = vmatprep.mubr.bf16.mxu0 %v522
  %1018 = vmatmul.mubr.bf16.gmra.mrb[0].mxu0 %v521
  %v1019 = vpop.f32.mrb[0].mxu0
  %v1020 = vadd.f32 0.0, %v1019
  %v1021 = vpop.f32.mrb[0].mxu0
  %v1022 = vpop.f32.mrb[0].mxu0
  %v1023 = vadd.f32 0.0, %v1022
  %v1024 = vpop.f32.mrb[0].mxu0
  %1025 = vmatprep.mubr.bf16.mxu0 %v524
  %1026 = vmatmul.mubr.bf16.gmra.mrb[0].mxu0 %v523
  %v1027 = vpop.f32.mrb[0].mxu0
  %v1028 = vadd.f32 0.0, %v1027
  %v1029 = vpop.f32.mrb[0].mxu0
  %v1030 = vpop.f32.mrb[0].mxu0
  %v1031 = vadd.f32 0.0, %v1030
  %v1032 = vpop.f32.mrb[0].mxu0
  %1033 = vmatprep.mubr.bf16.mxu0 %v526
  %1034 = vmatmul.mubr.bf16.gmra.mrb[0].mxu0 %v525
  %v1035 = vpop.f32.mrb[0].mxu0
  %v1036 = vadd.f32 0.0, %v1035
  %v1037 = vpop.f32.mrb[0].mxu0
  %v1038 = vpop.f32.mrb[0].mxu0
  %v1039 = vadd.f32 0.0, %v1038
  %v1040 = vpop.f32.mrb[0].mxu0
  %1041 = vmatprep.mubr.bf16.mxu0 %v528
  %1042 = vmatmul.mubr.bf16.gmra.mrb[0].mxu0 %v527
  %v1043 = vpop.f32.mrb[0].mxu0
  %v1044 = vadd.f32 0.0, %v1043
  %v1045 = vpop.f32.mrb[0].mxu0
  %v1046 = vpop.f32.mrb[0].mxu0
  %v1047 = vadd.f32 0.0, %v1046
  %v1048 = vpop.f32.mrb[0].mxu0
  %1049 = vmatprep.mubr.bf16.mxu0 %v530
  %1050 = vmatmul.mubr.bf16.gmra.mrb[0].mxu0 %v529
  %v1051 = vpop.f32.mrb[0].mxu0
  %v1052 = vadd.f32 0.0, %v1051
  %v1053 = vpop.f32.mrb[0].mxu0
  %v1054 = vpop.f32.mrb[0].mxu0
  %v1055 = vadd.f32 0.0, %v1054
  %v1056 = vpop.f32.mrb[0].mxu0
  %1057 = vmatprep.mubr.bf16.mxu0 %v532
  %1058 = vmatmul.mubr.bf16.gmra.mrb[0].mxu0 %v531
  %v1059 = vpop.f32.mrb[0].mxu0
  %v1060 = vadd.f32 0.0, %v1059
  %v1061 = vpop.f32.mrb[0].mxu0
  %v1062 = vpop.f32.mrb[0].mxu0
  %v1063 = vadd.f32 0.0, %v1062
  %v1064 = vpop.f32.mrb[0].mxu0
  %1065 = vmatprep.mubr.bf16.mxu0 %v534
  %1066 = vmatmul.mubr.bf16.gmra.mrb[0].mxu0 %v533
  %v1067 = vpop.f32.mrb[0].mxu0
  %v1068 = vadd.f32 0.0, %v1067
  %v1069 = vpop.f32.mrb[0].mxu0
  %v1070 = vpop.f32.mrb[0].mxu0
  %v1071 = vadd.f32 0.0, %v1070
  %v1072 = vpop.f32.mrb[0].mxu0
  %1073 = vmatprep.mubr.bf16.mxu0 %v536
  %1074 = vmatmul.mubr.bf16.gmra.mrb[0].mxu0 %v535
  %v1075 = vpop.f32.mrb[0].mxu0
  %v1076 = vadd.f32 0.0, %v1075
  %v1077 = vpop.f32.mrb[0].mxu0
  %v1078 = vpop.f32.mrb[0].mxu0
  %v1079 = vadd.f32 0.0, %v1078
  %v1080 = vpop.f32.mrb[0].mxu0
  %1081 = vmatprep.mubr.bf16.mxu0 %v538
  %1082 = vmatmul.mubr.bf16.gmra.mrb[0].mxu0 %v537
  %v1083 = vpop.f32.mrb[0].mxu0
  %v1084 = vadd.f32 0.0, %v1083
  %v1085 = vpop.f32.mrb[0].mxu0
  %v1086 = vpop.f32.mrb[0].mxu0
  %v1087 = vadd.f32 0.0, %v1086
  %v1088 = vpop.f32.mrb[0].mxu0
  %1089 = vmatprep.mubr.bf16.mxu0 %v540
  %1090 = vmatmul.mubr.bf16.gmra.mrb[0].mxu0 %v539
  %v1091 = vpop.f32.mrb[0].mxu0
  %v1092 = vadd.f32 0.0, %v1091
  %v1093 = vpop.f32.mrb[0].mxu0
  %v1094 = vpop.f32.mrb[0].mxu0
  %v1095 = vadd.f32 0.0, %v1094
  %v1096 = vpop.f32.mrb[0].mxu0
  %1097 = vmatprep.mubr.bf16.mxu0 %v542
  %1098 = vmatmul.mubr.bf16.gmra.mrb[0].mxu0 %v541
  %v1099 = vpop.f32.mrb[0].mxu0
  %v1100 = vadd.f32 0.0, %v1099
  %v1101 = vpop.f32.mrb[0].mxu0
  %v1102 = vpop.f32.mrb[0].mxu0
  %v1103 = vadd.f32 0.0, %v1102
  %v1104 = vpop.f32.mrb[0].mxu0
  %1105 = vmatprep.mubr.bf16.mxu0 %v544
  %1106 = vmatmul.mubr.bf16.gmra.mrb[0].mxu0 %v543
  %v1107 = vpop.f32.mrb[0].mxu0
  %v1108 = vadd.f32 0.0, %v1107
  %v1109 = vpop.f32.mrb[0].mxu0
  %v1110 = vpop.f32.mrb[0].mxu0
  %v1111 = vadd.f32 0.0, %v1110
  %v1112 = vpop.f32.mrb[0].mxu0
  %1113 = vmatprep.mubr.bf16.mxu0 %v546
  %1114 = vmatmul.mubr.bf16.gmra.mrb[0].mxu0 %v545
  %v1115 = vpop.f32.mrb[0].mxu0
  %v1116 = vadd.f32 0.0, %v1115
  %v1117 = vpop.f32.mrb[0].mxu0
  %v1118 = vpop.f32.mrb[0].mxu0
  %v1119 = vadd.f32 0.0, %v1118
  %v1120 = vpop.f32.mrb[0].mxu0
  %1121 = vmatprep.mubr.bf16.mxu0 %v548
  %1122 = vmatmul.mubr.bf16.gmra.mrb[0].mxu0 %v547
  %v1123 = vpop.f32.mrb[0].mxu0
  %v1124 = vadd.f32 0.0, %v1123
  %v1125 = vpop.f32.mrb[0].mxu0
  %v1126 = vpop.f32.mrb[0].mxu0
  %v1127 = vadd.f32 0.0, %v1126
  %v1128 = vpop.f32.mrb[0].mxu0
  %1129 = vmatprep.mubr.bf16.mxu0 %v550
  %1130 = vmatmul.mubr.bf16.gmra.mrb[0].mxu0 %v549
  %v1131 = vpop.f32.mrb[0].mxu0
  %v1132 = vadd.f32 0.0, %v1131
  %v1133 = vpop.f32.mrb[0].mxu0
  %v1134 = vpop.f32.mrb[0].mxu0
  %v1135 = vadd.f32 0.0, %v1134
  %v1136 = vpop.f32.mrb[0].mxu0
  %1137 = vmatprep.mubr.bf16.mxu0 %v552
  %1138 = vmatmul.mubr.bf16.gmra.mrb[0].mxu0 %v551
  %v1139 = vpop.f32.mrb[0].mxu0
  %v1140 = vadd.f32 0.0, %v1139
  %v1141 = vpop.f32.mrb[0].mxu0
  %v1142 = vpop.f32.mrb[0].mxu0
  %v1143 = vadd.f32 0.0, %v1142
  %v1144 = vpop.f32.mrb[0].mxu0
  %1145 = vmatprep.mubr.bf16.mxu0 %v554
  %1146 = vmatmul.mubr.bf16.gmra.mrb[0].mxu0 %v553
  %v1147 = vpop.f32.mrb[0].mxu0
  %v1148 = vadd.f32 0.0, %v1147
  %v1149 = vpop.f32.mrb[0].mxu0
  %v1150 = vpop.f32.mrb[0].mxu0
  %v1151 = vadd.f32 0.0, %v1150
  %v1152 = vpop.f32.mrb[0].mxu0
  %1153 = vmatprep.mubr.bf16.mxu0 %v556
  %1154 = vmatmul.mubr.bf16.gmra.mrb[0].mxu0 %v555
  %v1155 = vpop.f32.mrb[0].mxu0
  %v1156 = vadd.f32 0.0, %v1155
  %v1157 = vpop.f32.mrb[0].mxu0
  %v1158 = vpop.f32.mrb[0].mxu0
  %v1159 = vadd.f32 0.0, %v1158
  %v1160 = vpop.f32.mrb[0].mxu0
  %1161 = vmatprep.mubr.bf16.mxu0 %v558
  %1162 = vmatmul.mubr.bf16.gmra.mrb[0].mxu0 %v557
  %v1163 = vpop.f32.mrb[0].mxu0
  %v1164 = vadd.f32 0.0, %v1163
  %v1165 = vpop.f32.mrb[0].mxu0
  %v1166 = vpop.f32.mrb[0].mxu0
  %v1167 = vadd.f32 0.0, %v1166
  %v1168 = vpop.f32.mrb[0].mxu0
  %1169 = vmatprep.mubr.bf16.mxu0 %v560
  %1170 = vmatmul.mubr.bf16.gmra.mrb[0].mxu0 %v559
  %v1171 = vpop.f32.mrb[0].mxu0
  %v1172 = vadd.f32 0.0, %v1171
  %v1173 = vpop.f32.mrb[0].mxu0
  %v1174 = vpop.f32.mrb[0].mxu0
  %v1175 = vadd.f32 0.0, %v1174
  %v1176 = vpop.f32.mrb[0].mxu0
  %1177 = vmatprep.mubr.bf16.mxu0 %v562
  %1178 = vmatmul.mubr.bf16.gmra.mrb[0].mxu0 %v561
  %v1179 = vpop.f32.mrb[0].mxu0
  %v1180 = vadd.f32 0.0, %v1179
  %v1181 = vpop.f32.mrb[0].mxu0
  %v1182 = vpop.f32.mrb[0].mxu0
  %v1183 = vadd.f32 0.0, %v1182
  %v1184 = vpop.f32.mrb[0].mxu0
  %1185 = vmatprep.mubr.bf16.mxu0 %v564
  %1186 = vmatmul.mubr.bf16.gmra.mrb[0].mxu0 %v563
  %v1187 = vpop.f32.mrb[0].mxu0
  %v1188 = vadd.f32 0.0, %v1187
  %v1189 = vpop.f32.mrb[0].mxu0
  %v1190 = vpop.f32.mrb[0].mxu0
  %v1191 = vadd.f32 0.0, %v1190
  %v1192 = vpop.f32.mrb[0].mxu0
  %1193 = vdwg.mxu0
  %v1194 = vmax.f32 %v796, %v895
  %v1195 = vmax.f32 %v1194, %v996
  %v1196 = vmax.f32 %v1195, %v1095
  %v1197 = vmax.f32 %v799, %v900
  %v1198 = vmax.f32 %v1197, %v999
  %v1199 = vmax.f32 %v1198, %v1100
  %v1200 = vmax.f32 %v804, %v903
  %v1201 = vmax.f32 %v1200, %v1004
  %v1202 = vmax.f32 %v1201, %v1103
  %v1203 = vmax.f32 %v807, %v908
  %v1204 = vmax.f32 %v1203, %v1007
  %v1205 = vmax.f32 %v1204, %v1108
  %v1206 = vmax.f32 %v812, %v911
  %v1207 = vmax.f32 %v1206, %v1012
  %v1208 = vmax.f32 %v1207, %v1111
  %v1209 = vmax.f32 %v815, %v916
  %v1210 = vmax.f32 %v1209, %v1015
  %v1211 = vmax.f32 %v1210, %v1116
  %v1212 = vmax.f32 %v820, %v919
  %v1213 = vmax.f32 %v1212, %v1020
  %v1214 = vmax.f32 %v1213, %v1119
  %v1215 = vmax.f32 %v823, %v924
  %v1216 = vmax.f32 %v1215, %v1023
  %v1217 = vmax.f32 %v1216, %v1124
  %v1218 = vmax.f32 %v828, %v927
  %v1219 = vmax.f32 %v1218, %v1028
  %v1220 = vmax.f32 %v1219, %v1127
  %v1221 = vmax.f32 %v831, %v932
  %v1222 = vmax.f32 %v1221, %v1031
  %v1223 = vmax.f32 %v1222, %v1132
  %v1224 = vmax.f32 %v836, %v935
  %v1225 = vmax.f32 %v1224, %v1036
  %v1226 = vmax.f32 %v1225, %v1135
  %v1227 = vmax.f32 %v839, %v940
  %v1228 = vmax.f32 %v1227, %v1039
  %v1229 = vmax.f32 %v1228, %v1140
  %v1230 = vmax.f32 %v844, %v943
  %v1231 = vmax.f32 %v1230, %v1044
  %v1232 = vmax.f32 %v1231, %v1143
  %v1233 = vmax.f32 %v847, %v948
  %v1234 = vmax.f32 %v1233, %v1047
  %v1235 = vmax.f32 %v1234, %v1148
  %v1236 = vmax.f32 %v852, %v951
  %v1237 = vmax.f32 %v1236, %v1052
  %v1238 = vmax.f32 %v1237, %v1151
  %v1239 = vmax.f32 %v855, %v956
  %v1240 = vmax.f32 %v1239, %v1055
  %v1241 = vmax.f32 %v1240, %v1156
  %v1242 = vmax.f32 %v860, %v959
  %v1243 = vmax.f32 %v1242, %v1060
  %v1244 = vmax.f32 %v1243, %v1159
  %v1245 = vmax.f32 %v863, %v964
  %v1246 = vmax.f32 %v1245, %v1063
  %v1247 = vmax.f32 %v1246, %v1164
  %v1248 = vmax.f32 %v868, %v967
  %v1249 = vmax.f32 %v1248, %v1068
  %v1250 = vmax.f32 %v1249, %v1167
  %v1251 = vmax.f32 %v871, %v972
  %v1252 = vmax.f32 %v1251, %v1071
  %v1253 = vmax.f32 %v1252, %v1172
  %v1254 = vmax.f32 %v876, %v975
  %v1255 = vmax.f32 %v1254, %v1076
  %v1256 = vmax.f32 %v1255, %v1175
  %v1257 = vmax.f32 %v879, %v980
  %v1258 = vmax.f32 %v1257, %v1079
  %v1259 = vmax.f32 %v1258, %v1180
  %v1260 = vmax.f32 %v884, %v983
  %v1261 = vmax.f32 %v1260, %v1084
  %v1262 = vmax.f32 %v1261, %v1183
  %v1263 = vmax.f32 %v887, %v988
  %v1264 = vmax.f32 %v1263, %v1087
  %v1265 = vmax.f32 %v1264, %v1188
  %v1266 = vmax.f32 %v892, %v991
  %v1267 = vmax.f32 %v1266, %v1092
  %v1268 = vmax.f32 %v1267, %v1191
  %v1269 = vld [vmem:[%s2] sm:$0x1]
  %v1271 = vlaneseq
  %v1272 = vshrl.u32 %v1271, 7
  %v1273 = vsub.s32 0, %v1272
  %v1274 = vrot.slane %v1269, %v1273
  %v1276 = vadd.f32 %v1196, %v1274
  %v1277 = vadd.f32 %v1199, %v1274
  %v1278 = vadd.f32 %v1202, %v1274
  %v1279 = vadd.f32 %v1205, %v1274
  %v1280 = vadd.f32 %v1208, %v1274
  %v1281 = vadd.f32 %v1211, %v1274
  %v1282 = vadd.f32 %v1214, %v1274
  %v1283 = vadd.f32 %v1217, %v1274
  %v1284 = vadd.f32 %v1220, %v1274
  %v1285 = vadd.f32 %v1223, %v1274
  %v1286 = vadd.f32 %v1226, %v1274
  %v1287 = vadd.f32 %v1229, %v1274
  %v1288 = vadd.f32 %v1232, %v1274
  %v1289 = vadd.f32 %v1235, %v1274
  %v1290 = vadd.f32 %v1238, %v1274
  %v1291 = vadd.f32 %v1241, %v1274
  %v1292 = vadd.f32 %v1244, %v1274
  %v1293 = vadd.f32 %v1247, %v1274
  %v1294 = vadd.f32 %v1250, %v1274
  %v1295 = vadd.f32 %v1253, %v1274
  %v1296 = vadd.f32 %v1256, %v1274
  %v1297 = vadd.f32 %v1259, %v1274
  %v1298 = vadd.f32 %v1262, %v1274
  %v1299 = vadd.f32 %v1265, %v1274
  %v1300 = vadd.f32 %v1268, %v1274
  %v1301 = vmax.f32 %v1276, 0.0
  %v1302 = vmax.f32 %v1277, 0.0
  %v1303 = vmax.f32 %v1278, 0.0
  %v1304 = vmax.f32 %v1279, 0.0
  %v1305 = vmax.f32 %v1280, 0.0
  %v1306 = vmax.f32 %v1281, 0.0
  %v1307 = vmax.f32 %v1282, 0.0
  %v1308 = vmax.f32 %v1283, 0.0
  %v1309 = vmax.f32 %v1284, 0.0
  %v1310 = vmax.f32 %v1285, 0.0
  %v1311 = vmax.f32 %v1286, 0.0
  %v1312 = vmax.f32 %v1287, 0.0
  %v1313 = vmax.f32 %v1288, 0.0
  %v1314 = vmax.f32 %v1289, 0.0
  %v1315 = vmax.f32 %v1290, 0.0
  %v1316 = vmax.f32 %v1291, 0.0
  %v1317 = vmax.f32 %v1292, 0.0
  %v1318 = vmax.f32 %v1293, 0.0
  %v1319 = vmax.f32 %v1294, 0.0
  %v1320 = vmax.f32 %v1295, 0.0
  %v1321 = vmax.f32 %v1296, 0.0
  %v1322 = vmax.f32 %v1297, 0.0
  %v1323 = vmax.f32 %v1298, 0.0
  %v1324 = vmax.f32 %v1299, 0.0
  %v1325 = vmax.f32 %v1300, 0.0
  %v1326 = vld [vmem:[%s3] sm:$0xff]
  %v1327 = vld [vmem:[%s3 + $0x8] sm:$0xff]
  %v1328 = vld [vmem:[%s3 + $0x10] sm:$0xff]
  %v1329 = vld [vmem:[%s3 + $0x18] sm:$0xff]
  %v1330 = vld [vmem:[%s3 + $0x20] sm:$0xff]
  %v1331 = vld [vmem:[%s3 + $0x28] sm:$0xff]
  %v1332 = vld [vmem:[%s3 + $0x30] sm:$0xff]
  %v1333 = vld [vmem:[%s3 + $0x38] sm:$0xff]
  %v1334 = vld [vmem:[%s3 + $0x40] sm:$0xff]
  %v1335 = vld [vmem:[%s3 + $0x48] sm:$0xff]
  %v1336 = vld [vmem:[%s3 + $0x50] sm:$0xff]
  %v1337 = vld [vmem:[%s3 + $0x58] sm:$0xff]
  %v1338 = vld [vmem:[%s3 + $0x60] sm:$0xff]
  %v1339 = vld [vmem:[%s3 + $0x68] sm:$0xff]
  %v1340 = vld [vmem:[%s3 + $0x70] sm:$0xff]
  %v1341 = vld [vmem:[%s3 + $0x78] sm:$0xff]
  %v1342 = vld [vmem:[%s3 + $0x80] sm:$0xff]
  %v1343 = vld [vmem:[%s3 + $0x88] sm:$0xff]
  %v1344 = vld [vmem:[%s3 + $0x90] sm:$0xff]
  %v1345 = vld [vmem:[%s3 + $0x98] sm:$0xff]
  %v1346 = vld [vmem:[%s3 + $0xa0] sm:$0xff]
  %v1347 = vld [vmem:[%s3 + $0xa8] sm:$0xff]
  %v1348 = vld [vmem:[%s3 + $0xb0] sm:$0xff]
  %v1349 = vld [vmem:[%s3 + $0xb8] sm:$0xff]
  %v1350 = vld [vmem:[%s3 + $0xc0] sm:$0xff]
  %v1351 = vld [vmem:[%s3 + $0xc8] sm:$0xff]
  %v1352 = vld [vmem:[%s3 + $0xd0] sm:$0xff]
  %v1353 = vld [vmem:[%s3 + $0xd8] sm:$0xff]
  %v1354 = vld [vmem:[%s3 + $0xe0] sm:$0xff]
  %v1355 = vld [vmem:[%s3 + $0xe8] sm:$0xff]
  %v1356 = vld [vmem:[%s3 + $0xf0] sm:$0xff]
  %v1357 = vld [vmem:[%s3 + $0xf8] sm:$0xff]
  %1358 = vmatprep.subr.mxu0 0.0
  %1359 = vmatpush1.msra.mxu0 %v1342
  %1360 = vmatprep.subr.mxu0 0.0
  %1361 = vmatpush1.msra.mxu0 %v1343
  %1362 = vmatprep.subr.mxu0 0.0
  %1363 = vmatpush1.msra.mxu0 %v1344
  %1364 = vmatprep.subr.mxu0 0.0
  %1365 = vmatpush1.msra.mxu0 %v1345
  %1366 = vmatprep.subr.mxu0 0.0
  %1367 = vmatpush1.msra.mxu0 %v1346
  %1368 = vmatprep.subr.mxu0 0.0
  %1369 = vmatpush1.msra.mxu0 %v1347
  %1370 = vmatprep.subr.mxu0 0.0
  %1371 = vmatpush1.msra.mxu0 %v1348
  %1372 = vmatprep.subr.mxu0 0.0
  %1373 = vmatpush1.msra.mxu0 %v1349
  %1374 = vmatprep.subr.mxu0 0.0
  %1375 = vmatpush1.msra.mxu0 %v1350
  %1376 = vmatprep.subr.mxu0 0.0
  %1377 = vmatpush1.msra.mxu0 %v1351
  %1378 = vmatprep.subr.mxu0 0.0
  %1379 = vmatpush1.msra.mxu0 %v1352
  %1380 = vmatprep.subr.mxu0 0.0
  %1381 = vmatpush1.msra.mxu0 %v1353
  %1382 = vmatprep.subr.mxu0 0.0
  %1383 = vmatpush1.msra.mxu0 %v1354
  %1384 = vmatprep.subr.mxu0 0.0
  %1385 = vmatpush1.msra.mxu0 %v1355
  %1386 = vmatprep.subr.mxu0 0.0
  %1387 = vmatpush1.msra.mxu0 %v1356
  %1388 = vmatprep.subr.mxu0 0.0
  %1389 = vmatpush1.msra.mxu0 %v1357
  %1390 = vmatprep.subr.mxu0 0.0
  %1391 = vmatpush1.msra.mxu0 0.0
  %1392 = vmatprep.subr.mxu0 0.0
  %1393 = vmatpush1.msra.mxu0 0.0
  %1394 = vmatprep.subr.mxu0 0.0
  %1395 = vmatpush1.msra.mxu0 0.0
  %1396 = vmatprep.subr.mxu0 0.0
  %1397 = vmatpush1.msra.mxu0 0.0
  %1398 = vmatprep.subr.mxu0 0.0
  %1399 = vmatpush1.msra.mxu0 0.0
  %1400 = vmatprep.subr.mxu0 0.0
  %1401 = vmatpush1.msra.mxu0 0.0
  %1402 = vmatprep.subr.mxu0 0.0
  %1403 = vmatpush1.msra.mxu0 0.0
  %1404 = vmatprep.subr.mxu0 0.0
  %1405 = vmatpush1.msra.mxu0 0.0
  %1406 = vmatprep.subr.mxu0 0.0
  %1407 = vmatpush1.msra.mxu0 0.0
  %1408 = vmatprep.subr.mxu0 0.0
  %1409 = vmatpush1.msra.mxu0 0.0
  %1410 = vmatprep.subr.mxu0 0.0
  %1411 = vmatpush1.msra.mxu0 0.0
  %1412 = vmatprep.subr.mxu0 0.0
  %1413 = vmatpush1.msra.mxu0 0.0
  %1414 = vmatprep.subr.mxu0 0.0
  %1415 = vmatpush1.msra.mxu0 0.0
  %1416 = vmatprep.subr.mxu0 0.0
  %1417 = vmatpush1.msra.mxu0 0.0
  %1418 = vmatprep.subr.mxu0 0.0
  %1419 = vmatpush1.msra.mxu0 0.0
  %1420 = vmatprep.subr.mxu0 0.0
  %1421 = vmatpush1.msra.mxu0 0.0
  %1422 = vmatprep.mubr.f32.mxu0 0.0
  %1423 = vmatmul.mubr.f32.gmra.mrb[0].mxu0 %v1302
  %v1424 = vpop.f32.mrb[0].mxu0
  %v1425 = vadd.f32 0.0, %v1424
  %v1426 = vpop.f32.mrb[0].mxu0
  %1427 = vdwg.mxu0
  %1428 = vmatprep.subr.mxu0 0.0
  %1429 = vmatpush1.msra.mxu0 %v1326
  %1430 = vmatprep.subr.mxu0 0.0
  %1431 = vmatpush1.msra.mxu0 %v1327
  %1432 = vmatprep.subr.mxu0 0.0
  %1433 = vmatpush1.msra.mxu0 %v1328
  %1434 = vmatprep.subr.mxu0 0.0
  %1435 = vmatpush1.msra.mxu0 %v1329
  %1436 = vmatprep.subr.mxu0 0.0
  %1437 = vmatpush1.msra.mxu0 %v1330
  %1438 = vmatprep.subr.mxu0 0.0
  %1439 = vmatpush1.msra.mxu0 %v1331
  %1440 = vmatprep.subr.mxu0 0.0
  %1441 = vmatpush1.msra.mxu0 %v1332
  %1442 = vmatprep.subr.mxu0 0.0
  %1443 = vmatpush1.msra.mxu0 %v1333
  %1444 = vmatprep.subr.mxu0 0.0
  %1445 = vmatpush1.msra.mxu0 %v1334
  %1446 = vmatprep.subr.mxu0 0.0
  %1447 = vmatpush1.msra.mxu0 %v1335
  %1448 = vmatprep.subr.mxu0 0.0
  %1449 = vmatpush1.msra.mxu0 %v1336
  %1450 = vmatprep.subr.mxu0 0.0
  %1451 = vmatpush1.msra.mxu0 %v1337
  %1452 = vmatprep.subr.mxu0 0.0
  %1453 = vmatpush1.msra.mxu0 %v1338
  %1454 = vmatprep.subr.mxu0 0.0
  %1455 = vmatpush1.msra.mxu0 %v1339
  %1456 = vmatprep.subr.mxu0 0.0
  %1457 = vmatpush1.msra.mxu0 %v1340
  %1458 = vmatprep.subr.mxu0 0.0
  %1459 = vmatpush1.msra.mxu0 %v1341
  %1460 = vmatprep.subr.mxu0 0.0
  %1461 = vmatpush1.msra.mxu0 0.0
  %1462 = vmatprep.subr.mxu0 0.0
  %1463 = vmatpush1.msra.mxu0 0.0
  %1464 = vmatprep.subr.mxu0 0.0
  %1465 = vmatpush1.msra.mxu0 0.0
  %1466 = vmatprep.subr.mxu0 0.0
  %1467 = vmatpush1.msra.mxu0 0.0
  %1468 = vmatprep.subr.mxu0 0.0
  %1469 = vmatpush1.msra.mxu0 0.0
  %1470 = vmatprep.subr.mxu0 0.0
  %1471 = vmatpush1.msra.mxu0 0.0
  %1472 = vmatprep.subr.mxu0 0.0
  %1473 = vmatpush1.msra.mxu0 0.0
  %1474 = vmatprep.subr.mxu0 0.0
  %1475 = vmatpush1.msra.mxu0 0.0
  %1476 = vmatprep.subr.mxu0 0.0
  %1477 = vmatpush1.msra.mxu0 0.0
  %1478 = vmatprep.subr.mxu0 0.0
  %1479 = vmatpush1.msra.mxu0 0.0
  %1480 = vmatprep.subr.mxu0 0.0
  %1481 = vmatpush1.msra.mxu0 0.0
  %1482 = vmatprep.subr.mxu0 0.0
  %1483 = vmatpush1.msra.mxu0 0.0
  %1484 = vmatprep.subr.mxu0 0.0
  %1485 = vmatpush1.msra.mxu0 0.0
  %1486 = vmatprep.subr.mxu0 0.0
  %1487 = vmatpush1.msra.mxu0 0.0
  %1488 = vmatprep.subr.mxu0 0.0
  %1489 = vmatpush1.msra.mxu0 0.0
  %1490 = vmatprep.subr.mxu0 0.0
  %1491 = vmatpush1.msra.mxu0 0.0
  %1492 = vmatprep.mubr.f32.mxu0 0.0
  %1493 = vmatmul.mubr.f32.gmra.mrb[0].mxu0 %v1301
  %v1494 = vpop.f32.mrb[0].mxu0
  %v1495 = vadd.f32 %v1425, %v1494
  %v1496 = vpop.f32.mrb[0].mxu0
  %1497 = vdwg.mxu0
  %v1498 = vld [vmem:[%s3 + $0x100] sm:$0xff]
  %v1499 = vld [vmem:[%s3 + $0x108] sm:$0xff]
  %v1500 = vld [vmem:[%s3 + $0x110] sm:$0xff]
  %v1501 = vld [vmem:[%s3 + $0x118] sm:$0xff]
  %v1502 = vld [vmem:[%s3 + $0x120] sm:$0xff]
  %v1503 = vld [vmem:[%s3 + $0x128] sm:$0xff]
  %v1504 = vld [vmem:[%s3 + $0x130] sm:$0xff]
  %v1505 = vld [vmem:[%s3 + $0x138] sm:$0xff]
  %v1506 = vld [vmem:[%s3 + $0x140] sm:$0xff]
  %v1507 = vld [vmem:[%s3 + $0x148] sm:$0xff]
  %v1508 = vld [vmem:[%s3 + $0x150] sm:$0xff]
  %v1509 = vld [vmem:[%s3 + $0x158] sm:$0xff]
  %v1510 = vld [vmem:[%s3 + $0x160] sm:$0xff]
  %v1511 = vld [vmem:[%s3 + $0x168] sm:$0xff]
  %v1512 = vld [vmem:[%s3 + $0x170] sm:$0xff]
  %v1513 = vld [vmem:[%s3 + $0x178] sm:$0xff]
  %1514 = vmatprep.subr.mxu0 0.0
  %1515 = vmatpush1.msra.mxu0 %v1498
  %1516 = vmatprep.subr.mxu0 0.0
  %1517 = vmatpush1.msra.mxu0 %v1499
  %1518 = vmatprep.subr.mxu0 0.0
  %1519 = vmatpush1.msra.mxu0 %v1500
  %1520 = vmatprep.subr.mxu0 0.0
  %1521 = vmatpush1.msra.mxu0 %v1501
  %1522 = vmatprep.subr.mxu0 0.0
  %1523 = vmatpush1.msra.mxu0 %v1502
  %1524 = vmatprep.subr.mxu0 0.0
  %1525 = vmatpush1.msra.mxu0 %v1503
  %1526 = vmatprep.subr.mxu0 0.0
  %1527 = vmatpush1.msra.mxu0 %v1504
  %1528 = vmatprep.subr.mxu0 0.0
  %1529 = vmatpush1.msra.mxu0 %v1505
  %1530 = vmatprep.subr.mxu0 0.0
  %1531 = vmatpush1.msra.mxu0 %v1506
  %1532 = vmatprep.subr.mxu0 0.0
  %1533 = vmatpush1.msra.mxu0 %v1507
  %1534 = vmatprep.subr.mxu0 0.0
  %1535 = vmatpush1.msra.mxu0 %v1508
  %1536 = vmatprep.subr.mxu0 0.0
  %1537 = vmatpush1.msra.mxu0 %v1509
  %1538 = vmatprep.subr.mxu0 0.0
  %1539 = vmatpush1.msra.mxu0 %v1510
  %1540 = vmatprep.subr.mxu0 0.0
  %1541 = vmatpush1.msra.mxu0 %v1511
  %1542 = vmatprep.subr.mxu0 0.0
  %1543 = vmatpush1.msra.mxu0 %v1512
  %1544 = vmatprep.subr.mxu0 0.0
  %1545 = vmatpush1.msra.mxu0 %v1513
  %1546 = vmatprep.subr.mxu0 0.0
  %1547 = vmatpush1.msra.mxu0 0.0
  %1548 = vmatprep.subr.mxu0 0.0
  %1549 = vmatpush1.msra.mxu0 0.0
  %1550 = vmatprep.subr.mxu0 0.0
  %1551 = vmatpush1.msra.mxu0 0.0
  %1552 = vmatprep.subr.mxu0 0.0
  %1553 = vmatpush1.msra.mxu0 0.0
  %1554 = vmatprep.subr.mxu0 0.0
  %1555 = vmatpush1.msra.mxu0 0.0
  %1556 = vmatprep.subr.mxu0 0.0
  %1557 = vmatpush1.msra.mxu0 0.0
  %1558 = vmatprep.subr.mxu0 0.0
  %1559 = vmatpush1.msra.mxu0 0.0
  %1560 = vmatprep.subr.mxu0 0.0
  %1561 = vmatpush1.msra.mxu0 0.0
  %1562 = vmatprep.subr.mxu0 0.0
  %1563 = vmatpush1.msra.mxu0 0.0
  %1564 = vmatprep.subr.mxu0 0.0
  %1565 = vmatpush1.msra.mxu0 0.0
  %1566 = vmatprep.subr.mxu0 0.0
  %1567 = vmatpush1.msra.mxu0 0.0
  %1568 = vmatprep.subr.mxu0 0.0
  %1569 = vmatpush1.msra.mxu0 0.0
  %1570 = vmatprep.subr.mxu0 0.0
  %1571 = vmatpush1.msra.mxu0 0.0
  %1572 = vmatprep.subr.mxu0 0.0
  %1573 = vmatpush1.msra.mxu0 0.0
  %1574 = vmatprep.subr.mxu0 0.0
  %1575 = vmatpush1.msra.mxu0 0.0
  %1576 = vmatprep.subr.mxu0 0.0
  %1577 = vmatpush1.msra.mxu0 0.0
  %1578 = vmatprep.mubr.f32.mxu0 0.0
  %1579 = vmatmul.mubr.f32.gmra.mrb[0].mxu0 %v1303
  %v1580 = vpop.f32.mrb[0].mxu0
  %v1581 = vadd.f32 0.0, %v1580
  %v1582 = vpop.f32.mrb[0].mxu0
  %1583 = vdwg.mxu0
  %v1584 = vadd.f32 %v1495, %v1581
  %v1585 = vld [vmem:[%s3 + $0x180] sm:$0xff]
  %v1586 = vld [vmem:[%s3 + $0x188] sm:$0xff]
  %v1587 = vld [vmem:[%s3 + $0x190] sm:$0xff]
  %v1588 = vld [vmem:[%s3 + $0x198] sm:$0xff]
  %v1589 = vld [vmem:[%s3 + $0x1a0] sm:$0xff]
  %v1590 = vld [vmem:[%s3 + $0x1a8] sm:$0xff]
  %v1591 = vld [vmem:[%s3 + $0x1b0] sm:$0xff]
  %v1592 = vld [vmem:[%s3 + $0x1b8] sm:$0xff]
  %v1593 = vld [vmem:[%s3 + $0x1c0] sm:$0xff]
  %v1594 = vld [vmem:[%s3 + $0x1c8] sm:$0xff]
  %v1595 = vld [vmem:[%s3 + $0x1d0] sm:$0xff]
  %v1596 = vld [vmem:[%s3 + $0x1d8] sm:$0xff]
  %v1597 = vld [vmem:[%s3 + $0x1e0] sm:$0xff]
  %v1598 = vld [vmem:[%s3 + $0x1e8] sm:$0xff]
  %v1599 = vld [vmem:[%s3 + $0x1f0] sm:$0xff]
  %v1600 = vld [vmem:[%s3 + $0x1f8] sm:$0xff]
  %1601 = vmatprep.subr.mxu0 0.0
  %1602 = vmatpush1.msra.mxu0 %v1585
  %1603 = vmatprep.subr.mxu0 0.0
  %1604 = vmatpush1.msra.mxu0 %v1586
  %1605 = vmatprep.subr.mxu0 0.0
  %1606 = vmatpush1.msra.mxu0 %v1587
  %1607 = vmatprep.subr.mxu0 0.0
  %1608 = vmatpush1.msra.mxu0 %v1588
  %1609 = vmatprep.subr.mxu0 0.0
  %1610 = vmatpush1.msra.mxu0 %v1589
  %1611 = vmatprep.subr.mxu0 0.0
  %1612 = vmatpush1.msra.mxu0 %v1590
  %1613 = vmatprep.subr.mxu0 0.0
  %1614 = vmatpush1.msra.mxu0 %v1591
  %1615 = vmatprep.subr.mxu0 0.0
  %1616 = vmatpush1.msra.mxu0 %v1592
  %1617 = vmatprep.subr.mxu0 0.0
  %1618 = vmatpush1.msra.mxu0 %v1593
  %1619 = vmatprep.subr.mxu0 0.0
  %1620 = vmatpush1.msra.mxu0 %v1594
  %1621 = vmatprep.subr.mxu0 0.0
  %1622 = vmatpush1.msra.mxu0 %v1595
  %1623 = vmatprep.subr.mxu0 0.0
  %1624 = vmatpush1.msra.mxu0 %v1596
  %1625 = vmatprep.subr.mxu0 0.0
  %1626 = vmatpush1.msra.mxu0 %v1597
  %1627 = vmatprep.subr.mxu0 0.0
  %1628 = vmatpush1.msra.mxu0 %v1598
  %1629 = vmatprep.subr.mxu0 0.0
  %1630 = vmatpush1.msra.mxu0 %v1599
  %1631 = vmatprep.subr.mxu0 0.0
  %1632 = vmatpush1.msra.mxu0 %v1600
  %1633 = vmatprep.subr.mxu0 0.0
  %1634 = vmatpush1.msra.mxu0 0.0
  %1635 = vmatprep.subr.mxu0 0.0
  %1636 = vmatpush1.msra.mxu0 0.0
  %1637 = vmatprep.subr.mxu0 0.0
  %1638 = vmatpush1.msra.mxu0 0.0
  %1639 = vmatprep.subr.mxu0 0.0
  %1640 = vmatpush1.msra.mxu0 0.0
  %1641 = vmatprep.subr.mxu0 0.0
  %1642 = vmatpush1.msra.mxu0 0.0
  %1643 = vmatprep.subr.mxu0 0.0
  %1644 = vmatpush1.msra.mxu0 0.0
  %1645 = vmatprep.subr.mxu0 0.0
  %1646 = vmatpush1.msra.mxu0 0.0
  %1647 = vmatprep.subr.mxu0 0.0
  %1648 = vmatpush1.msra.mxu0 0.0
  %1649 = vmatprep.subr.mxu0 0.0
  %1650 = vmatpush1.msra.mxu0 0.0
  %1651 = vmatprep.subr.mxu0 0.0
  %1652 = vmatpush1.msra.mxu0 0.0
  %1653 = vmatprep.subr.mxu0 0.0
  %1654 = vmatpush1.msra.mxu0 0.0
  %1655 = vmatprep.subr.mxu0 0.0
  %1656 = vmatpush1.msra.mxu0 0.0
  %1657 = vmatprep.subr.mxu0 0.0
  %1658 = vmatpush1.msra.mxu0 0.0
  %1659 = vmatprep.subr.mxu0 0.0
  %1660 = vmatpush1.msra.mxu0 0.0
  %1661 = vmatprep.subr.mxu0 0.0
  %1662 = vmatpush1.msra.mxu0 0.0
  %1663 = vmatprep.subr.mxu0 0.0
  %1664 = vmatpush1.msra.mxu0 0.0
  %1665 = vmatprep.mubr.f32.mxu0 0.0
  %1666 = vmatmul.mubr.f32.gmra.mrb[0].mxu0 %v1304
  %v1667 = vpop.f32.mrb[0].mxu0
  %v1668 = vadd.f32 0.0, %v1667
  %v1669 = vpop.f32.mrb[0].mxu0
  %1670 = vdwg.mxu0
  %v1671 = vadd.f32 %v1584, %v1668
  %v1672 = vld [vmem:[%s3 + $0x200] sm:$0xff]
  %v1673 = vld [vmem:[%s3 + $0x208] sm:$0xff]
  %v1674 = vld [vmem:[%s3 + $0x210] sm:$0xff]
  %v1675 = vld [vmem:[%s3 + $0x218] sm:$0xff]
  %v1676 = vld [vmem:[%s3 + $0x220] sm:$0xff]
  %v1677 = vld [vmem:[%s3 + $0x228] sm:$0xff]
  %v1678 = vld [vmem:[%s3 + $0x230] sm:$0xff]
  %v1679 = vld [vmem:[%s3 + $0x238] sm:$0xff]
  %v1680 = vld [vmem:[%s3 + $0x240] sm:$0xff]
  %v1681 = vld [vmem:[%s3 + $0x248] sm:$0xff]
  %v1682 = vld [vmem:[%s3 + $0x250] sm:$0xff]
  %v1683 = vld [vmem:[%s3 + $0x258] sm:$0xff]
  %v1684 = vld [vmem:[%s3 + $0x260] sm:$0xff]
  %v1685 = vld [vmem:[%s3 + $0x268] sm:$0xff]
  %v1686 = vld [vmem:[%s3 + $0x270] sm:$0xff]
  %v1687 = vld [vmem:[%s3 + $0x278] sm:$0xff]
  %1688 = vmatprep.subr.mxu0 0.0
  %1689 = vmatpush1.msra.mxu0 %v1672
  %1690 = vmatprep.subr.mxu0 0.0
  %1691 = vmatpush1.msra.mxu0 %v1673
  %1692 = vmatprep.subr.mxu0 0.0
  %1693 = vmatpush1.msra.mxu0 %v1674
  %1694 = vmatprep.subr.mxu0 0.0
  %1695 = vmatpush1.msra.mxu0 %v1675
  %1696 = vmatprep.subr.mxu0 0.0
  %1697 = vmatpush1.msra.mxu0 %v1676
  %1698 = vmatprep.subr.mxu0 0.0
  %1699 = vmatpush1.msra.mxu0 %v1677
  %1700 = vmatprep.subr.mxu0 0.0
  %1701 = vmatpush1.msra.mxu0 %v1678
  %1702 = vmatprep.subr.mxu0 0.0
  %1703 = vmatpush1.msra.mxu0 %v1679
  %1704 = vmatprep.subr.mxu0 0.0
  %1705 = vmatpush1.msra.mxu0 %v1680
  %1706 = vmatprep.subr.mxu0 0.0
  %1707 = vmatpush1.msra.mxu0 %v1681
  %1708 = vmatprep.subr.mxu0 0.0
  %1709 = vmatpush1.msra.mxu0 %v1682
  %1710 = vmatprep.subr.mxu0 0.0
  %1711 = vmatpush1.msra.mxu0 %v1683
  %1712 = vmatprep.subr.mxu0 0.0
  %1713 = vmatpush1.msra.mxu0 %v1684
  %1714 = vmatprep.subr.mxu0 0.0
  %1715 = vmatpush1.msra.mxu0 %v1685
  %1716 = vmatprep.subr.mxu0 0.0
  %1717 = vmatpush1.msra.mxu0 %v1686
  %1718 = vmatprep.subr.mxu0 0.0
  %1719 = vmatpush1.msra.mxu0 %v1687
  %1720 = vmatprep.subr.mxu0 0.0
  %1721 = vmatpush1.msra.mxu0 0.0
  %1722 = vmatprep.subr.mxu0 0.0
  %1723 = vmatpush1.msra.mxu0 0.0
  %1724 = vmatprep.subr.mxu0 0.0
  %1725 = vmatpush1.msra.mxu0 0.0
  %1726 = vmatprep.subr.mxu0 0.0
  %1727 = vmatpush1.msra.mxu0 0.0
  %1728 = vmatprep.subr.mxu0 0.0
  %1729 = vmatpush1.msra.mxu0 0.0
  %1730 = vmatprep.subr.mxu0 0.0
  %1731 = vmatpush1.msra.mxu0 0.0
  %1732 = vmatprep.subr.mxu0 0.0
  %1733 = vmatpush1.msra.mxu0 0.0
  %1734 = vmatprep.subr.mxu0 0.0
  %1735 = vmatpush1.msra.mxu0 0.0
  %1736 = vmatprep.subr.mxu0 0.0
  %1737 = vmatpush1.msra.mxu0 0.0
  %1738 = vmatprep.subr.mxu0 0.0
  %1739 = vmatpush1.msra.mxu0 0.0
  %1740 = vmatprep.subr.mxu0 0.0
  %1741 = vmatpush1.msra.mxu0 0.0
  %1742 = vmatprep.subr.mxu0 0.0
  %1743 = vmatpush1.msra.mxu0 0.0
  %1744 = vmatprep.subr.mxu0 0.0
  %1745 = vmatpush1.msra.mxu0 0.0
  %1746 = vmatprep.subr.mxu0 0.0
  %1747 = vmatpush1.msra.mxu0 0.0
  %1748 = vmatprep.subr.mxu0 0.0
  %1749 = vmatpush1.msra.mxu0 0.0
  %1750 = vmatprep.subr.mxu0 0.0
  %1751 = vmatpush1.msra.mxu0 0.0
  %1752 = vmatprep.mubr.f32.mxu0 0.0
  %1753 = vmatmul.mubr.f32.gmra.mrb[0].mxu0 %v1305
  %v1754 = vpop.f32.mrb[0].mxu0
  %v1755 = vadd.f32 0.0, %v1754
  %v1756 = vpop.f32.mrb[0].mxu0
  %1757 = vdwg.mxu0
  %v1758 = vadd.f32 %v1671, %v1755
  %v1759 = vld [vmem:[%s3 + $0x280] sm:$0xff]
  %v1760 = vld [vmem:[%s3 + $0x288] sm:$0xff]
  %v1761 = vld [vmem:[%s3 + $0x290] sm:$0xff]
  %v1762 = vld [vmem:[%s3 + $0x298] sm:$0xff]
  %v1763 = vld [vmem:[%s3 + $0x2a0] sm:$0xff]
  %v1764 = vld [vmem:[%s3 + $0x2a8] sm:$0xff]
  %v1765 = vld [vmem:[%s3 + $0x2b0] sm:$0xff]
  %v1766 = vld [vmem:[%s3 + $0x2b8] sm:$0xff]
  %v1767 = vld [vmem:[%s3 + $0x2c0] sm:$0xff]
  %v1768 = vld [vmem:[%s3 + $0x2c8] sm:$0xff]
  %v1769 = vld [vmem:[%s3 + $0x2d0] sm:$0xff]
  %v1770 = vld [vmem:[%s3 + $0x2d8] sm:$0xff]
  %v1771 = vld [vmem:[%s3 + $0x2e0] sm:$0xff]
  %v1772 = vld [vmem:[%s3 + $0x2e8] sm:$0xff]
  %v1773 = vld [vmem:[%s3 + $0x2f0] sm:$0xff]
  %v1774 = vld [vmem:[%s3 + $0x2f8] sm:$0xff]
  %1775 = vmatprep.subr.mxu0 0.0
  %1776 = vmatpush1.msra.mxu0 %v1759
  %1777 = vmatprep.subr.mxu0 0.0
  %1778 = vmatpush1.msra.mxu0 %v1760
  %1779 = vmatprep.subr.mxu0 0.0
  %1780 = vmatpush1.msra.mxu0 %v1761
  %1781 = vmatprep.subr.mxu0 0.0
  %1782 = vmatpush1.msra.mxu0 %v1762
  %1783 = vmatprep.subr.mxu0 0.0
  %1784 = vmatpush1.msra.mxu0 %v1763
  %1785 = vmatprep.subr.mxu0 0.0
  %1786 = vmatpush1.msra.mxu0 %v1764
  %1787 = vmatprep.subr.mxu0 0.0
  %1788 = vmatpush1.msra.mxu0 %v1765
  %1789 = vmatprep.subr.mxu0 0.0
  %1790 = vmatpush1.msra.mxu0 %v1766
  %1791 = vmatprep.subr.mxu0 0.0
  %1792 = vmatpush1.msra.mxu0 %v1767
  %1793 = vmatprep.subr.mxu0 0.0
  %1794 = vmatpush1.msra.mxu0 %v1768
  %1795 = vmatprep.subr.mxu0 0.0
  %1796 = vmatpush1.msra.mxu0 %v1769
  %1797 = vmatprep.subr.mxu0 0.0
  %1798 = vmatpush1.msra.mxu0 %v1770
  %1799 = vmatprep.subr.mxu0 0.0
  %1800 = vmatpush1.msra.mxu0 %v1771
  %1801 = vmatprep.subr.mxu0 0.0
  %1802 = vmatpush1.msra.mxu0 %v1772
  %1803 = vmatprep.subr.mxu0 0.0
  %1804 = vmatpush1.msra.mxu0 %v1773
  %1805 = vmatprep.subr.mxu0 0.0
  %1806 = vmatpush1.msra.mxu0 %v1774
  %1807 = vmatprep.subr.mxu0 0.0
  %1808 = vmatpush1.msra.mxu0 0.0
  %1809 = vmatprep.subr.mxu0 0.0
  %1810 = vmatpush1.msra.mxu0 0.0
  %1811 = vmatprep.subr.mxu0 0.0
  %1812 = vmatpush1.msra.mxu0 0.0
  %1813 = vmatprep.subr.mxu0 0.0
  %1814 = vmatpush1.msra.mxu0 0.0
  %1815 = vmatprep.subr.mxu0 0.0
  %1816 = vmatpush1.msra.mxu0 0.0
  %1817 = vmatprep.subr.mxu0 0.0
  %1818 = vmatpush1.msra.mxu0 0.0
  %1819 = vmatprep.subr.mxu0 0.0
  %1820 = vmatpush1.msra.mxu0 0.0
  %1821 = vmatprep.subr.mxu0 0.0
  %1822 = vmatpush1.msra.mxu0 0.0
  %1823 = vmatprep.subr.mxu0 0.0
  %1824 = vmatpush1.msra.mxu0 0.0
  %1825 = vmatprep.subr.mxu0 0.0
  %1826 = vmatpush1.msra.mxu0 0.0
  %1827 = vmatprep.subr.mxu0 0.0
  %1828 = vmatpush1.msra.mxu0 0.0
  %1829 = vmatprep.subr.mxu0 0.0
  %1830 = vmatpush1.msra.mxu0 0.0
  %1831 = vmatprep.subr.mxu0 0.0
  %1832 = vmatpush1.msra.mxu0 0.0
  %1833 = vmatprep.subr.mxu0 0.0
  %1834 = vmatpush1.msra.mxu0 0.0
  %1835 = vmatprep.subr.mxu0 0.0
  %1836 = vmatpush1.msra.mxu0 0.0
  %1837 = vmatprep.subr.mxu0 0.0
  %1838 = vmatpush1.msra.mxu0 0.0
  %1839 = vmatprep.mubr.f32.mxu0 0.0
  %1840 = vmatmul.mubr.f32.gmra.mrb[0].mxu0 %v1306
  %v1841 = vpop.f32.mrb[0].mxu0
  %v1842 = vadd.f32 0.0, %v1841
  %v1843 = vpop.f32.mrb[0].mxu0
  %1844 = vdwg.mxu0
  %v1845 = vadd.f32 %v1758, %v1842
  %v1846 = vld [vmem:[%s3 + $0x300] sm:$0xff]
  %v1847 = vld [vmem:[%s3 + $0x308] sm:$0xff]
  %v1848 = vld [vmem:[%s3 + $0x310] sm:$0xff]
  %v1849 = vld [vmem:[%s3 + $0x318] sm:$0xff]
  %v1850 = vld [vmem:[%s3 + $0x320] sm:$0xff]
  %v1851 = vld [vmem:[%s3 + $0x328] sm:$0xff]
  %v1852 = vld [vmem:[%s3 + $0x330] sm:$0xff]
  %v1853 = vld [vmem:[%s3 + $0x338] sm:$0xff]
  %v1854 = vld [vmem:[%s3 + $0x340] sm:$0xff]
  %v1855 = vld [vmem:[%s3 + $0x348] sm:$0xff]
  %v1856 = vld [vmem:[%s3 + $0x350] sm:$0xff]
  %v1857 = vld [vmem:[%s3 + $0x358] sm:$0xff]
  %v1858 = vld [vmem:[%s3 + $0x360] sm:$0xff]
  %v1859 = vld [vmem:[%s3 + $0x368] sm:$0xff]
  %v1860 = vld [vmem:[%s3 + $0x370] sm:$0xff]
  %v1861 = vld [vmem:[%s3 + $0x378] sm:$0xff]
  %1862 = vmatprep.subr.mxu0 0.0
  %1863 = vmatpush1.msra.mxu0 %v1846
  %1864 = vmatprep.subr.mxu0 0.0
  %1865 = vmatpush1.msra.mxu0 %v1847
  %1866 = vmatprep.subr.mxu0 0.0
  %1867 = vmatpush1.msra.mxu0 %v1848
  %1868 = vmatprep.subr.mxu0 0.0
  %1869 = vmatpush1.msra.mxu0 %v1849
  %1870 = vmatprep.subr.mxu0 0.0
  %1871 = vmatpush1.msra.mxu0 %v1850
  %1872 = vmatprep.subr.mxu0 0.0
  %1873 = vmatpush1.msra.mxu0 %v1851
  %1874 = vmatprep.subr.mxu0 0.0
  %1875 = vmatpush1.msra.mxu0 %v1852
  %1876 = vmatprep.subr.mxu0 0.0
  %1877 = vmatpush1.msra.mxu0 %v1853
  %1878 = vmatprep.subr.mxu0 0.0
  %1879 = vmatpush1.msra.mxu0 %v1854
  %1880 = vmatprep.subr.mxu0 0.0
  %1881 = vmatpush1.msra.mxu0 %v1855
  %1882 = vmatprep.subr.mxu0 0.0
  %1883 = vmatpush1.msra.mxu0 %v1856
  %1884 = vmatprep.subr.mxu0 0.0
  %1885 = vmatpush1.msra.mxu0 %v1857
  %1886 = vmatprep.subr.mxu0 0.0
  %1887 = vmatpush1.msra.mxu0 %v1858
  %1888 = vmatprep.subr.mxu0 0.0
  %1889 = vmatpush1.msra.mxu0 %v1859
  %1890 = vmatprep.subr.mxu0 0.0
  %1891 = vmatpush1.msra.mxu0 %v1860
  %1892 = vmatprep.subr.mxu0 0.0
  %1893 = vmatpush1.msra.mxu0 %v1861
  %1894 = vmatprep.subr.mxu0 0.0
  %1895 = vmatpush1.msra.mxu0 0.0
  %1896 = vmatprep.subr.mxu0 0.0
  %1897 = vmatpush1.msra.mxu0 0.0
  %1898 = vmatprep.subr.mxu0 0.0
  %1899 = vmatpush1.msra.mxu0 0.0
  %1900 = vmatprep.subr.mxu0 0.0
  %1901 = vmatpush1.msra.mxu0 0.0
  %1902 = vmatprep.subr.mxu0 0.0
  %1903 = vmatpush1.msra.mxu0 0.0
  %1904 = vmatprep.subr.mxu0 0.0
  %1905 = vmatpush1.msra.mxu0 0.0
  %1906 = vmatprep.subr.mxu0 0.0
  %1907 = vmatpush1.msra.mxu0 0.0
  %1908 = vmatprep.subr.mxu0 0.0
  %1909 = vmatpush1.msra.mxu0 0.0
  %1910 = vmatprep.subr.mxu0 0.0
  %1911 = vmatpush1.msra.mxu0 0.0
  %1912 = vmatprep.subr.mxu0 0.0
  %1913 = vmatpush1.msra.mxu0 0.0
  %1914 = vmatprep.subr.mxu0 0.0
  %1915 = vmatpush1.msra.mxu0 0.0
  %1916 = vmatprep.subr.mxu0 0.0
  %1917 = vmatpush1.msra.mxu0 0.0
  %1918 = vmatprep.subr.mxu0 0.0
  %1919 = vmatpush1.msra.mxu0 0.0
  %1920 = vmatprep.subr.mxu0 0.0
  %1921 = vmatpush1.msra.mxu0 0.0
  %1922 = vmatprep.subr.mxu0 0.0
  %1923 = vmatpush1.msra.mxu0 0.0
  %1924 = vmatprep.subr.mxu0 0.0
  %1925 = vmatpush1.msra.mxu0 0.0
  %1926 = vmatprep.mubr.f32.mxu0 0.0
  %1927 = vmatmul.mubr.f32.gmra.mrb[0].mxu0 %v1307
  %v1928 = vpop.f32.mrb[0].mxu0
  %v1929 = vadd.f32 0.0, %v1928
  %v1930 = vpop.f32.mrb[0].mxu0
  %1931 = vdwg.mxu0
  %v1932 = vadd.f32 %v1845, %v1929
  %v1933 = vld [vmem:[%s3 + $0x380] sm:$0xff]
  %v1934 = vld [vmem:[%s3 + $0x388] sm:$0xff]
  %v1935 = vld [vmem:[%s3 + $0x390] sm:$0xff]
  %v1936 = vld [vmem:[%s3 + $0x398] sm:$0xff]
  %v1937 = vld [vmem:[%s3 + $0x3a0] sm:$0xff]
  %v1938 = vld [vmem:[%s3 + $0x3a8] sm:$0xff]
  %v1939 = vld [vmem:[%s3 + $0x3b0] sm:$0xff]
  %v1940 = vld [vmem:[%s3 + $0x3b8] sm:$0xff]
  %v1941 = vld [vmem:[%s3 + $0x3c0] sm:$0xff]
  %v1942 = vld [vmem:[%s3 + $0x3c8] sm:$0xff]
  %v1943 = vld [vmem:[%s3 + $0x3d0] sm:$0xff]
  %v1944 = vld [vmem:[%s3 + $0x3d8] sm:$0xff]
  %v1945 = vld [vmem:[%s3 + $0x3e0] sm:$0xff]
  %v1946 = vld [vmem:[%s3 + $0x3e8] sm:$0xff]
  %v1947 = vld [vmem:[%s3 + $0x3f0] sm:$0xff]
  %v1948 = vld [vmem:[%s3 + $0x3f8] sm:$0xff]
  %1949 = vmatprep.subr.mxu0 0.0
  %1950 = vmatpush1.msra.mxu0 %v1933
  %1951 = vmatprep.subr.mxu0 0.0
  %1952 = vmatpush1.msra.mxu0 %v1934
  %1953 = vmatprep.subr.mxu0 0.0
  %1954 = vmatpush1.msra.mxu0 %v1935
  %1955 = vmatprep.subr.mxu0 0.0
  %1956 = vmatpush1.msra.mxu0 %v1936
  %1957 = vmatprep.subr.mxu0 0.0
  %1958 = vmatpush1.msra.mxu0 %v1937
  %1959 = vmatprep.subr.mxu0 0.0
  %1960 = vmatpush1.msra.mxu0 %v1938
  %1961 = vmatprep.subr.mxu0 0.0
  %1962 = vmatpush1.msra.mxu0 %v1939
  %1963 = vmatprep.subr.mxu0 0.0
  %1964 = vmatpush1.msra.mxu0 %v1940
  %1965 = vmatprep.subr.mxu0 0.0
  %1966 = vmatpush1.msra.mxu0 %v1941
  %1967 = vmatprep.subr.mxu0 0.0
  %1968 = vmatpush1.msra.mxu0 %v1942
  %1969 = vmatprep.subr.mxu0 0.0
  %1970 = vmatpush1.msra.mxu0 %v1943
  %1971 = vmatprep.subr.mxu0 0.0
  %1972 = vmatpush1.msra.mxu0 %v1944
  %1973 = vmatprep.subr.mxu0 0.0
  %1974 = vmatpush1.msra.mxu0 %v1945
  %1975 = vmatprep.subr.mxu0 0.0
  %1976 = vmatpush1.msra.mxu0 %v1946
  %1977 = vmatprep.subr.mxu0 0.0
  %1978 = vmatpush1.msra.mxu0 %v1947
  %1979 = vmatprep.subr.mxu0 0.0
  %1980 = vmatpush1.msra.mxu0 %v1948
  %1981 = vmatprep.subr.mxu0 0.0
  %1982 = vmatpush1.msra.mxu0 0.0
  %1983 = vmatprep.subr.mxu0 0.0
  %1984 = vmatpush1.msra.mxu0 0.0
  %1985 = vmatprep.subr.mxu0 0.0
  %1986 = vmatpush1.msra.mxu0 0.0
  %1987 = vmatprep.subr.mxu0 0.0
  %1988 = vmatpush1.msra.mxu0 0.0
  %1989 = vmatprep.subr.mxu0 0.0
  %1990 = vmatpush1.msra.mxu0 0.0
  %1991 = vmatprep.subr.mxu0 0.0
  %1992 = vmatpush1.msra.mxu0 0.0
  %1993 = vmatprep.subr.mxu0 0.0
  %1994 = vmatpush1.msra.mxu0 0.0
  %1995 = vmatprep.subr.mxu0 0.0
  %1996 = vmatpush1.msra.mxu0 0.0
  %1997 = vmatprep.subr.mxu0 0.0
  %1998 = vmatpush1.msra.mxu0 0.0
  %1999 = vmatprep.subr.mxu0 0.0
  %2000 = vmatpush1.msra.mxu0 0.0
  %2001 = vmatprep.subr.mxu0 0.0
  %2002 = vmatpush1.msra.mxu0 0.0
  %2003 = vmatprep.subr.mxu0 0.0
  %2004 = vmatpush1.msra.mxu0 0.0
  %2005 = vmatprep.subr.mxu0 0.0
  %2006 = vmatpush1.msra.mxu0 0.0
  %2007 = vmatprep.subr.mxu0 0.0
  %2008 = vmatpush1.msra.mxu0 0.0
  %2009 = vmatprep.subr.mxu0 0.0
  %2010 = vmatpush1.msra.mxu0 0.0
  %2011 = vmatprep.subr.mxu0 0.0
  %2012 = vmatpush1.msra.mxu0 0.0
  %2013 = vmatprep.mubr.f32.mxu0 0.0
  %2014 = vmatmul.mubr.f32.gmra.mrb[0].mxu0 %v1308
  %v2015 = vpop.f32.mrb[0].mxu0
  %v2016 = vadd.f32 0.0, %v2015
  %v2017 = vpop.f32.mrb[0].mxu0
  %2018 = vdwg.mxu0
  %v2019 = vadd.f32 %v1932, %v2016
  %v2020 = vld [vmem:[%s3 + $0x400] sm:$0xff]
  %v2021 = vld [vmem:[%s3 + $0x408] sm:$0xff]
  %v2022 = vld [vmem:[%s3 + $0x410] sm:$0xff]
  %v2023 = vld [vmem:[%s3 + $0x418] sm:$0xff]
  %v2024 = vld [vmem:[%s3 + $0x420] sm:$0xff]
  %v2025 = vld [vmem:[%s3 + $0x428] sm:$0xff]
  %v2026 = vld [vmem:[%s3 + $0x430] sm:$0xff]
  %v2027 = vld [vmem:[%s3 + $0x438] sm:$0xff]
  %v2028 = vld [vmem:[%s3 + $0x440] sm:$0xff]
  %v2029 = vld [vmem:[%s3 + $0x448] sm:$0xff]
  %v2030 = vld [vmem:[%s3 + $0x450] sm:$0xff]
  %v2031 = vld [vmem:[%s3 + $0x458] sm:$0xff]
  %v2032 = vld [vmem:[%s3 + $0x460] sm:$0xff]
  %v2033 = vld [vmem:[%s3 + $0x468] sm:$0xff]
  %v2034 = vld [vmem:[%s3 + $0x470] sm:$0xff]
  %v2035 = vld [vmem:[%s3 + $0x478] sm:$0xff]
  %2036 = vmatprep.subr.mxu0 0.0
  %2037 = vmatpush1.msra.mxu0 %v2020
  %2038 = vmatprep.subr.mxu0 0.0
  %2039 = vmatpush1.msra.mxu0 %v2021
  %2040 = vmatprep.subr.mxu0 0.0
  %2041 = vmatpush1.msra.mxu0 %v2022
  %2042 = vmatprep.subr.mxu0 0.0
  %2043 = vmatpush1.msra.mxu0 %v2023
  %2044 = vmatprep.subr.mxu0 0.0
  %2045 = vmatpush1.msra.mxu0 %v2024
  %2046 = vmatprep.subr.mxu0 0.0
  %2047 = vmatpush1.msra.mxu0 %v2025
  %2048 = vmatprep.subr.mxu0 0.0
  %2049 = vmatpush1.msra.mxu0 %v2026
  %2050 = vmatprep.subr.mxu0 0.0
  %2051 = vmatpush1.msra.mxu0 %v2027
  %2052 = vmatprep.subr.mxu0 0.0
  %2053 = vmatpush1.msra.mxu0 %v2028
  %2054 = vmatprep.subr.mxu0 0.0
  %2055 = vmatpush1.msra.mxu0 %v2029
  %2056 = vmatprep.subr.mxu0 0.0
  %2057 = vmatpush1.msra.mxu0 %v2030
  %2058 = vmatprep.subr.mxu0 0.0
  %2059 = vmatpush1.msra.mxu0 %v2031
  %2060 = vmatprep.subr.mxu0 0.0
  %2061 = vmatpush1.msra.mxu0 %v2032
  %2062 = vmatprep.subr.mxu0 0.0
  %2063 = vmatpush1.msra.mxu0 %v2033
  %2064 = vmatprep.subr.mxu0 0.0
  %2065 = vmatpush1.msra.mxu0 %v2034
  %2066 = vmatprep.subr.mxu0 0.0
  %2067 = vmatpush1.msra.mxu0 %v2035
  %2068 = vmatprep.subr.mxu0 0.0
  %2069 = vmatpush1.msra.mxu0 0.0
  %2070 = vmatprep.subr.mxu0 0.0
  %2071 = vmatpush1.msra.mxu0 0.0
  %2072 = vmatprep.subr.mxu0 0.0
  %2073 = vmatpush1.msra.mxu0 0.0
  %2074 = vmatprep.subr.mxu0 0.0
  %2075 = vmatpush1.msra.mxu0 0.0
  %2076 = vmatprep.subr.mxu0 0.0
  %2077 = vmatpush1.msra.mxu0 0.0
  %2078 = vmatprep.subr.mxu0 0.0
  %2079 = vmatpush1.msra.mxu0 0.0
  %2080 = vmatprep.subr.mxu0 0.0
  %2081 = vmatpush1.msra.mxu0 0.0
  %2082 = vmatprep.subr.mxu0 0.0
  %2083 = vmatpush1.msra.mxu0 0.0
  %2084 = vmatprep.subr.mxu0 0.0
  %2085 = vmatpush1.msra.mxu0 0.0
  %2086 = vmatprep.subr.mxu0 0.0
  %2087 = vmatpush1.msra.mxu0 0.0
  %2088 = vmatprep.subr.mxu0 0.0
  %2089 = vmatpush1.msra.mxu0 0.0
  %2090 = vmatprep.subr.mxu0 0.0
  %2091 = vmatpush1.msra.mxu0 0.0
  %2092 = vmatprep.subr.mxu0 0.0
  %2093 = vmatpush1.msra.mxu0 0.0
  %2094 = vmatprep.subr.mxu0 0.0
  %2095 = vmatpush1.msra.mxu0 0.0
  %2096 = vmatprep.subr.mxu0 0.0
  %2097 = vmatpush1.msra.mxu0 0.0
  %2098 = vmatprep.subr.mxu0 0.0
  %2099 = vmatpush1.msra.mxu0 0.0
  %2100 = vmatprep.mubr.f32.mxu0 0.0
  %2101 = vmatmul.mubr.f32.gmra.mrb[0].mxu0 %v1309
  %v2102 = vpop.f32.mrb[0].mxu0
  %v2103 = vadd.f32 0.0, %v2102
  %v2104 = vpop.f32.mrb[0].mxu0
  %2105 = vdwg.mxu0
  %v2106 = vadd.f32 %v2019, %v2103
  %v2107 = vld [vmem:[%s3 + $0x480] sm:$0xff]
  %v2108 = vld [vmem:[%s3 + $0x488] sm:$0xff]
  %v2109 = vld [vmem:[%s3 + $0x490] sm:$0xff]
  %v2110 = vld [vmem:[%s3 + $0x498] sm:$0xff]
  %v2111 = vld [vmem:[%s3 + $0x4a0] sm:$0xff]
  %v2112 = vld [vmem:[%s3 + $0x4a8] sm:$0xff]
  %v2113 = vld [vmem:[%s3 + $0x4b0] sm:$0xff]
  %v2114 = vld [vmem:[%s3 + $0x4b8] sm:$0xff]
  %v2115 = vld [vmem:[%s3 + $0x4c0] sm:$0xff]
  %v2116 = vld [vmem:[%s3 + $0x4c8] sm:$0xff]
  %v2117 = vld [vmem:[%s3 + $0x4d0] sm:$0xff]
  %v2118 = vld [vmem:[%s3 + $0x4d8] sm:$0xff]
  %v2119 = vld [vmem:[%s3 + $0x4e0] sm:$0xff]
  %v2120 = vld [vmem:[%s3 + $0x4e8] sm:$0xff]
  %v2121 = vld [vmem:[%s3 + $0x4f0] sm:$0xff]
  %v2122 = vld [vmem:[%s3 + $0x4f8] sm:$0xff]
  %2123 = vmatprep.subr.mxu0 0.0
  %2124 = vmatpush1.msra.mxu0 %v2107
  %2125 = vmatprep.subr.mxu0 0.0
  %2126 = vmatpush1.msra.mxu0 %v2108
  %2127 = vmatprep.subr.mxu0 0.0
  %2128 = vmatpush1.msra.mxu0 %v2109
  %2129 = vmatprep.subr.mxu0 0.0
  %2130 = vmatpush1.msra.mxu0 %v2110
  %2131 = vmatprep.subr.mxu0 0.0
  %2132 = vmatpush1.msra.mxu0 %v2111
  %2133 = vmatprep.subr.mxu0 0.0
  %2134 = vmatpush1.msra.mxu0 %v2112
  %2135 = vmatprep.subr.mxu0 0.0
  %2136 = vmatpush1.msra.mxu0 %v2113
  %2137 = vmatprep.subr.mxu0 0.0
  %2138 = vmatpush1.msra.mxu0 %v2114
  %2139 = vmatprep.subr.mxu0 0.0
  %2140 = vmatpush1.msra.mxu0 %v2115
  %2141 = vmatprep.subr.mxu0 0.0
  %2142 = vmatpush1.msra.mxu0 %v2116
  %2143 = vmatprep.subr.mxu0 0.0
  %2144 = vmatpush1.msra.mxu0 %v2117
  %2145 = vmatprep.subr.mxu0 0.0
  %2146 = vmatpush1.msra.mxu0 %v2118
  %2147 = vmatprep.subr.mxu0 0.0
  %2148 = vmatpush1.msra.mxu0 %v2119
  %2149 = vmatprep.subr.mxu0 0.0
  %2150 = vmatpush1.msra.mxu0 %v2120
  %2151 = vmatprep.subr.mxu0 0.0
  %2152 = vmatpush1.msra.mxu0 %v2121
  %2153 = vmatprep.subr.mxu0 0.0
  %2154 = vmatpush1.msra.mxu0 %v2122
  %2155 = vmatprep.subr.mxu0 0.0
  %2156 = vmatpush1.msra.mxu0 0.0
  %2157 = vmatprep.subr.mxu0 0.0
  %2158 = vmatpush1.msra.mxu0 0.0
  %2159 = vmatprep.subr.mxu0 0.0
  %2160 = vmatpush1.msra.mxu0 0.0
  %2161 = vmatprep.subr.mxu0 0.0
  %2162 = vmatpush1.msra.mxu0 0.0
  %2163 = vmatprep.subr.mxu0 0.0
  %2164 = vmatpush1.msra.mxu0 0.0
  %2165 = vmatprep.subr.mxu0 0.0
  %2166 = vmatpush1.msra.mxu0 0.0
  %2167 = vmatprep.subr.mxu0 0.0
  %2168 = vmatpush1.msra.mxu0 0.0
  %2169 = vmatprep.subr.mxu0 0.0
  %2170 = vmatpush1.msra.mxu0 0.0
  %2171 = vmatprep.subr.mxu0 0.0
  %2172 = vmatpush1.msra.mxu0 0.0
  %2173 = vmatprep.subr.mxu0 0.0
  %2174 = vmatpush1.msra.mxu0 0.0
  %2175 = vmatprep.subr.mxu0 0.0
  %2176 = vmatpush1.msra.mxu0 0.0
  %2177 = vmatprep.subr.mxu0 0.0
  %2178 = vmatpush1.msra.mxu0 0.0
  %2179 = vmatprep.subr.mxu0 0.0
  %2180 = vmatpush1.msra.mxu0 0.0
  %2181 = vmatprep.subr.mxu0 0.0
  %2182 = vmatpush1.msra.mxu0 0.0
  %2183 = vmatprep.subr.mxu0 0.0
  %2184 = vmatpush1.msra.mxu0 0.0
  %2185 = vmatprep.subr.mxu0 0.0
  %2186 = vmatpush1.msra.mxu0 0.0
  %2187 = vmatprep.mubr.f32.mxu0 0.0
  %2188 = vmatmul.mubr.f32.gmra.mrb[0].mxu0 %v1310
  %v2189 = vpop.f32.mrb[0].mxu0
  %v2190 = vadd.f32 0.0, %v2189
  %v2191 = vpop.f32.mrb[0].mxu0
  %2192 = vdwg.mxu0
  %v2193 = vadd.f32 %v2106, %v2190
  %v2194 = vld [vmem:[%s3 + $0x500] sm:$0xff]
  %v2195 = vld [vmem:[%s3 + $0x508] sm:$0xff]
  %v2196 = vld [vmem:[%s3 + $0x510] sm:$0xff]
  %v2197 = vld [vmem:[%s3 + $0x518] sm:$0xff]
  %v2198 = vld [vmem:[%s3 + $0x520] sm:$0xff]
  %v2199 = vld [vmem:[%s3 + $0x528] sm:$0xff]
  %v2200 = vld [vmem:[%s3 + $0x530] sm:$0xff]
  %v2201 = vld [vmem:[%s3 + $0x538] sm:$0xff]
  %v2202 = vld [vmem:[%s3 + $0x540] sm:$0xff]
  %v2203 = vld [vmem:[%s3 + $0x548] sm:$0xff]
  %v2204 = vld [vmem:[%s3 + $0x550] sm:$0xff]
  %v2205 = vld [vmem:[%s3 + $0x558] sm:$0xff]
  %v2206 = vld [vmem:[%s3 + $0x560] sm:$0xff]
  %v2207 = vld [vmem:[%s3 + $0x568] sm:$0xff]
  %v2208 = vld [vmem:[%s3 + $0x570] sm:$0xff]
  %v2209 = vld [vmem:[%s3 + $0x578] sm:$0xff]
  %2210 = vmatprep.subr.mxu0 0.0
  %2211 = vmatpush1.msra.mxu0 %v2194
  %2212 = vmatprep.subr.mxu0 0.0
  %2213 = vmatpush1.msra.mxu0 %v2195
  %2214 = vmatprep.subr.mxu0 0.0
  %2215 = vmatpush1.msra.mxu0 %v2196
  %2216 = vmatprep.subr.mxu0 0.0
  %2217 = vmatpush1.msra.mxu0 %v2197
  %2218 = vmatprep.subr.mxu0 0.0
  %2219 = vmatpush1.msra.mxu0 %v2198
  %2220 = vmatprep.subr.mxu0 0.0
  %2221 = vmatpush1.msra.mxu0 %v2199
  %2222 = vmatprep.subr.mxu0 0.0
  %2223 = vmatpush1.msra.mxu0 %v2200
  %2224 = vmatprep.subr.mxu0 0.0
  %2225 = vmatpush1.msra.mxu0 %v2201
  %2226 = vmatprep.subr.mxu0 0.0
  %2227 = vmatpush1.msra.mxu0 %v2202
  %2228 = vmatprep.subr.mxu0 0.0
  %2229 = vmatpush1.msra.mxu0 %v2203
  %2230 = vmatprep.subr.mxu0 0.0
  %2231 = vmatpush1.msra.mxu0 %v2204
  %2232 = vmatprep.subr.mxu0 0.0
  %2233 = vmatpush1.msra.mxu0 %v2205
  %2234 = vmatprep.subr.mxu0 0.0
  %2235 = vmatpush1.msra.mxu0 %v2206
  %2236 = vmatprep.subr.mxu0 0.0
  %2237 = vmatpush1.msra.mxu0 %v2207
  %2238 = vmatprep.subr.mxu0 0.0
  %2239 = vmatpush1.msra.mxu0 %v2208
  %2240 = vmatprep.subr.mxu0 0.0
  %2241 = vmatpush1.msra.mxu0 %v2209
  %2242 = vmatprep.subr.mxu0 0.0
  %2243 = vmatpush1.msra.mxu0 0.0
  %2244 = vmatprep.subr.mxu0 0.0
  %2245 = vmatpush1.msra.mxu0 0.0
  %2246 = vmatprep.subr.mxu0 0.0
  %2247 = vmatpush1.msra.mxu0 0.0
  %2248 = vmatprep.subr.mxu0 0.0
  %2249 = vmatpush1.msra.mxu0 0.0
  %2250 = vmatprep.subr.mxu0 0.0
  %2251 = vmatpush1.msra.mxu0 0.0
  %2252 = vmatprep.subr.mxu0 0.0
  %2253 = vmatpush1.msra.mxu0 0.0
  %2254 = vmatprep.subr.mxu0 0.0
  %2255 = vmatpush1.msra.mxu0 0.0
  %2256 = vmatprep.subr.mxu0 0.0
  %2257 = vmatpush1.msra.mxu0 0.0
  %2258 = vmatprep.subr.mxu0 0.0
  %2259 = vmatpush1.msra.mxu0 0.0
  %2260 = vmatprep.subr.mxu0 0.0
  %2261 = vmatpush1.msra.mxu0 0.0
  %2262 = vmatprep.subr.mxu0 0.0
  %2263 = vmatpush1.msra.mxu0 0.0
  %2264 = vmatprep.subr.mxu0 0.0
  %2265 = vmatpush1.msra.mxu0 0.0
  %2266 = vmatprep.subr.mxu0 0.0
  %2267 = vmatpush1.msra.mxu0 0.0
  %2268 = vmatprep.subr.mxu0 0.0
  %2269 = vmatpush1.msra.mxu0 0.0
  %2270 = vmatprep.subr.mxu0 0.0
  %2271 = vmatpush1.msra.mxu0 0.0
  %2272 = vmatprep.subr.mxu0 0.0
  %2273 = vmatpush1.msra.mxu0 0.0
  %2274 = vmatprep.mubr.f32.mxu0 0.0
  %2275 = vmatmul.mubr.f32.gmra.mrb[0].mxu0 %v1311
  %v2276 = vpop.f32.mrb[0].mxu0
  %v2277 = vadd.f32 0.0, %v2276
  %v2278 = vpop.f32.mrb[0].mxu0
  %2279 = vdwg.mxu0
  %v2280 = vadd.f32 %v2193, %v2277
  %v2281 = vld [vmem:[%s3 + $0x580] sm:$0xff]
  %v2282 = vld [vmem:[%s3 + $0x588] sm:$0xff]
  %v2283 = vld [vmem:[%s3 + $0x590] sm:$0xff]
  %v2284 = vld [vmem:[%s3 + $0x598] sm:$0xff]
  %v2285 = vld [vmem:[%s3 + $0x5a0] sm:$0xff]
  %v2286 = vld [vmem:[%s3 + $0x5a8] sm:$0xff]
  %v2287 = vld [vmem:[%s3 + $0x5b0] sm:$0xff]
  %v2288 = vld [vmem:[%s3 + $0x5b8] sm:$0xff]
  %v2289 = vld [vmem:[%s3 + $0x5c0] sm:$0xff]
  %v2290 = vld [vmem:[%s3 + $0x5c8] sm:$0xff]
  %v2291 = vld [vmem:[%s3 + $0x5d0] sm:$0xff]
  %v2292 = vld [vmem:[%s3 + $0x5d8] sm:$0xff]
  %v2293 = vld [vmem:[%s3 + $0x5e0] sm:$0xff]
  %v2294 = vld [vmem:[%s3 + $0x5e8] sm:$0xff]
  %v2295 = vld [vmem:[%s3 + $0x5f0] sm:$0xff]
  %v2296 = vld [vmem:[%s3 + $0x5f8] sm:$0xff]
  %2297 = vmatprep.subr.mxu0 0.0
  %2298 = vmatpush1.msra.mxu0 %v2281
  %2299 = vmatprep.subr.mxu0 0.0
  %2300 = vmatpush1.msra.mxu0 %v2282
  %2301 = vmatprep.subr.mxu0 0.0
  %2302 = vmatpush1.msra.mxu0 %v2283
  %2303 = vmatprep.subr.mxu0 0.0
  %2304 = vmatpush1.msra.mxu0 %v2284
  %2305 = vmatprep.subr.mxu0 0.0
  %2306 = vmatpush1.msra.mxu0 %v2285
  %2307 = vmatprep.subr.mxu0 0.0
  %2308 = vmatpush1.msra.mxu0 %v2286
  %2309 = vmatprep.subr.mxu0 0.0
  %2310 = vmatpush1.msra.mxu0 %v2287
  %2311 = vmatprep.subr.mxu0 0.0
  %2312 = vmatpush1.msra.mxu0 %v2288
  %2313 = vmatprep.subr.mxu0 0.0
  %2314 = vmatpush1.msra.mxu0 %v2289
  %2315 = vmatprep.subr.mxu0 0.0
  %2316 = vmatpush1.msra.mxu0 %v2290
  %2317 = vmatprep.subr.mxu0 0.0
  %2318 = vmatpush1.msra.mxu0 %v2291
  %2319 = vmatprep.subr.mxu0 0.0
  %2320 = vmatpush1.msra.mxu0 %v2292
  %2321 = vmatprep.subr.mxu0 0.0
  %2322 = vmatpush1.msra.mxu0 %v2293
  %2323 = vmatprep.subr.mxu0 0.0
  %2324 = vmatpush1.msra.mxu0 %v2294
  %2325 = vmatprep.subr.mxu0 0.0
  %2326 = vmatpush1.msra.mxu0 %v2295
  %2327 = vmatprep.subr.mxu0 0.0
  %2328 = vmatpush1.msra.mxu0 %v2296
  %2329 = vmatprep.subr.mxu0 0.0
  %2330 = vmatpush1.msra.mxu0 0.0
  %2331 = vmatprep.subr.mxu0 0.0
  %2332 = vmatpush1.msra.mxu0 0.0
  %2333 = vmatprep.subr.mxu0 0.0
  %2334 = vmatpush1.msra.mxu0 0.0
  %2335 = vmatprep.subr.mxu0 0.0
  %2336 = vmatpush1.msra.mxu0 0.0
  %2337 = vmatprep.subr.mxu0 0.0
  %2338 = vmatpush1.msra.mxu0 0.0
  %2339 = vmatprep.subr.mxu0 0.0
  %2340 = vmatpush1.msra.mxu0 0.0
  %2341 = vmatprep.subr.mxu0 0.0
  %2342 = vmatpush1.msra.mxu0 0.0
  %2343 = vmatprep.subr.mxu0 0.0
  %2344 = vmatpush1.msra.mxu0 0.0
  %2345 = vmatprep.subr.mxu0 0.0
  %2346 = vmatpush1.msra.mxu0 0.0
  %2347 = vmatprep.subr.mxu0 0.0
  %2348 = vmatpush1.msra.mxu0 0.0
  %2349 = vmatprep.subr.mxu0 0.0
  %2350 = vmatpush1.msra.mxu0 0.0
  %2351 = vmatprep.subr.mxu0 0.0
  %2352 = vmatpush1.msra.mxu0 0.0
  %2353 = vmatprep.subr.mxu0 0.0
  %2354 = vmatpush1.msra.mxu0 0.0
  %2355 = vmatprep.subr.mxu0 0.0
  %2356 = vmatpush1.msra.mxu0 0.0
  %2357 = vmatprep.subr.mxu0 0.0
  %2358 = vmatpush1.msra.mxu0 0.0
  %2359 = vmatprep.subr.mxu0 0.0
  %2360 = vmatpush1.msra.mxu0 0.0
  %2361 = vmatprep.mubr.f32.mxu0 0.0
  %2362 = vmatmul.mubr.f32.gmra.mrb[0].mxu0 %v1312
  %v2363 = vpop.f32.mrb[0].mxu0
  %v2364 = vadd.f32 0.0, %v2363
  %v2365 = vpop.f32.mrb[0].mxu0
  %2366 = vdwg.mxu0
  %v2367 = vadd.f32 %v2280, %v2364
  %v2368 = vld [vmem:[%s3 + $0x600] sm:$0xff]
  %v2369 = vld [vmem:[%s3 + $0x608] sm:$0xff]
  %v2370 = vld [vmem:[%s3 + $0x610] sm:$0xff]
  %v2371 = vld [vmem:[%s3 + $0x618] sm:$0xff]
  %v2372 = vld [vmem:[%s3 + $0x620] sm:$0xff]
  %v2373 = vld [vmem:[%s3 + $0x628] sm:$0xff]
  %v2374 = vld [vmem:[%s3 + $0x630] sm:$0xff]
  %v2375 = vld [vmem:[%s3 + $0x638] sm:$0xff]
  %v2376 = vld [vmem:[%s3 + $0x640] sm:$0xff]
  %v2377 = vld [vmem:[%s3 + $0x648] sm:$0xff]
  %v2378 = vld [vmem:[%s3 + $0x650] sm:$0xff]
  %v2379 = vld [vmem:[%s3 + $0x658] sm:$0xff]
  %v2380 = vld [vmem:[%s3 + $0x660] sm:$0xff]
  %v2381 = vld [vmem:[%s3 + $0x668] sm:$0xff]
  %v2382 = vld [vmem:[%s3 + $0x670] sm:$0xff]
  %v2383 = vld [vmem:[%s3 + $0x678] sm:$0xff]
  %2384 = vmatprep.subr.mxu0 0.0
  %2385 = vmatpush1.msra.mxu0 %v2368
  %2386 = vmatprep.subr.mxu0 0.0
  %2387 = vmatpush1.msra.mxu0 %v2369
  %2388 = vmatprep.subr.mxu0 0.0
  %2389 = vmatpush1.msra.mxu0 %v2370
  %2390 = vmatprep.subr.mxu0 0.0
  %2391 = vmatpush1.msra.mxu0 %v2371
  %2392 = vmatprep.subr.mxu0 0.0
  %2393 = vmatpush1.msra.mxu0 %v2372
  %2394 = vmatprep.subr.mxu0 0.0
  %2395 = vmatpush1.msra.mxu0 %v2373
  %2396 = vmatprep.subr.mxu0 0.0
  %2397 = vmatpush1.msra.mxu0 %v2374
  %2398 = vmatprep.subr.mxu0 0.0
  %2399 = vmatpush1.msra.mxu0 %v2375
  %2400 = vmatprep.subr.mxu0 0.0
  %2401 = vmatpush1.msra.mxu0 %v2376
  %2402 = vmatprep.subr.mxu0 0.0
  %2403 = vmatpush1.msra.mxu0 %v2377
  %2404 = vmatprep.subr.mxu0 0.0
  %2405 = vmatpush1.msra.mxu0 %v2378
  %2406 = vmatprep.subr.mxu0 0.0
  %2407 = vmatpush1.msra.mxu0 %v2379
  %2408 = vmatprep.subr.mxu0 0.0
  %2409 = vmatpush1.msra.mxu0 %v2380
  %2410 = vmatprep.subr.mxu0 0.0
  %2411 = vmatpush1.msra.mxu0 %v2381
  %2412 = vmatprep.subr.mxu0 0.0
  %2413 = vmatpush1.msra.mxu0 %v2382
  %2414 = vmatprep.subr.mxu0 0.0
  %2415 = vmatpush1.msra.mxu0 %v2383
  %2416 = vmatprep.subr.mxu0 0.0
  %2417 = vmatpush1.msra.mxu0 0.0
  %2418 = vmatprep.subr.mxu0 0.0
  %2419 = vmatpush1.msra.mxu0 0.0
  %2420 = vmatprep.subr.mxu0 0.0
  %2421 = vmatpush1.msra.mxu0 0.0
  %2422 = vmatprep.subr.mxu0 0.0
  %2423 = vmatpush1.msra.mxu0 0.0
  %2424 = vmatprep.subr.mxu0 0.0
  %2425 = vmatpush1.msra.mxu0 0.0
  %2426 = vmatprep.subr.mxu0 0.0
  %2427 = vmatpush1.msra.mxu0 0.0
  %2428 = vmatprep.subr.mxu0 0.0
  %2429 = vmatpush1.msra.mxu0 0.0
  %2430 = vmatprep.subr.mxu0 0.0
  %2431 = vmatpush1.msra.mxu0 0.0
  %2432 = vmatprep.subr.mxu0 0.0
  %2433 = vmatpush1.msra.mxu0 0.0
  %2434 = vmatprep.subr.mxu0 0.0
  %2435 = vmatpush1.msra.mxu0 0.0
  %2436 = vmatprep.subr.mxu0 0.0
  %2437 = vmatpush1.msra.mxu0 0.0
  %2438 = vmatprep.subr.mxu0 0.0
  %2439 = vmatpush1.msra.mxu0 0.0
  %2440 = vmatprep.subr.mxu0 0.0
  %2441 = vmatpush1.msra.mxu0 0.0
  %2442 = vmatprep.subr.mxu0 0.0
  %2443 = vmatpush1.msra.mxu0 0.0
  %2444 = vmatprep.subr.mxu0 0.0
  %2445 = vmatpush1.msra.mxu0 0.0
  %2446 = vmatprep.subr.mxu0 0.0
  %2447 = vmatpush1.msra.mxu0 0.0
  %2448 = vmatprep.mubr.f32.mxu0 0.0
  %2449 = vmatmul.mubr.f32.gmra.mrb[0].mxu0 %v1313
  %v2450 = vpop.f32.mrb[0].mxu0
  %v2451 = vadd.f32 0.0, %v2450
  %v2452 = vpop.f32.mrb[0].mxu0
  %2453 = vdwg.mxu0
  %v2454 = vadd.f32 %v2367, %v2451
  %v2455 = vld [vmem:[%s3 + $0x680] sm:$0xff]
  %v2456 = vld [vmem:[%s3 + $0x688] sm:$0xff]
  %v2457 = vld [vmem:[%s3 + $0x690] sm:$0xff]
  %v2458 = vld [vmem:[%s3 + $0x698] sm:$0xff]
  %v2459 = vld [vmem:[%s3 + $0x6a0] sm:$0xff]
  %v2460 = vld [vmem:[%s3 + $0x6a8] sm:$0xff]
  %v2461 = vld [vmem:[%s3 + $0x6b0] sm:$0xff]
  %v2462 = vld [vmem:[%s3 + $0x6b8] sm:$0xff]
  %v2463 = vld [vmem:[%s3 + $0x6c0] sm:$0xff]
  %v2464 = vld [vmem:[%s3 + $0x6c8] sm:$0xff]
  %v2465 = vld [vmem:[%s3 + $0x6d0] sm:$0xff]
  %v2466 = vld [vmem:[%s3 + $0x6d8] sm:$0xff]
  %v2467 = vld [vmem:[%s3 + $0x6e0] sm:$0xff]
  %v2468 = vld [vmem:[%s3 + $0x6e8] sm:$0xff]
  %v2469 = vld [vmem:[%s3 + $0x6f0] sm:$0xff]
  %v2470 = vld [vmem:[%s3 + $0x6f8] sm:$0xff]
  %2471 = vmatprep.subr.mxu0 0.0
  %2472 = vmatpush1.msra.mxu0 %v2455
  %2473 = vmatprep.subr.mxu0 0.0
  %2474 = vmatpush1.msra.mxu0 %v2456
  %2475 = vmatprep.subr.mxu0 0.0
  %2476 = vmatpush1.msra.mxu0 %v2457
  %2477 = vmatprep.subr.mxu0 0.0
  %2478 = vmatpush1.msra.mxu0 %v2458
  %2479 = vmatprep.subr.mxu0 0.0
  %2480 = vmatpush1.msra.mxu0 %v2459
  %2481 = vmatprep.subr.mxu0 0.0
  %2482 = vmatpush1.msra.mxu0 %v2460
  %2483 = vmatprep.subr.mxu0 0.0
  %2484 = vmatpush1.msra.mxu0 %v2461
  %2485 = vmatprep.subr.mxu0 0.0
  %2486 = vmatpush1.msra.mxu0 %v2462
  %2487 = vmatprep.subr.mxu0 0.0
  %2488 = vmatpush1.msra.mxu0 %v2463
  %2489 = vmatprep.subr.mxu0 0.0
  %2490 = vmatpush1.msra.mxu0 %v2464
  %2491 = vmatprep.subr.mxu0 0.0
  %2492 = vmatpush1.msra.mxu0 %v2465
  %2493 = vmatprep.subr.mxu0 0.0
  %2494 = vmatpush1.msra.mxu0 %v2466
  %2495 = vmatprep.subr.mxu0 0.0
  %2496 = vmatpush1.msra.mxu0 %v2467
  %2497 = vmatprep.subr.mxu0 0.0
  %2498 = vmatpush1.msra.mxu0 %v2468
  %2499 = vmatprep.subr.mxu0 0.0
  %2500 = vmatpush1.msra.mxu0 %v2469
  %2501 = vmatprep.subr.mxu0 0.0
  %2502 = vmatpush1.msra.mxu0 %v2470
  %2503 = vmatprep.subr.mxu0 0.0
  %2504 = vmatpush1.msra.mxu0 0.0
  %2505 = vmatprep.subr.mxu0 0.0
  %2506 = vmatpush1.msra.mxu0 0.0
  %2507 = vmatprep.subr.mxu0 0.0
  %2508 = vmatpush1.msra.mxu0 0.0
  %2509 = vmatprep.subr.mxu0 0.0
  %2510 = vmatpush1.msra.mxu0 0.0
  %2511 = vmatprep.subr.mxu0 0.0
  %2512 = vmatpush1.msra.mxu0 0.0
  %2513 = vmatprep.subr.mxu0 0.0
  %2514 = vmatpush1.msra.mxu0 0.0
  %2515 = vmatprep.subr.mxu0 0.0
  %2516 = vmatpush1.msra.mxu0 0.0
  %2517 = vmatprep.subr.mxu0 0.0
  %2518 = vmatpush1.msra.mxu0 0.0
  %2519 = vmatprep.subr.mxu0 0.0
  %2520 = vmatpush1.msra.mxu0 0.0
  %2521 = vmatprep.subr.mxu0 0.0
  %2522 = vmatpush1.msra.mxu0 0.0
  %2523 = vmatprep.subr.mxu0 0.0
  %2524 = vmatpush1.msra.mxu0 0.0
  %2525 = vmatprep.subr.mxu0 0.0
  %2526 = vmatpush1.msra.mxu0 0.0
  %2527 = vmatprep.subr.mxu0 0.0
  %2528 = vmatpush1.msra.mxu0 0.0
  %2529 = vmatprep.subr.mxu0 0.0
  %2530 = vmatpush1.msra.mxu0 0.0
  %2531 = vmatprep.subr.mxu0 0.0
  %2532 = vmatpush1.msra.mxu0 0.0
  %2533 = vmatprep.subr.mxu0 0.0
  %2534 = vmatpush1.msra.mxu0 0.0
  %2535 = vmatprep.mubr.f32.mxu0 0.0
  %2536 = vmatmul.mubr.f32.gmra.mrb[0].mxu0 %v1314
  %v2537 = vpop.f32.mrb[0].mxu0
  %v2538 = vadd.f32 0.0, %v2537
  %v2539 = vpop.f32.mrb[0].mxu0
  %2540 = vdwg.mxu0
  %v2541 = vadd.f32 %v2454, %v2538
  %v2542 = vld [vmem:[%s3 + $0x700] sm:$0xff]
  %v2543 = vld [vmem:[%s3 + $0x708] sm:$0xff]
  %v2544 = vld [vmem:[%s3 + $0x710] sm:$0xff]
  %v2545 = vld [vmem:[%s3 + $0x718] sm:$0xff]
  %v2546 = vld [vmem:[%s3 + $0x720] sm:$0xff]
  %v2547 = vld [vmem:[%s3 + $0x728] sm:$0xff]
  %v2548 = vld [vmem:[%s3 + $0x730] sm:$0xff]
  %v2549 = vld [vmem:[%s3 + $0x738] sm:$0xff]
  %v2550 = vld [vmem:[%s3 + $0x740] sm:$0xff]
  %v2551 = vld [vmem:[%s3 + $0x748] sm:$0xff]
  %v2552 = vld [vmem:[%s3 + $0x750] sm:$0xff]
  %v2553 = vld [vmem:[%s3 + $0x758] sm:$0xff]
  %v2554 = vld [vmem:[%s3 + $0x760] sm:$0xff]
  %v2555 = vld [vmem:[%s3 + $0x768] sm:$0xff]
  %v2556 = vld [vmem:[%s3 + $0x770] sm:$0xff]
  %v2557 = vld [vmem:[%s3 + $0x778] sm:$0xff]
  %2558 = vmatprep.subr.mxu0 0.0
  %2559 = vmatpush1.msra.mxu0 %v2542
  %2560 = vmatprep.subr.mxu0 0.0
  %2561 = vmatpush1.msra.mxu0 %v2543
  %2562 = vmatprep.subr.mxu0 0.0
  %2563 = vmatpush1.msra.mxu0 %v2544
  %2564 = vmatprep.subr.mxu0 0.0
  %2565 = vmatpush1.msra.mxu0 %v2545
  %2566 = vmatprep.subr.mxu0 0.0
  %2567 = vmatpush1.msra.mxu0 %v2546
  %2568 = vmatprep.subr.mxu0 0.0
  %2569 = vmatpush1.msra.mxu0 %v2547
  %2570 = vmatprep.subr.mxu0 0.0
  %2571 = vmatpush1.msra.mxu0 %v2548
  %2572 = vmatprep.subr.mxu0 0.0
  %2573 = vmatpush1.msra.mxu0 %v2549
  %2574 = vmatprep.subr.mxu0 0.0
  %2575 = vmatpush1.msra.mxu0 %v2550
  %2576 = vmatprep.subr.mxu0 0.0
  %2577 = vmatpush1.msra.mxu0 %v2551
  %2578 = vmatprep.subr.mxu0 0.0
  %2579 = vmatpush1.msra.mxu0 %v2552
  %2580 = vmatprep.subr.mxu0 0.0
  %2581 = vmatpush1.msra.mxu0 %v2553
  %2582 = vmatprep.subr.mxu0 0.0
  %2583 = vmatpush1.msra.mxu0 %v2554
  %2584 = vmatprep.subr.mxu0 0.0
  %2585 = vmatpush1.msra.mxu0 %v2555
  %2586 = vmatprep.subr.mxu0 0.0
  %2587 = vmatpush1.msra.mxu0 %v2556
  %2588 = vmatprep.subr.mxu0 0.0
  %2589 = vmatpush1.msra.mxu0 %v2557
  %2590 = vmatprep.subr.mxu0 0.0
  %2591 = vmatpush1.msra.mxu0 0.0
  %2592 = vmatprep.subr.mxu0 0.0
  %2593 = vmatpush1.msra.mxu0 0.0
  %2594 = vmatprep.subr.mxu0 0.0
  %2595 = vmatpush1.msra.mxu0 0.0
  %2596 = vmatprep.subr.mxu0 0.0
  %2597 = vmatpush1.msra.mxu0 0.0
  %2598 = vmatprep.subr.mxu0 0.0
  %2599 = vmatpush1.msra.mxu0 0.0
  %2600 = vmatprep.subr.mxu0 0.0
  %2601 = vmatpush1.msra.mxu0 0.0
  %2602 = vmatprep.subr.mxu0 0.0
  %2603 = vmatpush1.msra.mxu0 0.0
  %2604 = vmatprep.subr.mxu0 0.0
  %2605 = vmatpush1.msra.mxu0 0.0
  %2606 = vmatprep.subr.mxu0 0.0
  %2607 = vmatpush1.msra.mxu0 0.0
  %2608 = vmatprep.subr.mxu0 0.0
  %2609 = vmatpush1.msra.mxu0 0.0
  %2610 = vmatprep.subr.mxu0 0.0
  %2611 = vmatpush1.msra.mxu0 0.0
  %2612 = vmatprep.subr.mxu0 0.0
  %2613 = vmatpush1.msra.mxu0 0.0
  %2614 = vmatprep.subr.mxu0 0.0
  %2615 = vmatpush1.msra.mxu0 0.0
  %2616 = vmatprep.subr.mxu0 0.0
  %2617 = vmatpush1.msra.mxu0 0.0
  %2618 = vmatprep.subr.mxu0 0.0
  %2619 = vmatpush1.msra.mxu0 0.0
  %2620 = vmatprep.subr.mxu0 0.0
  %2621 = vmatpush1.msra.mxu0 0.0
  %2622 = vmatprep.mubr.f32.mxu0 0.0
  %2623 = vmatmul.mubr.f32.gmra.mrb[0].mxu0 %v1315
  %v2624 = vpop.f32.mrb[0].mxu0
  %v2625 = vadd.f32 0.0, %v2624
  %v2626 = vpop.f32.mrb[0].mxu0
  %2627 = vdwg.mxu0
  %v2628 = vadd.f32 %v2541, %v2625
  %v2629 = vld [vmem:[%s3 + $0x780] sm:$0xff]
  %v2630 = vld [vmem:[%s3 + $0x788] sm:$0xff]
  %v2631 = vld [vmem:[%s3 + $0x790] sm:$0xff]
  %v2632 = vld [vmem:[%s3 + $0x798] sm:$0xff]
  %v2633 = vld [vmem:[%s3 + $0x7a0] sm:$0xff]
  %v2634 = vld [vmem:[%s3 + $0x7a8] sm:$0xff]
  %v2635 = vld [vmem:[%s3 + $0x7b0] sm:$0xff]
  %v2636 = vld [vmem:[%s3 + $0x7b8] sm:$0xff]
  %v2637 = vld [vmem:[%s3 + $0x7c0] sm:$0xff]
  %v2638 = vld [vmem:[%s3 + $0x7c8] sm:$0xff]
  %v2639 = vld [vmem:[%s3 + $0x7d0] sm:$0xff]
  %v2640 = vld [vmem:[%s3 + $0x7d8] sm:$0xff]
  %v2641 = vld [vmem:[%s3 + $0x7e0] sm:$0xff]
  %v2642 = vld [vmem:[%s3 + $0x7e8] sm:$0xff]
  %v2643 = vld [vmem:[%s3 + $0x7f0] sm:$0xff]
  %v2644 = vld [vmem:[%s3 + $0x7f8] sm:$0xff]
  %2645 = vmatprep.subr.mxu0 0.0
  %2646 = vmatpush1.msra.mxu0 %v2629
  %2647 = vmatprep.subr.mxu0 0.0
  %2648 = vmatpush1.msra.mxu0 %v2630
  %2649 = vmatprep.subr.mxu0 0.0
  %2650 = vmatpush1.msra.mxu0 %v2631
  %2651 = vmatprep.subr.mxu0 0.0
  %2652 = vmatpush1.msra.mxu0 %v2632
  %2653 = vmatprep.subr.mxu0 0.0
  %2654 = vmatpush1.msra.mxu0 %v2633
  %2655 = vmatprep.subr.mxu0 0.0
  %2656 = vmatpush1.msra.mxu0 %v2634
  %2657 = vmatprep.subr.mxu0 0.0
  %2658 = vmatpush1.msra.mxu0 %v2635
  %2659 = vmatprep.subr.mxu0 0.0
  %2660 = vmatpush1.msra.mxu0 %v2636
  %2661 = vmatprep.subr.mxu0 0.0
  %2662 = vmatpush1.msra.mxu0 %v2637
  %2663 = vmatprep.subr.mxu0 0.0
  %2664 = vmatpush1.msra.mxu0 %v2638
  %2665 = vmatprep.subr.mxu0 0.0
  %2666 = vmatpush1.msra.mxu0 %v2639
  %2667 = vmatprep.subr.mxu0 0.0
  %2668 = vmatpush1.msra.mxu0 %v2640
  %2669 = vmatprep.subr.mxu0 0.0
  %2670 = vmatpush1.msra.mxu0 %v2641
  %2671 = vmatprep.subr.mxu0 0.0
  %2672 = vmatpush1.msra.mxu0 %v2642
  %2673 = vmatprep.subr.mxu0 0.0
  %2674 = vmatpush1.msra.mxu0 %v2643
  %2675 = vmatprep.subr.mxu0 0.0
  %2676 = vmatpush1.msra.mxu0 %v2644
  %2677 = vmatprep.subr.mxu0 0.0
  %2678 = vmatpush1.msra.mxu0 0.0
  %2679 = vmatprep.subr.mxu0 0.0
  %2680 = vmatpush1.msra.mxu0 0.0
  %2681 = vmatprep.subr.mxu0 0.0
  %2682 = vmatpush1.msra.mxu0 0.0
  %2683 = vmatprep.subr.mxu0 0.0
  %2684 = vmatpush1.msra.mxu0 0.0
  %2685 = vmatprep.subr.mxu0 0.0
  %2686 = vmatpush1.msra.mxu0 0.0
  %2687 = vmatprep.subr.mxu0 0.0
  %2688 = vmatpush1.msra.mxu0 0.0
  %2689 = vmatprep.subr.mxu0 0.0
  %2690 = vmatpush1.msra.mxu0 0.0
  %2691 = vmatprep.subr.mxu0 0.0
  %2692 = vmatpush1.msra.mxu0 0.0
  %2693 = vmatprep.subr.mxu0 0.0
  %2694 = vmatpush1.msra.mxu0 0.0
  %2695 = vmatprep.subr.mxu0 0.0
  %2696 = vmatpush1.msra.mxu0 0.0
  %2697 = vmatprep.subr.mxu0 0.0
  %2698 = vmatpush1.msra.mxu0 0.0
  %2699 = vmatprep.subr.mxu0 0.0
  %2700 = vmatpush1.msra.mxu0 0.0
  %2701 = vmatprep.subr.mxu0 0.0
  %2702 = vmatpush1.msra.mxu0 0.0
  %2703 = vmatprep.subr.mxu0 0.0
  %2704 = vmatpush1.msra.mxu0 0.0
  %2705 = vmatprep.subr.mxu0 0.0
  %2706 = vmatpush1.msra.mxu0 0.0
  %2707 = vmatprep.subr.mxu0 0.0
  %2708 = vmatpush1.msra.mxu0 0.0
  %2709 = vmatprep.mubr.f32.mxu0 0.0
  %2710 = vmatmul.mubr.f32.gmra.mrb[0].mxu0 %v1316
  %v2711 = vpop.f32.mrb[0].mxu0
  %v2712 = vadd.f32 0.0, %v2711
  %v2713 = vpop.f32.mrb[0].mxu0
  %2714 = vdwg.mxu0
  %v2715 = vadd.f32 %v2628, %v2712
  %v2716 = vld [vmem:[%s3 + $0x800] sm:$0xff]
  %v2717 = vld [vmem:[%s3 + $0x808] sm:$0xff]
  %v2718 = vld [vmem:[%s3 + $0x810] sm:$0xff]
  %v2719 = vld [vmem:[%s3 + $0x818] sm:$0xff]
  %v2720 = vld [vmem:[%s3 + $0x820] sm:$0xff]
  %v2721 = vld [vmem:[%s3 + $0x828] sm:$0xff]
  %v2722 = vld [vmem:[%s3 + $0x830] sm:$0xff]
  %v2723 = vld [vmem:[%s3 + $0x838] sm:$0xff]
  %v2724 = vld [vmem:[%s3 + $0x840] sm:$0xff]
  %v2725 = vld [vmem:[%s3 + $0x848] sm:$0xff]
  %v2726 = vld [vmem:[%s3 + $0x850] sm:$0xff]
  %v2727 = vld [vmem:[%s3 + $0x858] sm:$0xff]
  %v2728 = vld [vmem:[%s3 + $0x860] sm:$0xff]
  %v2729 = vld [vmem:[%s3 + $0x868] sm:$0xff]
  %v2730 = vld [vmem:[%s3 + $0x870] sm:$0xff]
  %v2731 = vld [vmem:[%s3 + $0x878] sm:$0xff]
  %2732 = vmatprep.subr.mxu0 0.0
  %2733 = vmatpush1.msra.mxu0 %v2716
  %2734 = vmatprep.subr.mxu0 0.0
  %2735 = vmatpush1.msra.mxu0 %v2717
  %2736 = vmatprep.subr.mxu0 0.0
  %2737 = vmatpush1.msra.mxu0 %v2718
  %2738 = vmatprep.subr.mxu0 0.0
  %2739 = vmatpush1.msra.mxu0 %v2719
  %2740 = vmatprep.subr.mxu0 0.0
  %2741 = vmatpush1.msra.mxu0 %v2720
  %2742 = vmatprep.subr.mxu0 0.0
  %2743 = vmatpush1.msra.mxu0 %v2721
  %2744 = vmatprep.subr.mxu0 0.0
  %2745 = vmatpush1.msra.mxu0 %v2722
  %2746 = vmatprep.subr.mxu0 0.0
  %2747 = vmatpush1.msra.mxu0 %v2723
  %2748 = vmatprep.subr.mxu0 0.0
  %2749 = vmatpush1.msra.mxu0 %v2724
  %2750 = vmatprep.subr.mxu0 0.0
  %2751 = vmatpush1.msra.mxu0 %v2725
  %2752 = vmatprep.subr.mxu0 0.0
  %2753 = vmatpush1.msra.mxu0 %v2726
  %2754 = vmatprep.subr.mxu0 0.0
  %2755 = vmatpush1.msra.mxu0 %v2727
  %2756 = vmatprep.subr.mxu0 0.0
  %2757 = vmatpush1.msra.mxu0 %v2728
  %2758 = vmatprep.subr.mxu0 0.0
  %2759 = vmatpush1.msra.mxu0 %v2729
  %2760 = vmatprep.subr.mxu0 0.0
  %2761 = vmatpush1.msra.mxu0 %v2730
  %2762 = vmatprep.subr.mxu0 0.0
  %2763 = vmatpush1.msra.mxu0 %v2731
  %2764 = vmatprep.subr.mxu0 0.0
  %2765 = vmatpush1.msra.mxu0 0.0
  %2766 = vmatprep.subr.mxu0 0.0
  %2767 = vmatpush1.msra.mxu0 0.0
  %2768 = vmatprep.subr.mxu0 0.0
  %2769 = vmatpush1.msra.mxu0 0.0
  %2770 = vmatprep.subr.mxu0 0.0
  %2771 = vmatpush1.msra.mxu0 0.0
  %2772 = vmatprep.subr.mxu0 0.0
  %2773 = vmatpush1.msra.mxu0 0.0
  %2774 = vmatprep.subr.mxu0 0.0
  %2775 = vmatpush1.msra.mxu0 0.0
  %2776 = vmatprep.subr.mxu0 0.0
  %2777 = vmatpush1.msra.mxu0 0.0
  %2778 = vmatprep.subr.mxu0 0.0
  %2779 = vmatpush1.msra.mxu0 0.0
  %2780 = vmatprep.subr.mxu0 0.0
  %2781 = vmatpush1.msra.mxu0 0.0
  %2782 = vmatprep.subr.mxu0 0.0
  %2783 = vmatpush1.msra.mxu0 0.0
  %2784 = vmatprep.subr.mxu0 0.0
  %2785 = vmatpush1.msra.mxu0 0.0
  %2786 = vmatprep.subr.mxu0 0.0
  %2787 = vmatpush1.msra.mxu0 0.0
  %2788 = vmatprep.subr.mxu0 0.0
  %2789 = vmatpush1.msra.mxu0 0.0
  %2790 = vmatprep.subr.mxu0 0.0
  %2791 = vmatpush1.msra.mxu0 0.0
  %2792 = vmatprep.subr.mxu0 0.0
  %2793 = vmatpush1.msra.mxu0 0.0
  %2794 = vmatprep.subr.mxu0 0.0
  %2795 = vmatpush1.msra.mxu0 0.0
  %2796 = vmatprep.mubr.f32.mxu0 0.0
  %2797 = vmatmul.mubr.f32.gmra.mrb[0].mxu0 %v1317
  %v2798 = vpop.f32.mrb[0].mxu0
  %v2799 = vadd.f32 0.0, %v2798
  %v2800 = vpop.f32.mrb[0].mxu0
  %2801 = vdwg.mxu0
  %v2802 = vadd.f32 %v2715, %v2799
  %v2803 = vld [vmem:[%s3 + $0x880] sm:$0xff]
  %v2804 = vld [vmem:[%s3 + $0x888] sm:$0xff]
  %v2805 = vld [vmem:[%s3 + $0x890] sm:$0xff]
  %v2806 = vld [vmem:[%s3 + $0x898] sm:$0xff]
  %v2807 = vld [vmem:[%s3 + $0x8a0] sm:$0xff]
  %v2808 = vld [vmem:[%s3 + $0x8a8] sm:$0xff]
  %v2809 = vld [vmem:[%s3 + $0x8b0] sm:$0xff]
  %v2810 = vld [vmem:[%s3 + $0x8b8] sm:$0xff]
  %v2811 = vld [vmem:[%s3 + $0x8c0] sm:$0xff]
  %v2812 = vld [vmem:[%s3 + $0x8c8] sm:$0xff]
  %v2813 = vld [vmem:[%s3 + $0x8d0] sm:$0xff]
  %v2814 = vld [vmem:[%s3 + $0x8d8] sm:$0xff]
  %v2815 = vld [vmem:[%s3 + $0x8e0] sm:$0xff]
  %v2816 = vld [vmem:[%s3 + $0x8e8] sm:$0xff]
  %v2817 = vld [vmem:[%s3 + $0x8f0] sm:$0xff]
  %v2818 = vld [vmem:[%s3 + $0x8f8] sm:$0xff]
  %2819 = vmatprep.subr.mxu0 0.0
  %2820 = vmatpush1.msra.mxu0 %v2803
  %2821 = vmatprep.subr.mxu0 0.0
  %2822 = vmatpush1.msra.mxu0 %v2804
  %2823 = vmatprep.subr.mxu0 0.0
  %2824 = vmatpush1.msra.mxu0 %v2805
  %2825 = vmatprep.subr.mxu0 0.0
  %2826 = vmatpush1.msra.mxu0 %v2806
  %2827 = vmatprep.subr.mxu0 0.0
  %2828 = vmatpush1.msra.mxu0 %v2807
  %2829 = vmatprep.subr.mxu0 0.0
  %2830 = vmatpush1.msra.mxu0 %v2808
  %2831 = vmatprep.subr.mxu0 0.0
  %2832 = vmatpush1.msra.mxu0 %v2809
  %2833 = vmatprep.subr.mxu0 0.0
  %2834 = vmatpush1.msra.mxu0 %v2810
  %2835 = vmatprep.subr.mxu0 0.0
  %2836 = vmatpush1.msra.mxu0 %v2811
  %2837 = vmatprep.subr.mxu0 0.0
  %2838 = vmatpush1.msra.mxu0 %v2812
  %2839 = vmatprep.subr.mxu0 0.0
  %2840 = vmatpush1.msra.mxu0 %v2813
  %2841 = vmatprep.subr.mxu0 0.0
  %2842 = vmatpush1.msra.mxu0 %v2814
  %2843 = vmatprep.subr.mxu0 0.0
  %2844 = vmatpush1.msra.mxu0 %v2815
  %2845 = vmatprep.subr.mxu0 0.0
  %2846 = vmatpush1.msra.mxu0 %v2816
  %2847 = vmatprep.subr.mxu0 0.0
  %2848 = vmatpush1.msra.mxu0 %v2817
  %2849 = vmatprep.subr.mxu0 0.0
  %2850 = vmatpush1.msra.mxu0 %v2818
  %2851 = vmatprep.subr.mxu0 0.0
  %2852 = vmatpush1.msra.mxu0 0.0
  %2853 = vmatprep.subr.mxu0 0.0
  %2854 = vmatpush1.msra.mxu0 0.0
  %2855 = vmatprep.subr.mxu0 0.0
  %2856 = vmatpush1.msra.mxu0 0.0
  %2857 = vmatprep.subr.mxu0 0.0
  %2858 = vmatpush1.msra.mxu0 0.0
  %2859 = vmatprep.subr.mxu0 0.0
  %2860 = vmatpush1.msra.mxu0 0.0
  %2861 = vmatprep.subr.mxu0 0.0
  %2862 = vmatpush1.msra.mxu0 0.0
  %2863 = vmatprep.subr.mxu0 0.0
  %2864 = vmatpush1.msra.mxu0 0.0
  %2865 = vmatprep.subr.mxu0 0.0
  %2866 = vmatpush1.msra.mxu0 0.0
  %2867 = vmatprep.subr.mxu0 0.0
  %2868 = vmatpush1.msra.mxu0 0.0
  %2869 = vmatprep.subr.mxu0 0.0
  %2870 = vmatpush1.msra.mxu0 0.0
  %2871 = vmatprep.subr.mxu0 0.0
  %2872 = vmatpush1.msra.mxu0 0.0
  %2873 = vmatprep.subr.mxu0 0.0
  %2874 = vmatpush1.msra.mxu0 0.0
  %2875 = vmatprep.subr.mxu0 0.0
  %2876 = vmatpush1.msra.mxu0 0.0
  %2877 = vmatprep.subr.mxu0 0.0
  %2878 = vmatpush1.msra.mxu0 0.0
  %2879 = vmatprep.subr.mxu0 0.0
  %2880 = vmatpush1.msra.mxu0 0.0
  %2881 = vmatprep.subr.mxu0 0.0
  %2882 = vmatpush1.msra.mxu0 0.0
  %2883 = vmatprep.mubr.f32.mxu0 0.0
  %2884 = vmatmul.mubr.f32.gmra.mrb[0].mxu0 %v1318
  %v2885 = vpop.f32.mrb[0].mxu0
  %v2886 = vadd.f32 0.0, %v2885
  %v2887 = vpop.f32.mrb[0].mxu0
  %2888 = vdwg.mxu0
  %v2889 = vadd.f32 %v2802, %v2886
  %v2890 = vld [vmem:[%s3 + $0x900] sm:$0xff]
  %v2891 = vld [vmem:[%s3 + $0x908] sm:$0xff]
  %v2892 = vld [vmem:[%s3 + $0x910] sm:$0xff]
  %v2893 = vld [vmem:[%s3 + $0x918] sm:$0xff]
  %v2894 = vld [vmem:[%s3 + $0x920] sm:$0xff]
  %v2895 = vld [vmem:[%s3 + $0x928] sm:$0xff]
  %v2896 = vld [vmem:[%s3 + $0x930] sm:$0xff]
  %v2897 = vld [vmem:[%s3 + $0x938] sm:$0xff]
  %v2898 = vld [vmem:[%s3 + $0x940] sm:$0xff]
  %v2899 = vld [vmem:[%s3 + $0x948] sm:$0xff]
  %v2900 = vld [vmem:[%s3 + $0x950] sm:$0xff]
  %v2901 = vld [vmem:[%s3 + $0x958] sm:$0xff]
  %v2902 = vld [vmem:[%s3 + $0x960] sm:$0xff]
  %v2903 = vld [vmem:[%s3 + $0x968] sm:$0xff]
  %v2904 = vld [vmem:[%s3 + $0x970] sm:$0xff]
  %v2905 = vld [vmem:[%s3 + $0x978] sm:$0xff]
  %2906 = vmatprep.subr.mxu0 0.0
  %2907 = vmatpush1.msra.mxu0 %v2890
  %2908 = vmatprep.subr.mxu0 0.0
  %2909 = vmatpush1.msra.mxu0 %v2891
  %2910 = vmatprep.subr.mxu0 0.0
  %2911 = vmatpush1.msra.mxu0 %v2892
  %2912 = vmatprep.subr.mxu0 0.0
  %2913 = vmatpush1.msra.mxu0 %v2893
  %2914 = vmatprep.subr.mxu0 0.0
  %2915 = vmatpush1.msra.mxu0 %v2894
  %2916 = vmatprep.subr.mxu0 0.0
  %2917 = vmatpush1.msra.mxu0 %v2895
  %2918 = vmatprep.subr.mxu0 0.0
  %2919 = vmatpush1.msra.mxu0 %v2896
  %2920 = vmatprep.subr.mxu0 0.0
  %2921 = vmatpush1.msra.mxu0 %v2897
  %2922 = vmatprep.subr.mxu0 0.0
  %2923 = vmatpush1.msra.mxu0 %v2898
  %2924 = vmatprep.subr.mxu0 0.0
  %2925 = vmatpush1.msra.mxu0 %v2899
  %2926 = vmatprep.subr.mxu0 0.0
  %2927 = vmatpush1.msra.mxu0 %v2900
  %2928 = vmatprep.subr.mxu0 0.0
  %2929 = vmatpush1.msra.mxu0 %v2901
  %2930 = vmatprep.subr.mxu0 0.0
  %2931 = vmatpush1.msra.mxu0 %v2902
  %2932 = vmatprep.subr.mxu0 0.0
  %2933 = vmatpush1.msra.mxu0 %v2903
  %2934 = vmatprep.subr.mxu0 0.0
  %2935 = vmatpush1.msra.mxu0 %v2904
  %2936 = vmatprep.subr.mxu0 0.0
  %2937 = vmatpush1.msra.mxu0 %v2905
  %2938 = vmatprep.subr.mxu0 0.0
  %2939 = vmatpush1.msra.mxu0 0.0
  %2940 = vmatprep.subr.mxu0 0.0
  %2941 = vmatpush1.msra.mxu0 0.0
  %2942 = vmatprep.subr.mxu0 0.0
  %2943 = vmatpush1.msra.mxu0 0.0
  %2944 = vmatprep.subr.mxu0 0.0
  %2945 = vmatpush1.msra.mxu0 0.0
  %2946 = vmatprep.subr.mxu0 0.0
  %2947 = vmatpush1.msra.mxu0 0.0
  %2948 = vmatprep.subr.mxu0 0.0
  %2949 = vmatpush1.msra.mxu0 0.0
  %2950 = vmatprep.subr.mxu0 0.0
  %2951 = vmatpush1.msra.mxu0 0.0
  %2952 = vmatprep.subr.mxu0 0.0
  %2953 = vmatpush1.msra.mxu0 0.0
  %2954 = vmatprep.subr.mxu0 0.0
  %2955 = vmatpush1.msra.mxu0 0.0
  %2956 = vmatprep.subr.mxu0 0.0
  %2957 = vmatpush1.msra.mxu0 0.0
  %2958 = vmatprep.subr.mxu0 0.0
  %2959 = vmatpush1.msra.mxu0 0.0
  %2960 = vmatprep.subr.mxu0 0.0
  %2961 = vmatpush1.msra.mxu0 0.0
  %2962 = vmatprep.subr.mxu0 0.0
  %2963 = vmatpush1.msra.mxu0 0.0
  %2964 = vmatprep.subr.mxu0 0.0
  %2965 = vmatpush1.msra.mxu0 0.0
  %2966 = vmatprep.subr.mxu0 0.0
  %2967 = vmatpush1.msra.mxu0 0.0
  %2968 = vmatprep.subr.mxu0 0.0
  %2969 = vmatpush1.msra.mxu0 0.0
  %2970 = vmatprep.mubr.f32.mxu0 0.0
  %2971 = vmatmul.mubr.f32.gmra.mrb[0].mxu0 %v1319
  %v2972 = vpop.f32.mrb[0].mxu0
  %v2973 = vadd.f32 0.0, %v2972
  %v2974 = vpop.f32.mrb[0].mxu0
  %2975 = vdwg.mxu0
  %v2976 = vadd.f32 %v2889, %v2973
  %v2977 = vld [vmem:[%s3 + $0x980] sm:$0xff]
  %v2978 = vld [vmem:[%s3 + $0x988] sm:$0xff]
  %v2979 = vld [vmem:[%s3 + $0x990] sm:$0xff]
  %v2980 = vld [vmem:[%s3 + $0x998] sm:$0xff]
  %v2981 = vld [vmem:[%s3 + $0x9a0] sm:$0xff]
  %v2982 = vld [vmem:[%s3 + $0x9a8] sm:$0xff]
  %v2983 = vld [vmem:[%s3 + $0x9b0] sm:$0xff]
  %v2984 = vld [vmem:[%s3 + $0x9b8] sm:$0xff]
  %v2985 = vld [vmem:[%s3 + $0x9c0] sm:$0xff]
  %v2986 = vld [vmem:[%s3 + $0x9c8] sm:$0xff]
  %v2987 = vld [vmem:[%s3 + $0x9d0] sm:$0xff]
  %v2988 = vld [vmem:[%s3 + $0x9d8] sm:$0xff]
  %v2989 = vld [vmem:[%s3 + $0x9e0] sm:$0xff]
  %v2990 = vld [vmem:[%s3 + $0x9e8] sm:$0xff]
  %v2991 = vld [vmem:[%s3 + $0x9f0] sm:$0xff]
  %v2992 = vld [vmem:[%s3 + $0x9f8] sm:$0xff]
  %2993 = vmatprep.subr.mxu0 0.0
  %2994 = vmatpush1.msra.mxu0 %v2977
  %2995 = vmatprep.subr.mxu0 0.0
  %2996 = vmatpush1.msra.mxu0 %v2978
  %2997 = vmatprep.subr.mxu0 0.0
  %2998 = vmatpush1.msra.mxu0 %v2979
  %2999 = vmatprep.subr.mxu0 0.0
  %3000 = vmatpush1.msra.mxu0 %v2980
  %3001 = vmatprep.subr.mxu0 0.0
  %3002 = vmatpush1.msra.mxu0 %v2981
  %3003 = vmatprep.subr.mxu0 0.0
  %3004 = vmatpush1.msra.mxu0 %v2982
  %3005 = vmatprep.subr.mxu0 0.0
  %3006 = vmatpush1.msra.mxu0 %v2983
  %3007 = vmatprep.subr.mxu0 0.0
  %3008 = vmatpush1.msra.mxu0 %v2984
  %3009 = vmatprep.subr.mxu0 0.0
  %3010 = vmatpush1.msra.mxu0 %v2985
  %3011 = vmatprep.subr.mxu0 0.0
  %3012 = vmatpush1.msra.mxu0 %v2986
  %3013 = vmatprep.subr.mxu0 0.0
  %3014 = vmatpush1.msra.mxu0 %v2987
  %3015 = vmatprep.subr.mxu0 0.0
  %3016 = vmatpush1.msra.mxu0 %v2988
  %3017 = vmatprep.subr.mxu0 0.0
  %3018 = vmatpush1.msra.mxu0 %v2989
  %3019 = vmatprep.subr.mxu0 0.0
  %3020 = vmatpush1.msra.mxu0 %v2990
  %3021 = vmatprep.subr.mxu0 0.0
  %3022 = vmatpush1.msra.mxu0 %v2991
  %3023 = vmatprep.subr.mxu0 0.0
  %3024 = vmatpush1.msra.mxu0 %v2992
  %3025 = vmatprep.subr.mxu0 0.0
  %3026 = vmatpush1.msra.mxu0 0.0
  %3027 = vmatprep.subr.mxu0 0.0
  %3028 = vmatpush1.msra.mxu0 0.0
  %3029 = vmatprep.subr.mxu0 0.0
  %3030 = vmatpush1.msra.mxu0 0.0
  %3031 = vmatprep.subr.mxu0 0.0
  %3032 = vmatpush1.msra.mxu0 0.0
  %3033 = vmatprep.subr.mxu0 0.0
  %3034 = vmatpush1.msra.mxu0 0.0
  %3035 = vmatprep.subr.mxu0 0.0
  %3036 = vmatpush1.msra.mxu0 0.0
  %3037 = vmatprep.subr.mxu0 0.0
  %3038 = vmatpush1.msra.mxu0 0.0
  %3039 = vmatprep.subr.mxu0 0.0
  %3040 = vmatpush1.msra.mxu0 0.0
  %3041 = vmatprep.subr.mxu0 0.0
  %3042 = vmatpush1.msra.mxu0 0.0
  %3043 = vmatprep.subr.mxu0 0.0
  %3044 = vmatpush1.msra.mxu0 0.0
  %3045 = vmatprep.subr.mxu0 0.0
  %3046 = vmatpush1.msra.mxu0 0.0
  %3047 = vmatprep.subr.mxu0 0.0
  %3048 = vmatpush1.msra.mxu0 0.0
  %3049 = vmatprep.subr.mxu0 0.0
  %3050 = vmatpush1.msra.mxu0 0.0
  %3051 = vmatprep.subr.mxu0 0.0
  %3052 = vmatpush1.msra.mxu0 0.0
  %3053 = vmatprep.subr.mxu0 0.0
  %3054 = vmatpush1.msra.mxu0 0.0
  %3055 = vmatprep.subr.mxu0 0.0
  %3056 = vmatpush1.msra.mxu0 0.0
  %3057 = vmatprep.mubr.f32.mxu0 0.0
  %3058 = vmatmul.mubr.f32.gmra.mrb[0].mxu0 %v1320
  %v3059 = vpop.f32.mrb[0].mxu0
  %v3060 = vadd.f32 0.0, %v3059
  %v3061 = vpop.f32.mrb[0].mxu0
  %3062 = vdwg.mxu0
  %v3063 = vadd.f32 %v2976, %v3060
  %v3064 = vld [vmem:[%s3 + $0xa00] sm:$0xff]
  %v3065 = vld [vmem:[%s3 + $0xa08] sm:$0xff]
  %v3066 = vld [vmem:[%s3 + $0xa10] sm:$0xff]
  %v3067 = vld [vmem:[%s3 + $0xa18] sm:$0xff]
  %v3068 = vld [vmem:[%s3 + $0xa20] sm:$0xff]
  %v3069 = vld [vmem:[%s3 + $0xa28] sm:$0xff]
  %v3070 = vld [vmem:[%s3 + $0xa30] sm:$0xff]
  %v3071 = vld [vmem:[%s3 + $0xa38] sm:$0xff]
  %v3072 = vld [vmem:[%s3 + $0xa40] sm:$0xff]
  %v3073 = vld [vmem:[%s3 + $0xa48] sm:$0xff]
  %v3074 = vld [vmem:[%s3 + $0xa50] sm:$0xff]
  %v3075 = vld [vmem:[%s3 + $0xa58] sm:$0xff]
  %v3076 = vld [vmem:[%s3 + $0xa60] sm:$0xff]
  %v3077 = vld [vmem:[%s3 + $0xa68] sm:$0xff]
  %v3078 = vld [vmem:[%s3 + $0xa70] sm:$0xff]
  %v3079 = vld [vmem:[%s3 + $0xa78] sm:$0xff]
  %3080 = vmatprep.subr.mxu0 0.0
  %3081 = vmatpush1.msra.mxu0 %v3064
  %3082 = vmatprep.subr.mxu0 0.0
  %3083 = vmatpush1.msra.mxu0 %v3065
  %3084 = vmatprep.subr.mxu0 0.0
  %3085 = vmatpush1.msra.mxu0 %v3066
  %3086 = vmatprep.subr.mxu0 0.0
  %3087 = vmatpush1.msra.mxu0 %v3067
  %3088 = vmatprep.subr.mxu0 0.0
  %3089 = vmatpush1.msra.mxu0 %v3068
  %3090 = vmatprep.subr.mxu0 0.0
  %3091 = vmatpush1.msra.mxu0 %v3069
  %3092 = vmatprep.subr.mxu0 0.0
  %3093 = vmatpush1.msra.mxu0 %v3070
  %3094 = vmatprep.subr.mxu0 0.0
  %3095 = vmatpush1.msra.mxu0 %v3071
  %3096 = vmatprep.subr.mxu0 0.0
  %3097 = vmatpush1.msra.mxu0 %v3072
  %3098 = vmatprep.subr.mxu0 0.0
  %3099 = vmatpush1.msra.mxu0 %v3073
  %3100 = vmatprep.subr.mxu0 0.0
  %3101 = vmatpush1.msra.mxu0 %v3074
  %3102 = vmatprep.subr.mxu0 0.0
  %3103 = vmatpush1.msra.mxu0 %v3075
  %3104 = vmatprep.subr.mxu0 0.0
  %3105 = vmatpush1.msra.mxu0 %v3076
  %3106 = vmatprep.subr.mxu0 0.0
  %3107 = vmatpush1.msra.mxu0 %v3077
  %3108 = vmatprep.subr.mxu0 0.0
  %3109 = vmatpush1.msra.mxu0 %v3078
  %3110 = vmatprep.subr.mxu0 0.0
  %3111 = vmatpush1.msra.mxu0 %v3079
  %3112 = vmatprep.subr.mxu0 0.0
  %3113 = vmatpush1.msra.mxu0 0.0
  %3114 = vmatprep.subr.mxu0 0.0
  %3115 = vmatpush1.msra.mxu0 0.0
  %3116 = vmatprep.subr.mxu0 0.0
  %3117 = vmatpush1.msra.mxu0 0.0
  %3118 = vmatprep.subr.mxu0 0.0
  %3119 = vmatpush1.msra.mxu0 0.0
  %3120 = vmatprep.subr.mxu0 0.0
  %3121 = vmatpush1.msra.mxu0 0.0
  %3122 = vmatprep.subr.mxu0 0.0
  %3123 = vmatpush1.msra.mxu0 0.0
  %3124 = vmatprep.subr.mxu0 0.0
  %3125 = vmatpush1.msra.mxu0 0.0
  %3126 = vmatprep.subr.mxu0 0.0
  %3127 = vmatpush1.msra.mxu0 0.0
  %3128 = vmatprep.subr.mxu0 0.0
  %3129 = vmatpush1.msra.mxu0 0.0
  %3130 = vmatprep.subr.mxu0 0.0
  %3131 = vmatpush1.msra.mxu0 0.0
  %3132 = vmatprep.subr.mxu0 0.0
  %3133 = vmatpush1.msra.mxu0 0.0
  %3134 = vmatprep.subr.mxu0 0.0
  %3135 = vmatpush1.msra.mxu0 0.0
  %3136 = vmatprep.subr.mxu0 0.0
  %3137 = vmatpush1.msra.mxu0 0.0
  %3138 = vmatprep.subr.mxu0 0.0
  %3139 = vmatpush1.msra.mxu0 0.0
  %3140 = vmatprep.subr.mxu0 0.0
  %3141 = vmatpush1.msra.mxu0 0.0
  %3142 = vmatprep.subr.mxu0 0.0
  %3143 = vmatpush1.msra.mxu0 0.0
  %3144 = vmatprep.mubr.f32.mxu0 0.0
  %3145 = vmatmul.mubr.f32.gmra.mrb[0].mxu0 %v1321
  %v3146 = vpop.f32.mrb[0].mxu0
  %v3147 = vadd.f32 0.0, %v3146
  %v3148 = vpop.f32.mrb[0].mxu0
  %3149 = vdwg.mxu0
  %v3150 = vadd.f32 %v3063, %v3147
  %v3151 = vld [vmem:[%s3 + $0xa80] sm:$0xff]
  %v3152 = vld [vmem:[%s3 + $0xa88] sm:$0xff]
  %v3153 = vld [vmem:[%s3 + $0xa90] sm:$0xff]
  %v3154 = vld [vmem:[%s3 + $0xa98] sm:$0xff]
  %v3155 = vld [vmem:[%s3 + $0xaa0] sm:$0xff]
  %v3156 = vld [vmem:[%s3 + $0xaa8] sm:$0xff]
  %v3157 = vld [vmem:[%s3 + $0xab0] sm:$0xff]
  %v3158 = vld [vmem:[%s3 + $0xab8] sm:$0xff]
  %v3159 = vld [vmem:[%s3 + $0xac0] sm:$0xff]
  %v3160 = vld [vmem:[%s3 + $0xac8] sm:$0xff]
  %v3161 = vld [vmem:[%s3 + $0xad0] sm:$0xff]
  %v3162 = vld [vmem:[%s3 + $0xad8] sm:$0xff]
  %v3163 = vld [vmem:[%s3 + $0xae0] sm:$0xff]
  %v3164 = vld [vmem:[%s3 + $0xae8] sm:$0xff]
  %v3165 = vld [vmem:[%s3 + $0xaf0] sm:$0xff]
  %v3166 = vld [vmem:[%s3 + $0xaf8] sm:$0xff]
  %3167 = vmatprep.subr.mxu0 0.0
  %3168 = vmatpush1.msra.mxu0 %v3151
  %3169 = vmatprep.subr.mxu0 0.0
  %3170 = vmatpush1.msra.mxu0 %v3152
  %3171 = vmatprep.subr.mxu0 0.0
  %3172 = vmatpush1.msra.mxu0 %v3153
  %3173 = vmatprep.subr.mxu0 0.0
  %3174 = vmatpush1.msra.mxu0 %v3154
  %3175 = vmatprep.subr.mxu0 0.0
  %3176 = vmatpush1.msra.mxu0 %v3155
  %3177 = vmatprep.subr.mxu0 0.0
  %3178 = vmatpush1.msra.mxu0 %v3156
  %3179 = vmatprep.subr.mxu0 0.0
  %3180 = vmatpush1.msra.mxu0 %v3157
  %3181 = vmatprep.subr.mxu0 0.0
  %3182 = vmatpush1.msra.mxu0 %v3158
  %3183 = vmatprep.subr.mxu0 0.0
  %3184 = vmatpush1.msra.mxu0 %v3159
  %3185 = vmatprep.subr.mxu0 0.0
  %3186 = vmatpush1.msra.mxu0 %v3160
  %3187 = vmatprep.subr.mxu0 0.0
  %3188 = vmatpush1.msra.mxu0 %v3161
  %3189 = vmatprep.subr.mxu0 0.0
  %3190 = vmatpush1.msra.mxu0 %v3162
  %3191 = vmatprep.subr.mxu0 0.0
  %3192 = vmatpush1.msra.mxu0 %v3163
  %3193 = vmatprep.subr.mxu0 0.0
  %3194 = vmatpush1.msra.mxu0 %v3164
  %3195 = vmatprep.subr.mxu0 0.0
  %3196 = vmatpush1.msra.mxu0 %v3165
  %3197 = vmatprep.subr.mxu0 0.0
  %3198 = vmatpush1.msra.mxu0 %v3166
  %3199 = vmatprep.subr.mxu0 0.0
  %3200 = vmatpush1.msra.mxu0 0.0
  %3201 = vmatprep.subr.mxu0 0.0
  %3202 = vmatpush1.msra.mxu0 0.0
  %3203 = vmatprep.subr.mxu0 0.0
  %3204 = vmatpush1.msra.mxu0 0.0
  %3205 = vmatprep.subr.mxu0 0.0
  %3206 = vmatpush1.msra.mxu0 0.0
  %3207 = vmatprep.subr.mxu0 0.0
  %3208 = vmatpush1.msra.mxu0 0.0
  %3209 = vmatprep.subr.mxu0 0.0
  %3210 = vmatpush1.msra.mxu0 0.0
  %3211 = vmatprep.subr.mxu0 0.0
  %3212 = vmatpush1.msra.mxu0 0.0
  %3213 = vmatprep.subr.mxu0 0.0
  %3214 = vmatpush1.msra.mxu0 0.0
  %3215 = vmatprep.subr.mxu0 0.0
  %3216 = vmatpush1.msra.mxu0 0.0
  %3217 = vmatprep.subr.mxu0 0.0
  %3218 = vmatpush1.msra.mxu0 0.0
  %3219 = vmatprep.subr.mxu0 0.0
  %3220 = vmatpush1.msra.mxu0 0.0
  %3221 = vmatprep.subr.mxu0 0.0
  %3222 = vmatpush1.msra.mxu0 0.0
  %3223 = vmatprep.subr.mxu0 0.0
  %3224 = vmatpush1.msra.mxu0 0.0
  %3225 = vmatprep.subr.mxu0 0.0
  %3226 = vmatpush1.msra.mxu0 0.0
  %3227 = vmatprep.subr.mxu0 0.0
  %3228 = vmatpush1.msra.mxu0 0.0
  %3229 = vmatprep.subr.mxu0 0.0
  %3230 = vmatpush1.msra.mxu0 0.0
  %3231 = vmatprep.mubr.f32.mxu0 0.0
  %3232 = vmatmul.mubr.f32.gmra.mrb[0].mxu0 %v1322
  %v3233 = vpop.f32.mrb[0].mxu0
  %v3234 = vadd.f32 0.0, %v3233
  %v3235 = vpop.f32.mrb[0].mxu0
  %3236 = vdwg.mxu0
  %v3237 = vadd.f32 %v3150, %v3234
  %v3238 = vld [vmem:[%s3 + $0xb00] sm:$0xff]
  %v3239 = vld [vmem:[%s3 + $0xb08] sm:$0xff]
  %v3240 = vld [vmem:[%s3 + $0xb10] sm:$0xff]
  %v3241 = vld [vmem:[%s3 + $0xb18] sm:$0xff]
  %v3242 = vld [vmem:[%s3 + $0xb20] sm:$0xff]
  %v3243 = vld [vmem:[%s3 + $0xb28] sm:$0xff]
  %v3244 = vld [vmem:[%s3 + $0xb30] sm:$0xff]
  %v3245 = vld [vmem:[%s3 + $0xb38] sm:$0xff]
  %v3246 = vld [vmem:[%s3 + $0xb40] sm:$0xff]
  %v3247 = vld [vmem:[%s3 + $0xb48] sm:$0xff]
  %v3248 = vld [vmem:[%s3 + $0xb50] sm:$0xff]
  %v3249 = vld [vmem:[%s3 + $0xb58] sm:$0xff]
  %v3250 = vld [vmem:[%s3 + $0xb60] sm:$0xff]
  %v3251 = vld [vmem:[%s3 + $0xb68] sm:$0xff]
  %v3252 = vld [vmem:[%s3 + $0xb70] sm:$0xff]
  %v3253 = vld [vmem:[%s3 + $0xb78] sm:$0xff]
  %3254 = vmatprep.subr.mxu0 0.0
  %3255 = vmatpush1.msra.mxu0 %v3238
  %3256 = vmatprep.subr.mxu0 0.0
  %3257 = vmatpush1.msra.mxu0 %v3239
  %3258 = vmatprep.subr.mxu0 0.0
  %3259 = vmatpush1.msra.mxu0 %v3240
  %3260 = vmatprep.subr.mxu0 0.0
  %3261 = vmatpush1.msra.mxu0 %v3241
  %3262 = vmatprep.subr.mxu0 0.0
  %3263 = vmatpush1.msra.mxu0 %v3242
  %3264 = vmatprep.subr.mxu0 0.0
  %3265 = vmatpush1.msra.mxu0 %v3243
  %3266 = vmatprep.subr.mxu0 0.0
  %3267 = vmatpush1.msra.mxu0 %v3244
  %3268 = vmatprep.subr.mxu0 0.0
  %3269 = vmatpush1.msra.mxu0 %v3245
  %3270 = vmatprep.subr.mxu0 0.0
  %3271 = vmatpush1.msra.mxu0 %v3246
  %3272 = vmatprep.subr.mxu0 0.0
  %3273 = vmatpush1.msra.mxu0 %v3247
  %3274 = vmatprep.subr.mxu0 0.0
  %3275 = vmatpush1.msra.mxu0 %v3248
  %3276 = vmatprep.subr.mxu0 0.0
  %3277 = vmatpush1.msra.mxu0 %v3249
  %3278 = vmatprep.subr.mxu0 0.0
  %3279 = vmatpush1.msra.mxu0 %v3250
  %3280 = vmatprep.subr.mxu0 0.0
  %3281 = vmatpush1.msra.mxu0 %v3251
  %3282 = vmatprep.subr.mxu0 0.0
  %3283 = vmatpush1.msra.mxu0 %v3252
  %3284 = vmatprep.subr.mxu0 0.0
  %3285 = vmatpush1.msra.mxu0 %v3253
  %3286 = vmatprep.subr.mxu0 0.0
  %3287 = vmatpush1.msra.mxu0 0.0
  %3288 = vmatprep.subr.mxu0 0.0
  %3289 = vmatpush1.msra.mxu0 0.0
  %3290 = vmatprep.subr.mxu0 0.0
  %3291 = vmatpush1.msra.mxu0 0.0
  %3292 = vmatprep.subr.mxu0 0.0
  %3293 = vmatpush1.msra.mxu0 0.0
  %3294 = vmatprep.subr.mxu0 0.0
  %3295 = vmatpush1.msra.mxu0 0.0
  %3296 = vmatprep.subr.mxu0 0.0
  %3297 = vmatpush1.msra.mxu0 0.0
  %3298 = vmatprep.subr.mxu0 0.0
  %3299 = vmatpush1.msra.mxu0 0.0
  %3300 = vmatprep.subr.mxu0 0.0
  %3301 = vmatpush1.msra.mxu0 0.0
  %3302 = vmatprep.subr.mxu0 0.0
  %3303 = vmatpush1.msra.mxu0 0.0
  %3304 = vmatprep.subr.mxu0 0.0
  %3305 = vmatpush1.msra.mxu0 0.0
  %3306 = vmatprep.subr.mxu0 0.0
  %3307 = vmatpush1.msra.mxu0 0.0
  %3308 = vmatprep.subr.mxu0 0.0
  %3309 = vmatpush1.msra.mxu0 0.0
  %3310 = vmatprep.subr.mxu0 0.0
  %3311 = vmatpush1.msra.mxu0 0.0
  %3312 = vmatprep.subr.mxu0 0.0
  %3313 = vmatpush1.msra.mxu0 0.0
  %3314 = vmatprep.subr.mxu0 0.0
  %3315 = vmatpush1.msra.mxu0 0.0
  %3316 = vmatprep.subr.mxu0 0.0
  %3317 = vmatpush1.msra.mxu0 0.0
  %3318 = vmatprep.mubr.f32.mxu0 0.0
  %3319 = vmatmul.mubr.f32.gmra.mrb[0].mxu0 %v1323
  %v3320 = vpop.f32.mrb[0].mxu0
  %v3321 = vadd.f32 0.0, %v3320
  %v3322 = vpop.f32.mrb[0].mxu0
  %3323 = vdwg.mxu0
  %v3324 = vadd.f32 %v3237, %v3321
  %v3325 = vld [vmem:[%s3 + $0xb80] sm:$0xff]
  %v3326 = vld [vmem:[%s3 + $0xb88] sm:$0xff]
  %v3327 = vld [vmem:[%s3 + $0xb90] sm:$0xff]
  %v3328 = vld [vmem:[%s3 + $0xb98] sm:$0xff]
  %v3329 = vld [vmem:[%s3 + $0xba0] sm:$0xff]
  %v3330 = vld [vmem:[%s3 + $0xba8] sm:$0xff]
  %v3331 = vld [vmem:[%s3 + $0xbb0] sm:$0xff]
  %v3332 = vld [vmem:[%s3 + $0xbb8] sm:$0xff]
  %v3333 = vld [vmem:[%s3 + $0xbc0] sm:$0xff]
  %v3334 = vld [vmem:[%s3 + $0xbc8] sm:$0xff]
  %v3335 = vld [vmem:[%s3 + $0xbd0] sm:$0xff]
  %v3336 = vld [vmem:[%s3 + $0xbd8] sm:$0xff]
  %v3337 = vld [vmem:[%s3 + $0xbe0] sm:$0xff]
  %v3338 = vld [vmem:[%s3 + $0xbe8] sm:$0xff]
  %v3339 = vld [vmem:[%s3 + $0xbf0] sm:$0xff]
  %v3340 = vld [vmem:[%s3 + $0xbf8] sm:$0xff]
  %3341 = vmatprep.subr.mxu0 0.0
  %3342 = vmatpush1.msra.mxu0 %v3325
  %3343 = vmatprep.subr.mxu0 0.0
  %3344 = vmatpush1.msra.mxu0 %v3326
  %3345 = vmatprep.subr.mxu0 0.0
  %3346 = vmatpush1.msra.mxu0 %v3327
  %3347 = vmatprep.subr.mxu0 0.0
  %3348 = vmatpush1.msra.mxu0 %v3328
  %3349 = vmatprep.subr.mxu0 0.0
  %3350 = vmatpush1.msra.mxu0 %v3329
  %3351 = vmatprep.subr.mxu0 0.0
  %3352 = vmatpush1.msra.mxu0 %v3330
  %3353 = vmatprep.subr.mxu0 0.0
  %3354 = vmatpush1.msra.mxu0 %v3331
  %3355 = vmatprep.subr.mxu0 0.0
  %3356 = vmatpush1.msra.mxu0 %v3332
  %3357 = vmatprep.subr.mxu0 0.0
  %3358 = vmatpush1.msra.mxu0 %v3333
  %3359 = vmatprep.subr.mxu0 0.0
  %3360 = vmatpush1.msra.mxu0 %v3334
  %3361 = vmatprep.subr.mxu0 0.0
  %3362 = vmatpush1.msra.mxu0 %v3335
  %3363 = vmatprep.subr.mxu0 0.0
  %3364 = vmatpush1.msra.mxu0 %v3336
  %3365 = vmatprep.subr.mxu0 0.0
  %3366 = vmatpush1.msra.mxu0 %v3337
  %3367 = vmatprep.subr.mxu0 0.0
  %3368 = vmatpush1.msra.mxu0 %v3338
  %3369 = vmatprep.subr.mxu0 0.0
  %3370 = vmatpush1.msra.mxu0 %v3339
  %3371 = vmatprep.subr.mxu0 0.0
  %3372 = vmatpush1.msra.mxu0 %v3340
  %3373 = vmatprep.subr.mxu0 0.0
  %3374 = vmatpush1.msra.mxu0 0.0
  %3375 = vmatprep.subr.mxu0 0.0
  %3376 = vmatpush1.msra.mxu0 0.0
  %3377 = vmatprep.subr.mxu0 0.0
  %3378 = vmatpush1.msra.mxu0 0.0
  %3379 = vmatprep.subr.mxu0 0.0
  %3380 = vmatpush1.msra.mxu0 0.0
  %3381 = vmatprep.subr.mxu0 0.0
  %3382 = vmatpush1.msra.mxu0 0.0
  %3383 = vmatprep.subr.mxu0 0.0
  %3384 = vmatpush1.msra.mxu0 0.0
  %3385 = vmatprep.subr.mxu0 0.0
  %3386 = vmatpush1.msra.mxu0 0.0
  %3387 = vmatprep.subr.mxu0 0.0
  %3388 = vmatpush1.msra.mxu0 0.0
  %3389 = vmatprep.subr.mxu0 0.0
  %3390 = vmatpush1.msra.mxu0 0.0
  %3391 = vmatprep.subr.mxu0 0.0
  %3392 = vmatpush1.msra.mxu0 0.0
  %3393 = vmatprep.subr.mxu0 0.0
  %3394 = vmatpush1.msra.mxu0 0.0
  %3395 = vmatprep.subr.mxu0 0.0
  %3396 = vmatpush1.msra.mxu0 0.0
  %3397 = vmatprep.subr.mxu0 0.0
  %3398 = vmatpush1.msra.mxu0 0.0
  %3399 = vmatprep.subr.mxu0 0.0
  %3400 = vmatpush1.msra.mxu0 0.0
  %3401 = vmatprep.subr.mxu0 0.0
  %3402 = vmatpush1.msra.mxu0 0.0
  %3403 = vmatprep.subr.mxu0 0.0
  %3404 = vmatpush1.msra.mxu0 0.0
  %3405 = vmatprep.mubr.f32.mxu0 0.0
  %3406 = vmatmul.mubr.f32.gmra.mrb[0].mxu0 %v1324
  %v3407 = vpop.f32.mrb[0].mxu0
  %v3408 = vadd.f32 0.0, %v3407
  %v3409 = vpop.f32.mrb[0].mxu0
  %3410 = vdwg.mxu0
  %v3411 = vadd.f32 %v3324, %v3408
  %v3412 = vld [vmem:[%s3 + $0xc00] sm:$0xff]
  %v3413 = vld [vmem:[%s3 + $0xc08] sm:$0xff]
  %v3414 = vld [vmem:[%s3 + $0xc10] sm:$0xff]
  %v3415 = vld [vmem:[%s3 + $0xc18] sm:$0xff]
  %v3416 = vld [vmem:[%s3 + $0xc20] sm:$0xff]
  %v3417 = vld [vmem:[%s3 + $0xc28] sm:$0xff]
  %v3418 = vld [vmem:[%s3 + $0xc30] sm:$0xff]
  %v3419 = vld [vmem:[%s3 + $0xc38] sm:$0xff]
  %v3420 = vld [vmem:[%s3 + $0xc40] sm:$0xff]
  %v3421 = vld [vmem:[%s3 + $0xc48] sm:$0xff]
  %v3422 = vld [vmem:[%s3 + $0xc50] sm:$0xff]
  %v3423 = vld [vmem:[%s3 + $0xc58] sm:$0xff]
  %v3424 = vld [vmem:[%s3 + $0xc60] sm:$0xff]
  %v3425 = vld [vmem:[%s3 + $0xc68] sm:$0xff]
  %v3426 = vld [vmem:[%s3 + $0xc70] sm:$0xff]
  %v3427 = vld [vmem:[%s3 + $0xc78] sm:$0xff]
  %3428 = vmatprep.subr.mxu0 0.0
  %3429 = vmatpush1.msra.mxu0 %v3412
  %3430 = vmatprep.subr.mxu0 0.0
  %3431 = vmatpush1.msra.mxu0 %v3413
  %3432 = vmatprep.subr.mxu0 0.0
  %3433 = vmatpush1.msra.mxu0 %v3414
  %3434 = vmatprep.subr.mxu0 0.0
  %3435 = vmatpush1.msra.mxu0 %v3415
  %3436 = vmatprep.subr.mxu0 0.0
  %3437 = vmatpush1.msra.mxu0 %v3416
  %3438 = vmatprep.subr.mxu0 0.0
  %3439 = vmatpush1.msra.mxu0 %v3417
  %3440 = vmatprep.subr.mxu0 0.0
  %3441 = vmatpush1.msra.mxu0 %v3418
  %3442 = vmatprep.subr.mxu0 0.0
  %3443 = vmatpush1.msra.mxu0 %v3419
  %3444 = vmatprep.subr.mxu0 0.0
  %3445 = vmatpush1.msra.mxu0 %v3420
  %3446 = vmatprep.subr.mxu0 0.0
  %3447 = vmatpush1.msra.mxu0 %v3421
  %3448 = vmatprep.subr.mxu0 0.0
  %3449 = vmatpush1.msra.mxu0 %v3422
  %3450 = vmatprep.subr.mxu0 0.0
  %3451 = vmatpush1.msra.mxu0 %v3423
  %3452 = vmatprep.subr.mxu0 0.0
  %3453 = vmatpush1.msra.mxu0 %v3424
  %3454 = vmatprep.subr.mxu0 0.0
  %3455 = vmatpush1.msra.mxu0 %v3425
  %3456 = vmatprep.subr.mxu0 0.0
  %3457 = vmatpush1.msra.mxu0 %v3426
  %3458 = vmatprep.subr.mxu0 0.0
  %3459 = vmatpush1.msra.mxu0 %v3427
  %3460 = vmatprep.subr.mxu0 0.0
  %3461 = vmatpush1.msra.mxu0 0.0
  %3462 = vmatprep.subr.mxu0 0.0
  %3463 = vmatpush1.msra.mxu0 0.0
  %3464 = vmatprep.subr.mxu0 0.0
  %3465 = vmatpush1.msra.mxu0 0.0
  %3466 = vmatprep.subr.mxu0 0.0
  %3467 = vmatpush1.msra.mxu0 0.0
  %3468 = vmatprep.subr.mxu0 0.0
  %3469 = vmatpush1.msra.mxu0 0.0
  %3470 = vmatprep.subr.mxu0 0.0
  %3471 = vmatpush1.msra.mxu0 0.0
  %3472 = vmatprep.subr.mxu0 0.0
  %3473 = vmatpush1.msra.mxu0 0.0
  %3474 = vmatprep.subr.mxu0 0.0
  %3475 = vmatpush1.msra.mxu0 0.0
  %3476 = vmatprep.subr.mxu0 0.0
  %3477 = vmatpush1.msra.mxu0 0.0
  %3478 = vmatprep.subr.mxu0 0.0
  %3479 = vmatpush1.msra.mxu0 0.0
  %3480 = vmatprep.subr.mxu0 0.0
  %3481 = vmatpush1.msra.mxu0 0.0
  %3482 = vmatprep.subr.mxu0 0.0
  %3483 = vmatpush1.msra.mxu0 0.0
  %3484 = vmatprep.subr.mxu0 0.0
  %3485 = vmatpush1.msra.mxu0 0.0
  %3486 = vmatprep.subr.mxu0 0.0
  %3487 = vmatpush1.msra.mxu0 0.0
  %3488 = vmatprep.subr.mxu0 0.0
  %3489 = vmatpush1.msra.mxu0 0.0
  %3490 = vmatprep.subr.mxu0 0.0
  %3491 = vmatpush1.msra.mxu0 0.0
  %3492 = vmatprep.mubr.f32.mxu0 0.0
  %3493 = vmatmul.mubr.f32.gmra.mrb[0].mxu0 %v1325
  %v3494 = vpop.f32.mrb[0].mxu0
  %v3495 = vadd.f32 0.0, %v3494
  %v3496 = vpop.f32.mrb[0].mxu0
  %3497 = vdwg.mxu0
  %v3498 = vadd.f32 %v3411, %v3495
  %v3499 = vld [vmem:[%s4] sm:$0x1]
  %v3501 = vlaneseq
  %v3502 = vshrl.u32 %v3501, 7
  %v3503 = vsub.s32 0, %v3502
  %v3504 = vrot.slane %v3499, %v3503
  %v3506 = vadd.f32 %v3498, %v3504
  %v3507 = vmax.f32 %v3506, 0.0
  %v3508 = vld [vmem:[%s5] sm:$0xff]
  %v3509 = vld [vmem:[%s5 + $0x8] sm:$0xff]
  %v3510 = vld [vmem:[%s5 + $0x10] sm:$0xff]
  %v3511 = vld [vmem:[%s5 + $0x18] sm:$0xff]
  %v3512 = vld [vmem:[%s5 + $0x20] sm:$0xff]
  %v3513 = vld [vmem:[%s5 + $0x28] sm:$0xff]
  %v3514 = vld [vmem:[%s5 + $0x30] sm:$0xff]
  %v3515 = vld [vmem:[%s5 + $0x38] sm:$0xff]
  %v3516 = vld [vmem:[%s5 + $0x40] sm:$0xff]
  %v3517 = vld [vmem:[%s5 + $0x48] sm:$0xff]
  %v3518 = vld [vmem:[%s5 + $0x50] sm:$0xff]
  %v3519 = vld [vmem:[%s5 + $0x58] sm:$0xff]
  %v3520 = vld [vmem:[%s5 + $0x60] sm:$0xff]
  %v3521 = vld [vmem:[%s5 + $0x68] sm:$0xff]
  %v3522 = vld [vmem:[%s5 + $0x70] sm:$0xff]
  %v3523 = vld [vmem:[%s5 + $0x78] sm:$0xff]
  %v3524 = vld [vmem:[%s6] sm:$0x1]
  %v3526 = vlaneseq
  %v3527 = vshrl.u32 %v3526, 7
  %v3528 = vsub.s32 0, %v3527
  %v3529 = vrot.slane %v3524, %v3528
  %3531 = vmatprep.subr.mxu0 0.0
  %3532 = vmatpush1.msra.mxu0 %v3508
  %3533 = vmatprep.subr.mxu0 0.0
  %3534 = vmatpush1.msra.mxu0 %v3509
  %3535 = vmatprep.subr.mxu0 0.0
  %3536 = vmatpush1.msra.mxu0 %v3510
  %3537 = vmatprep.subr.mxu0 0.0
  %3538 = vmatpush1.msra.mxu0 %v3511
  %3539 = vmatprep.subr.mxu0 0.0
  %3540 = vmatpush1.msra.mxu0 %v3512
  %3541 = vmatprep.subr.mxu0 0.0
  %3542 = vmatpush1.msra.mxu0 %v3513
  %3543 = vmatprep.subr.mxu0 0.0
  %3544 = vmatpush1.msra.mxu0 %v3514
  %3545 = vmatprep.subr.mxu0 0.0
  %3546 = vmatpush1.msra.mxu0 %v3515
  %3547 = vmatprep.subr.mxu0 0.0
  %3548 = vmatpush1.msra.mxu0 %v3516
  %3549 = vmatprep.subr.mxu0 0.0
  %3550 = vmatpush1.msra.mxu0 %v3517
  %3551 = vmatprep.subr.mxu0 0.0
  %3552 = vmatpush1.msra.mxu0 %v3518
  %3553 = vmatprep.subr.mxu0 0.0
  %3554 = vmatpush1.msra.mxu0 %v3519
  %3555 = vmatprep.subr.mxu0 0.0
  %3556 = vmatpush1.msra.mxu0 %v3520
  %3557 = vmatprep.subr.mxu0 0.0
  %3558 = vmatpush1.msra.mxu0 %v3521
  %3559 = vmatprep.subr.mxu0 0.0
  %3560 = vmatpush1.msra.mxu0 %v3522
  %3561 = vmatprep.subr.mxu0 0.0
  %3562 = vmatpush1.msra.mxu0 %v3523
  %3563 = vmatprep.subr.mxu0 0.0
  %3564 = vmatpush1.msra.mxu0 0.0
  %3565 = vmatprep.subr.mxu0 0.0
  %3566 = vmatpush1.msra.mxu0 0.0
  %3567 = vmatprep.subr.mxu0 0.0
  %3568 = vmatpush1.msra.mxu0 0.0
  %3569 = vmatprep.subr.mxu0 0.0
  %3570 = vmatpush1.msra.mxu0 0.0
  %3571 = vmatprep.subr.mxu0 0.0
  %3572 = vmatpush1.msra.mxu0 0.0
  %3573 = vmatprep.subr.mxu0 0.0
  %3574 = vmatpush1.msra.mxu0 0.0
  %3575 = vmatprep.subr.mxu0 0.0
  %3576 = vmatpush1.msra.mxu0 0.0
  %3577 = vmatprep.subr.mxu0 0.0
  %3578 = vmatpush1.msra.mxu0 0.0
  %3579 = vmatprep.subr.mxu0 0.0
  %3580 = vmatpush1.msra.mxu0 0.0
  %3581 = vmatprep.subr.mxu0 0.0
  %3582 = vmatpush1.msra.mxu0 0.0
  %3583 = vmatprep.subr.mxu0 0.0
  %3584 = vmatpush1.msra.mxu0 0.0
  %3585 = vmatprep.subr.mxu0 0.0
  %3586 = vmatpush1.msra.mxu0 0.0
  %3587 = vmatprep.subr.mxu0 0.0
  %3588 = vmatpush1.msra.mxu0 0.0
  %3589 = vmatprep.subr.mxu0 0.0
  %3590 = vmatpush1.msra.mxu0 0.0
  %3591 = vmatprep.subr.mxu0 0.0
  %3592 = vmatpush1.msra.mxu0 0.0
  %3593 = vmatprep.subr.mxu0 0.0
  %3594 = vmatpush1.msra.mxu0 0.0
  %3595 = vmatprep.mubr.f32.mxu0 0.0
  %3596 = vmatmul.mubr.f32.gmra.mrb[0].mxu0 %v3507
  %v3597 = vpop.f32.mrb[0].mxu0
  %v3598 = vadd.f32 %v3529, %v3597
  %v3599 = vpop.f32.mrb[0].mxu0
  %3600 = vdwg.mxu0
  %v3601 = vmax.f32 %v3598, 0.0
  %v3602 = vld [vmem:[%s7] sm:$0xff]
  %v3603 = vld [vmem:[%s7 + $0x8] sm:$0xff]
  %v3604 = vld [vmem:[%s7 + $0x10] sm:$0xff]
  %v3605 = vld [vmem:[%s7 + $0x18] sm:$0xff]
  %v3606 = vld [vmem:[%s7 + $0x20] sm:$0xff]
  %v3607 = vld [vmem:[%s7 + $0x28] sm:$0xff]
  %v3608 = vld [vmem:[%s7 + $0x30] sm:$0xff]
  %v3609 = vld [vmem:[%s7 + $0x38] sm:$0xff]
  %v3610 = vld [vmem:[%s7 + $0x40] sm:$0xff]
  %v3611 = vld [vmem:[%s7 + $0x48] sm:$0xff]
  %v3612 = vld [vmem:[%s7 + $0x50] sm:$0xff]
  %v3613 = vld [vmem:[%s7 + $0x58] sm:$0xff]
  %v3614 = vld [vmem:[%s7 + $0x60] sm:$0xff]
  %v3615 = vld [vmem:[%s7 + $0x68] sm:$0xff]
  %v3616 = vld [vmem:[%s7 + $0x70] sm:$0xff]
  %v3617 = vld [vmem:[%s7 + $0x78] sm:$0xff]
  %v3618 = vld [vmem:[%s8] sm:$0x1]
  %v3620 = vlaneseq
  %v3621 = vshrl.u32 %v3620, 7
  %v3622 = vsub.s32 0, %v3621
  %v3623 = vrot.slane %v3618, %v3622
  %3625 = vmatprep.subr.mxu0 0.0
  %3626 = vmatpush1.msra.mxu0 %v3602
  %3627 = vmatprep.subr.mxu0 0.0
  %3628 = vmatpush1.msra.mxu0 %v3603
  %3629 = vmatprep.subr.mxu0 0.0
  %3630 = vmatpush1.msra.mxu0 %v3604
  %3631 = vmatprep.subr.mxu0 0.0
  %3632 = vmatpush1.msra.mxu0 %v3605
  %3633 = vmatprep.subr.mxu0 0.0
  %3634 = vmatpush1.msra.mxu0 %v3606
  %3635 = vmatprep.subr.mxu0 0.0
  %3636 = vmatpush1.msra.mxu0 %v3607
  %3637 = vmatprep.subr.mxu0 0.0
  %3638 = vmatpush1.msra.mxu0 %v3608
  %3639 = vmatprep.subr.mxu0 0.0
  %3640 = vmatpush1.msra.mxu0 %v3609
  %3641 = vmatprep.subr.mxu0 0.0
  %3642 = vmatpush1.msra.mxu0 %v3610
  %3643 = vmatprep.subr.mxu0 0.0
  %3644 = vmatpush1.msra.mxu0 %v3611
  %3645 = vmatprep.subr.mxu0 0.0
  %3646 = vmatpush1.msra.mxu0 %v3612
  %3647 = vmatprep.subr.mxu0 0.0
  %3648 = vmatpush1.msra.mxu0 %v3613
  %3649 = vmatprep.subr.mxu0 0.0
  %3650 = vmatpush1.msra.mxu0 %v3614
  %3651 = vmatprep.subr.mxu0 0.0
  %3652 = vmatpush1.msra.mxu0 %v3615
  %3653 = vmatprep.subr.mxu0 0.0
  %3654 = vmatpush1.msra.mxu0 %v3616
  %3655 = vmatprep.subr.mxu0 0.0
  %3656 = vmatpush1.msra.mxu0 %v3617
  %3657 = vmatprep.subr.mxu0 0.0
  %3658 = vmatpush1.msra.mxu0 0.0
  %3659 = vmatprep.subr.mxu0 0.0
  %3660 = vmatpush1.msra.mxu0 0.0
  %3661 = vmatprep.subr.mxu0 0.0
  %3662 = vmatpush1.msra.mxu0 0.0
  %3663 = vmatprep.subr.mxu0 0.0
  %3664 = vmatpush1.msra.mxu0 0.0
  %3665 = vmatprep.subr.mxu0 0.0
  %3666 = vmatpush1.msra.mxu0 0.0
  %3667 = vmatprep.subr.mxu0 0.0
  %3668 = vmatpush1.msra.mxu0 0.0
  %3669 = vmatprep.subr.mxu0 0.0
  %3670 = vmatpush1.msra.mxu0 0.0
  %3671 = vmatprep.subr.mxu0 0.0
  %3672 = vmatpush1.msra.mxu0 0.0
  %3673 = vmatprep.subr.mxu0 0.0
  %3674 = vmatpush1.msra.mxu0 0.0
  %3675 = vmatprep.subr.mxu0 0.0
  %3676 = vmatpush1.msra.mxu0 0.0
  %3677 = vmatprep.subr.mxu0 0.0
  %3678 = vmatpush1.msra.mxu0 0.0
  %3679 = vmatprep.subr.mxu0 0.0
  %3680 = vmatpush1.msra.mxu0 0.0
  %3681 = vmatprep.subr.mxu0 0.0
  %3682 = vmatpush1.msra.mxu0 0.0
  %3683 = vmatprep.subr.mxu0 0.0
  %3684 = vmatpush1.msra.mxu0 0.0
  %3685 = vmatprep.subr.mxu0 0.0
  %3686 = vmatpush1.msra.mxu0 0.0
  %3687 = vmatprep.subr.mxu0 0.0
  %3688 = vmatpush1.msra.mxu0 0.0
  %3689 = vmatprep.mubr.f32.mxu0 0.0
  %3690 = vmatmul.mubr.f32.gmra.mrb[0].mxu0 %v3601
  %v3691 = vpop.f32.mrb[0].mxu0
  %v3692 = vadd.f32 %v3623, %v3691
  %v3693 = vpop.f32.mrb[0].mxu0
  %3694 = vdwg.mxu0
  %3695 = vst [vmem:[%s9] sm:$0xff] %v3692
  // Predicated region
  $region38: #{net_forward.3} parent=0 // pred_check
    _
  $region39: #{net_forward.3} parent=0 // pred_check_branch
    %3697 = sbr.rel (0) target = $region41
  $region40: #{net_forward.3} parent=0 // pred_region
    _
  $region41: #{net_forward.3} parent=0 // pred_fallthru
    _
  // Predicated region
  $region42: #{net_forward.3} parent=0 // pred_check
    _
  $region43: #{net_forward.3} parent=0 // pred_check_branch
    %3699 = sbr.rel (0) target = $region45
  $region44: #{net_forward.3} parent=0 // pred_region
    _
  $region45: #{net_forward.3} parent=0 // pred_fallthru
    _

</llo_original>
